<compile_context>
chip_gen: v6e
topology: v6e:2x2x1
jax: 0.10.0
libtpu: 0.0.40
codegen_flags: <defaults>
</compile_context>

<pallas_src>
import functools
import math

import jax
import jax.numpy as jnp
from jax.experimental import pallas as pl
from jax.experimental.pallas import tpu as pltpu

_MIB = 1 << 20


def _clamp_vmem(est_bytes):
    # Raise above the 16/32 MiB scoped defaults when the block footprint needs it,
    # stay under v7x's 64 MiB physical per-TensorCore budget.
    return int(min(max(est_bytes, 32 * _MIB), 60 * _MIB))


# ----------------------------------------------------------------------------
# Kernel 1: fused dual multi-head self-attention (reply + speaker) + residual
#           + LayerNorm + elementwise max.  Grid = (batch, q-tile).
# ----------------------------------------------------------------------------
def dual_mha_kernel(x_ref, brep_ref, bspe_ref,
                    wq_rep_ref, wkv_rep_ref, wo_rep_ref, g_rep_ref, b_rep_ref,
                    wq_spe_ref, wkv_spe_ref, wo_spe_ref, g_spe_ref, b_spe_ref,
                    out_ref, *, n_head, d_k, tq):
    qi = pl.program_id(1)
    _, S, H = x_ref.shape

    x_full = x_ref[0]                                  # (S, H) f32 — K/V source
    row0 = pl.multiple_of(qi * tq, tq)
    xq = x_ref[0, pl.ds(row0, tq), :]                  # (tq, H) f32 — residual rows
    x_bf = x_full.astype(jnp.bfloat16)
    xq_bf = xq.astype(jnp.bfloat16)

    def branch(bias_ref, wq_ref, wkv_ref, wo_ref, g_ref, beta_ref):
        # Q projection only for the q-tile rows; 1/sqrt(d_k) folded into wq at init.
        q = jnp.dot(xq_bf, wq_ref[...], preferred_element_type=jnp.float32)    # (tq, H)
        # Fused K/V projection over the full sequence.
        kv = jnp.dot(x_bf, wkv_ref[...], preferred_element_type=jnp.float32)   # (S, 2H)
        k, v = kv[:, :H], kv[:, H:]

        # Single relayout per branch (head-major), then batched MXU matmuls —
        # replaces n_head lane-slices + concat of the previous version.
        qh = jnp.transpose(q.reshape(tq, n_head, d_k), (1, 0, 2)).astype(jnp.bfloat16)
        kh = jnp.transpose(k.reshape(S, n_head, d_k), (1, 0, 2)).astype(jnp.bfloat16)
        vh = jnp.transpose(v.reshape(S, n_head, d_k), (1, 0, 2)).astype(jnp.bfloat16)

        scores = jnp.einsum('hqd,hkd->hqk', qh, kh,
                            preferred_element_type=jnp.float32)                # (h, tq, S)
        scores = scores + bias_ref[0][None, :, :].astype(jnp.float32)          # additive mask
        scores = scores - jnp.max(scores, axis=-1, keepdims=True)
        e = jnp.exp(scores)
        attn = e * pl.reciprocal(jnp.sum(e, axis=-1, keepdims=True), approx=True)

        ctx = jnp.einsum('hqk,hkd->hqd', attn.astype(jnp.bfloat16), vh,
                         preferred_element_type=jnp.float32)                   # (h, tq, d_k)
        o = jnp.transpose(ctx, (1, 0, 2)).reshape(tq, H).astype(jnp.bfloat16)  # (tq, H)

        y = jnp.dot(o, wo_ref[...], preferred_element_type=jnp.float32) + xq   # residual
        mean = jnp.mean(y, axis=-1, keepdims=True)
        var = jnp.mean((y - mean) ** 2, axis=-1, keepdims=True)
        yn = (y - mean) * jax.lax.rsqrt(var + 1e-6)                            # eps=1e-6 (matches ref)
        return yn * g_ref[...] + beta_ref[...]

    rep = branch(brep_ref, wq_rep_ref, wkv_rep_ref, wo_rep_ref, g_rep_ref, b_rep_ref)
    spe = branch(bspe_ref, wq_spe_ref, wkv_spe_ref, wo_spe_ref, g_spe_ref, b_spe_ref)
    out_ref[0] = jnp.maximum(rep, spe).astype(out_ref.dtype)


def dual_attention(x, bias_rep, bias_spe, p, *, n_head, d_k):
    B, S, H = x.shape
    # q-tile: full sequence at toy shapes, 128-row tiles at real BERT shapes.
    tq = S if (S <= 128 or S % 128 != 0) else 128
    n_q = S // tq

    const = dict(pipeline_mode=pl.Buffered(1))        # grid-invariant -> single buffer
    def weight_spec(shape):
        return pl.BlockSpec(shape, lambda b, q: (0, 0), **const)

    bf, f32 = 2, 4
    est = (2 * (H * H + H * 2 * H + H * H) * bf       # both branches' weights (single-buffered)
           + 2 * S * H * f32                          # x block (double-buffered)
           + 2 * 2 * 2 * tq * S * bf                  # two bf16 mask-bias blocks (double-buffered)
           + 2 * tq * H * f32                         # output block
           + S * 3 * H * f32                          # kv + bf16 copies of x
           + 6 * n_head * tq * S * f32                # scores / exp / attn temporaries
           + 8 * tq * H * f32)                        # per-branch (tq,H) temporaries

    kern = functools.partial(dual_mha_kernel, n_head=n_head, d_k=d_k, tq=tq)
    return pl.pallas_call(
        kern,
        out_shape=jax.ShapeDtypeStruct((B, S, H), jnp.float32),
        grid=(B, n_q),
        in_specs=[
            pl.BlockSpec((1, S, H), lambda b, q: (b, 0, 0)),    # x (full seq: K/V source)
            pl.BlockSpec((1, tq, S), lambda b, q: (b, q, 0)),   # reply mask bias (bf16)
            pl.BlockSpec((1, tq, S), lambda b, q: (b, q, 0)),   # speaker mask bias (bf16)
            weight_spec((H, H)),          # rep_wq (scale folded)
            weight_spec((H, 2 * H)),      # rep_wkv
            weight_spec((H, H)),          # rep_wo
            weight_spec((1, H)),          # rep_gamma
            weight_spec((1, H)),          # rep_beta
            weight_spec((H, H)),          # spe_wq
            weight_spec((H, 2 * H)),      # spe_wkv
            weight_spec((H, H)),          # spe_wo
            weight_spec((1, H)),          # spe_gamma
            weight_spec((1, H)),          # spe_beta
        ],
        out_specs=pl.BlockSpec((1, tq, H), lambda b, q: (b, q, 0)),
        compiler_params=pltpu.CompilerParams(
            dimension_semantics=("parallel", "parallel"),
            vmem_limit_bytes=_clamp_vmem(2 * est)),
    )(x, bias_rep, bias_spe,
      p["rep_wq"], p["rep_wkv"], p["rep_wo"], p["rep_g"], p["rep_b"],
      p["spe_wq"], p["spe_wkv"], p["spe_wo"], p["spe_g"], p["spe_b"])


# ----------------------------------------------------------------------------
# Kernel 2: span_mapping Linear (2H -> H, with bias), gridded over row tiles
# ----------------------------------------------------------------------------
def linear_kernel(x_ref, w_ref, b_ref, o_ref):
    x = x_ref[...].astype(jnp.bfloat16)
    o_ref[...] = (jnp.dot(x, w_ref[...], preferred_element_type=jnp.float32)
                  + b_ref[...]).astype(o_ref.dtype)


def linear(x2d, w_bf16, bias_row, *, max_tile_rows=256):
    M, Kin = x2d.shape
    Hout = w_bf16.shape[1]
    tm = min(max_tile_rows, ((M + 7) // 8) * 8)
    Mp = ((M + tm - 1) // tm) * tm
    xp = jnp.pad(x2d, ((0, Mp - M), (0, 0))) if Mp != M else x2d
    out = pl.pallas_call(
        linear_kernel,
        out_shape=jax.ShapeDtypeStruct((Mp, Hout), jnp.float32),
        grid=(Mp // tm,),
        in_specs=[
            pl.BlockSpec((tm, Kin), lambda i: (i, 0)),
            pl.BlockSpec((Kin, Hout), lambda i: (0, 0), pipeline_mode=pl.Buffered(1)),
            pl.BlockSpec((1, Hout), lambda i: (0, 0), pipeline_mode=pl.Buffered(1)),
        ],
        out_specs=pl.BlockSpec((tm, Hout), lambda i: (i, 0)),
        compiler_params=pltpu.CompilerParams(dimension_semantics=("parallel",)),
    )(xp, w_bf16, bias_row)
    return out[:M] if Mp != M else out


# ----------------------------------------------------------------------------
# Kernel 3: pair representation + table FFNN (algebraically restructured)
#   h[i,j] = relu(s_i@W1a + s_j@W1b + (s_i*s_j)@W1c + b1) ; out = h@W2 + b2
# ----------------------------------------------------------------------------
def pair_ffnn_kernel(s_ref, w1_ref, b1_ref, w2_ref, b2_ref, out_ref, *, k, hidden):
    K, H = k, hidden
    F = w1_ref.shape[1]
    s = s_ref[0]                                       # (K, H) f32
    s_bf = s.astype(jnp.bfloat16)
    w1 = w1_ref[...]                                   # (3H, F) bf16

    a = jnp.dot(s_bf, w1[:H, :], preferred_element_type=jnp.float32)         # (K, F)  s_i part
    b = jnp.dot(s_bf, w1[H:2 * H, :], preferred_element_type=jnp.float32)    # (K, F)  s_j part
    si = jnp.broadcast_to(s[:, None, :], (K, K, H)).reshape(K * K, H)
    sj = jnp.broadcast_to(s[None, :, :], (K, K, H)).reshape(K * K, H)
    c = jnp.dot((si * sj).astype(jnp.bfloat16), w1[2 * H:, :],
                preferred_element_type=jnp.float32)                          # (K*K, F)

    h = (jnp.broadcast_to(a[:, None, :], (K, K, F)).reshape(K * K, F)
         + jnp.broadcast_to(b[None, :, :], (K, K, F)).reshape(K * K, F)
         + c + b1_ref[...])
    h = jnp.maximum(h, 0.0).astype(jnp.bfloat16)                             # ReLU
    o = jnp.dot(h, w2_ref[...], preferred_element_type=jnp.float32) + b2_ref[...]
    out_ref[0] = o.astype(out_ref.dtype)                                     # lane-dense store


def pair_ffnn(topk_states, w1_bf16, b1_row, w2_bf16, b2_row, *, k, hidden, n_class):
    B = topk_states.shape[0]
    F = w1_bf16.shape[1]
    NC = ((n_class + 127) // 128) * 128                # pad class dim for unmasked vst
    w2_p = jnp.pad(w2_bf16, ((0, 0), (0, NC - n_class)))
    b2_p = jnp.pad(b2_row, ((0, 0), (0, NC - n_class)))

    const = dict(pipeline_mode=pl.Buffered(1))
    bf, f32 = 2, 4
    est = ((3 * hidden * F + F * NC) * bf              # weights (single-buffered)
           + 2 * k * hidden * f32                      # s block
           + 2 * k * k * NC * f32                      # output block
           + 3 * k * k * hidden * f32                  # si / sj / product
           + 4 * k * k * F * f32)                      # first-layer temporaries

    kern = functools.partial(pair_ffnn_kernel, k=k, hidden=hidden)
    out = pl.pallas_call(
        kern,
        out_shape=jax.ShapeDtypeStruct((B, k * k, NC), jnp.float32),
        grid=(B,),
        in_specs=[
            pl.BlockSpec((1, k, hidden), lambda b: (b, 0, 0)),
            pl.BlockSpec((3 * hidden, F), lambda b: (0, 0), **const),
            pl.BlockSpec((1, F), lambda b: (0, 0), **const),
            pl.BlockSpec((F, NC), lambda b: (0, 0), **const),
            pl.BlockSpec((1, NC), lambda b: (0, 0), **const),
        ],
        out_specs=pl.BlockSpec((1, k * k, NC), lambda b: (b, 0, 0)),
        compiler_params=pltpu.CompilerParams(
            dimension_semantics=("parallel",),
            vmem_limit_bytes=_clamp_vmem(2 * est)),
    )(topk_states, w1_bf16, b1_row, w2_p, b2_p)
    return out[:, :, :n_class].reshape(B, k, k, n_class)


# ----------------------------------------------------------------------------
# Full forward pass
# ----------------------------------------------------------------------------
def model_forward(params, input_ids, attn_masks, span_indices,
                  span_postag_labels, span_labels, topk_span_indices_idx,
                  mask_rep, mask_spe, *, n_head, d_k):
    del attn_masks, span_postag_labels, span_labels   # unused (as in reference)
    B, S = input_ids.shape
    K = topk_span_indices_idx.shape[1]

    # --- span pair indices (glue) ---
    topk_span_indices = jnp.take_along_axis(
        span_indices, topk_span_indices_idx[:, :, None], axis=1)        # (B, K, 2)
    topk_exp = jnp.broadcast_to(topk_span_indices[:, :, None, :], (B, K, K, 2))
    span_pair_indices = jnp.concatenate(
        [topk_exp, jnp.transpose(topk_exp, (0, 2, 1, 3))], axis=-1)     # (B, K, K, 4)

    # --- "BERT" encoder stub: deterministic token embedding lookup ---
    bert_states = jnp.take(params["tok_emb"], input_ids, axis=0)        # (B, S, H) f32

    # --- additive mask biases precomputed once as bf16 (less mask DMA than int32) ---
    bias_rep = jnp.where(mask_rep == 0, -1000000000.0, 0.0).astype(jnp.bfloat16)
    bias_spe = jnp.where(mask_spe == 0, -1000000000.0, 0.0).astype(jnp.bfloat16)

    # --- fused dual self-attention + max (Pallas) ---
    bert_states = dual_attention(bert_states, bias_rep, bias_spe, params,
                                 n_head=n_head, d_k=d_k)                # (B, S, H)

    # --- span representation: gather begin/end states, concat (glue) ---
    H = bert_states.shape[-1]
    begin_idx = span_indices[:, :, 0]
    end_idx = span_indices[:, :, 1]
    begin_states = jnp.take_along_axis(bert_states, begin_idx[:, :, None], axis=1)
    end_states = jnp.take_along_axis(bert_states, end_idx[:, :, None], axis=1)
    x_spans = jnp.concatenate([begin_states, end_states], axis=-1)      # (B, N, 2H)

    # --- span_mapping linear (Pallas) ---
    N = x_spans.shape[1]
    span_states = linear(x_spans.reshape(B * N, 2 * H),
                         params["span_map_w"], params["span_map_b"])
    span_states = span_states.reshape(B, N, H)

    # --- top-k span states gather (glue) ---
    topk_span_states = jnp.take_along_axis(
        span_states, topk_span_indices_idx[:, :, None], axis=1)         # (B, K, H)

    # --- pair representation + table FFNN (Pallas) ---
    span_pair_probs = pair_ffnn(topk_span_states,
                                params["ffnn_w1"], params["ffnn_b1"],
                                params["ffnn_w2"], params["ffnn_b2"],
                                k=K, hidden=H,
                                n_class=params["ffnn_b2"].shape[-1])
    return span_pair_probs, span_pair_indices


# ----------------------------------------------------------------------------
# Deterministic parameter construction (matmul weights stored bf16)
# ----------------------------------------------------------------------------
def init_params(key, *, vocab, H, ffnn_hidden, table_nclass):
    n_head = 4
    d_k = H // n_head
    inv_temp = 1.0 / math.sqrt(d_k)
    keys = jax.random.split(key, 13)

    def w(i, shape, s=0.05, dtype=jnp.bfloat16):
        return (s * jax.random.normal(keys[i], shape)).astype(dtype)

    params = {
        "tok_emb": w(0, (vocab, H), 0.2, jnp.float32),
        # self_attn_reply: wq (scale 1/sqrt(d_k) folded in), fused [wk|wv], output proj
        "rep_wq": (w(1, (H, H), dtype=jnp.float32) * inv_temp).astype(jnp.bfloat16),
        "rep_wkv": w(2, (H, 2 * H)),
        "rep_wo": w(3, (H, H)),
        "rep_g": jnp.ones((1, H), jnp.float32),
        "rep_b": jnp.zeros((1, H), jnp.float32),
        # self_attn_speaker
        "spe_wq": (w(4, (H, H), dtype=jnp.float32) * inv_temp).astype(jnp.bfloat16),
        "spe_wkv": w(5, (H, 2 * H)),
        "spe_wo": w(6, (H, H)),
        "spe_g": jnp.ones((1, H), jnp.float32),
        "spe_b": jnp.zeros((1, H), jnp.float32),
        # span_mapping: Linear(2H -> H)
        "span_map_w": w(7, (2 * H, H)),
        "span_map_b": w(8, (1, H), dtype=jnp.float32),
        # table_ffnn: Linear(3H -> F), ReLU, Dropout(id), Linear(F -> n_class)
        "ffnn_w1": w(9, (3 * H, ffnn_hidden)),
        "ffnn_b1": w(10, (1, ffnn_hidden), dtype=jnp.float32),
        "ffnn_w2": w(11, (ffnn_hidden, table_nclass)),
        "ffnn_b2": w(12, (1, table_nclass), dtype=jnp.float32),
    }
    return params


if __name__ == "__main__":
    # Small shapes consistent with the forward pass
    B, S, H = 2, 16, 32          # batch, sequence length, "BERT" hidden size
    N_HEAD = 4
    D_K = H // N_HEAD            # att_head_size = encoding_dim / 4
    N_SPANS, K = 8, 4            # candidate spans, top-k spans
    FFNN_HIDDEN, TABLE_NCLASS = 32, 5
    VOCAB = 100

    root = jax.random.PRNGKey(0)
    pkey, k_ids, k_beg, k_wid, k_top, k_mr, k_ms = jax.random.split(root, 7)

    params = init_params(pkey, vocab=VOCAB, H=H,
                         ffnn_hidden=FFNN_HIDDEN, table_nclass=TABLE_NCLASS)

    input_ids = jax.random.randint(k_ids, (B, S), 0, VOCAB, dtype=jnp.int32)
    attn_masks = jnp.ones((B, S), dtype=jnp.bool_)
    begin = jax.random.randint(k_beg, (B, N_SPANS), 0, S - 1, dtype=jnp.int32)
    width = jax.random.randint(k_wid, (B, N_SPANS), 0, 4, dtype=jnp.int32)
    end = jnp.minimum(begin + width, S - 1)
    span_indices = jnp.stack([begin, end], axis=-1)                     # (B, N, 2)
    span_postag_labels = jnp.zeros((B, N_SPANS), dtype=jnp.int32)       # unused
    span_labels = jnp.zeros((B, N_SPANS), dtype=jnp.int32)              # unused
    topk_span_indices_idx = jax.random.randint(
        k_top, (B, K), 0, N_SPANS, dtype=jnp.int32)
    mask_rep = jax.random.randint(k_mr, (B, S, S), 0, 2, dtype=jnp.int32)
    mask_spe = jax.random.randint(k_ms, (B, S, S), 0, 2, dtype=jnp.int32)

    fwd = jax.jit(functools.partial(model_forward, n_head=N_HEAD, d_k=D_K))
    span_pair_probs, span_pair_indices = fwd(
        params, input_ids, attn_masks, span_indices, span_postag_labels,
        span_labels, topk_span_indices_idx, mask_rep, mask_spe)
    jax.block_until_ready((span_pair_probs, span_pair_indices))

    assert span_pair_probs.shape == (B, K, K, TABLE_NCLASS)
    assert span_pair_indices.shape == (B, K, K, 4)
    assert bool(jnp.all(jnp.isfinite(span_pair_probs)))
    print("KERNEL_OK")
</pallas_src>

<mosaic_0001>
module attributes {stable_mosaic.version = 11 : i64} {
  func.func @linear_kernel(%arg0: i32, %arg1: memref<16x64xf32, #tpu.memory_space<vmem>>, %arg2: memref<64x32xbf16, #tpu.memory_space<vmem>>, %arg3: memref<1x32xf32, #tpu.memory_space<vmem>>, %arg4: memref<16x32xf32, #tpu.memory_space<vmem>>) attributes {dimension_semantics = [#tpu.dimension_semantics<parallel>], iteration_bounds = array<i64: 1>, scalar_prefetch = 0 : i64, scratch_operands = 0 : i64, tpu.core_type = #tpu.core_type<tc>, window_params = [{transform_indices = @transform_0, window_bounds = array<i64: 16, 64>}, {pipeline_mode = #tpu.pipeline_mode<synchronous>, transform_indices = @transform_1, window_bounds = array<i64: 64, 32>}, {pipeline_mode = #tpu.pipeline_mode<synchronous>, transform_indices = @transform_2, window_bounds = array<i64: 1, 32>}, {transform_indices = @transform_3, window_bounds = array<i64: 16, 32>}]} {
    %c0 = arith.constant 0 : index
    %c0_0 = arith.constant 0 : index
    %0 = vector.load %arg1[%c0, %c0_0] : memref<16x64xf32, #tpu.memory_space<vmem>>, vector<16x64xf32>
    %1 = arith.truncf %0 : vector<16x64xf32> to vector<16x64xbf16>
    %c0_1 = arith.constant 0 : index
    %c0_2 = arith.constant 0 : index
    %2 = vector.load %arg2[%c0_1, %c0_2] : memref<64x32xbf16, #tpu.memory_space<vmem>>, vector<64x32xbf16>
    %cst = arith.constant dense<0.000000e+00> : vector<16x32xf32>
    %3 = tpu.matmul %1, %2, %cst {dimension_numbers = #tpu.dot_dimension_numbers<[1], [0], [0], [1], [0, 0, 1, 1], [], []>} : vector<16x64xbf16>, vector<64x32xbf16>, vector<16x32xf32> -> vector<16x32xf32>
    %c0_3 = arith.constant 0 : index
    %c0_4 = arith.constant 0 : index
    %4 = vector.load %arg3[%c0_3, %c0_4] : memref<1x32xf32, #tpu.memory_space<vmem>>, vector<1x32xf32>
    %5 = vector.broadcast %4 : vector<1x32xf32> to vector<16x32xf32>
    %6 = arith.addf %3, %5 : vector<16x32xf32>
    %c0_5 = arith.constant 0 : index
    %c0_6 = arith.constant 0 : index
    %7 = vector.load %arg4[%c0_5, %c0_6] : memref<16x32xf32, #tpu.memory_space<vmem>>, vector<16x32xf32>
    tpu.vector_store %arg4[%c0_5, %c0_6], %6 {strides = array<i32>} : memref<16x32xf32, #tpu.memory_space<vmem>>, vector<16x32xf32>,
    return
  }
  func.func @transform_0(%arg0: i32) -> (i32, i32) {
    %c0_i32 = arith.constant 0 : i32
    %c0_i32_0 = arith.constant 0 : i32
    return %arg0, %c0_i32 : i32, i32
  }
  func.func @transform_1(%arg0: i32) -> (i32, i32) {
    %c0_i32 = arith.constant 0 : i32
    %c0_i32_0 = arith.constant 0 : i32
    %c0_i32_1 = arith.constant 0 : i32
    return %c0_i32, %c0_i32_0 : i32, i32
  }
  func.func @transform_2(%arg0: i32) -> (i32, i32) {
    %c0_i32 = arith.constant 0 : i32
    %c0_i32_0 = arith.constant 0 : i32
    %c0_i32_1 = arith.constant 0 : i32
    return %c0_i32, %c0_i32_0 : i32, i32
  }
  func.func @transform_3(%arg0: i32) -> (i32, i32) {
    %c0_i32 = arith.constant 0 : i32
    %c0_i32_0 = arith.constant 0 : i32
    return %arg0, %c0_i32 : i32, i32
  }
}

module attributes {stable_mosaic.version = 11 : i64} {
  func.func @dual_mha_kernel(%arg0: i32, %arg1: i32, %arg2: memref<1x16x32xf32, #tpu.memory_space<vmem>>, %arg3: memref<1x16x16xbf16, #tpu.memory_space<vmem>>, %arg4: memref<1x16x16xbf16, #tpu.memory_space<vmem>>, %arg5: memref<32x32xbf16, #tpu.memory_space<vmem>>, %arg6: memref<32x64xbf16, #tpu.memory_space<vmem>>, %arg7: memref<32x32xbf16, #tpu.memory_space<vmem>>, %arg8: memref<1x32xf32, #tpu.memory_space<vmem>>, %arg9: memref<1x32xf32, #tpu.memory_space<vmem>>, %arg10: memref<32x32xbf16, #tpu.memory_space<vmem>>, %arg11: memref<32x64xbf16, #tpu.memory_space<vmem>>, %arg12: memref<32x32xbf16, #tpu.memory_space<vmem>>, %arg13: memref<1x32xf32, #tpu.memory_space<vmem>>, %arg14: memref<1x32xf32, #tpu.memory_space<vmem>>, %arg15: memref<1x16x32xf32, #tpu.memory_space<vmem>>) attributes {dimension_semantics = [#tpu.dimension_semantics<parallel>, #tpu.dimension_semantics<parallel>], iteration_bounds = array<i64: 2, 1>, scalar_prefetch = 0 : i64, scratch_operands = 0 : i64, tpu.core_type = #tpu.core_type<tc>, window_params = [{transform_indices = @transform_0, window_bounds = array<i64: 1, 16, 32>}, {transform_indices = @transform_1, window_bounds = array<i64: 1, 16, 16>}, {transform_indices = @transform_2, window_bounds = array<i64: 1, 16, 16>}, {pipeline_mode = #tpu.pipeline_mode<synchronous>, transform_indices = @transform_3, window_bounds = array<i64: 32, 32>}, {pipeline_mode = #tpu.pipeline_mode<synchronous>, transform_indices = @transform_4, window_bounds = array<i64: 32, 64>}, {pipeline_mode = #tpu.pipeline_mode<synchronous>, transform_indices = @transform_5, window_bounds = array<i64: 32, 32>}, {pipeline_mode = #tpu.pipeline_mode<synchronous>, transform_indices = @transform_6, window_bounds = array<i64: 1, 32>}, {pipeline_mode = #tpu.pipeline_mode<synchronous>, transform_indices = @transform_7, window_bounds = array<i64: 1, 32>}, {pipeline_mode = #tpu.pipeline_mode<synchronous>, transform_indices = @transform_8, window_bounds = array<i64: 32, 32>}, {pipeline_mode = #tpu.pipeline_mode<synchronous>, transform_indices = @transform_9, window_bounds = array<i64: 32, 64>}, {pipeline_mode = #tpu.pipeline_mode<synchronous>, transform_indices = @transform_10, window_bounds = array<i64: 32, 32>}, {pipeline_mode = #tpu.pipeline_mode<synchronous>, transform_indices = @transform_11, window_bounds = array<i64: 1, 32>}, {pipeline_mode = #tpu.pipeline_mode<synchronous>, transform_indices = @transform_12, window_bounds = array<i64: 1, 32>}, {transform_indices = @transform_13, window_bounds = array<i64: 1, 16, 32>}]} {
    %c0 = arith.constant 0 : index
    %c0_0 = arith.constant 0 : index
    %c0_1 = arith.constant 0 : index
    %0 = vector.load %arg2[%c0, %c0_0, %c0_1] : memref<1x16x32xf32, #tpu.memory_space<vmem>>, vector<1x16x32xf32>
    %1 = vector.shape_cast %0 : vector<1x16x32xf32> to vector<16x32xf32>
    %c16_i32 = arith.constant 16 : i32
    %2 = arith.muli %arg1, %c16_i32 : i32
    %3 = tpu.assume_multiple %2, 16 : i32
    %c0_2 = arith.constant 0 : index
    %4 = arith.index_cast %3 : i32 to index
    %c0_3 = arith.constant 0 : index
    %5 = vector.load %arg2[%c0_2, %4, %c0_3] : memref<1x16x32xf32, #tpu.memory_space<vmem>>, vector<1x16x32xf32>
    %6 = vector.shape_cast %5 : vector<1x16x32xf32> to vector<16x32xf32>
    %7 = arith.truncf %1 : vector<16x32xf32> to vector<16x32xbf16>
    %8 = arith.truncf %6 : vector<16x32xf32> to vector<16x32xbf16>
    %c0_4 = arith.constant 0 : index
    %c0_5 = arith.constant 0 : index
    %9 = vector.load %arg5[%c0_4, %c0_5] : memref<32x32xbf16, #tpu.memory_space<vmem>>, vector<32x32xbf16>
    %cst = arith.constant dense<0.000000e+00> : vector<16x32xf32>
    %10 = tpu.matmul %8, %9, %cst {dimension_numbers = #tpu.dot_dimension_numbers<[1], [0], [0], [1], [0, 0, 1, 1], [], []>} : vector<16x32xbf16>, vector<32x32xbf16>, vector<16x32xf32> -> vector<16x32xf32>
    %c0_6 = arith.constant 0 : index
    %c0_7 = arith.constant 0 : index
    %11 = vector.load %arg6[%c0_6, %c0_7] : memref<32x64xbf16, #tpu.memory_space<vmem>>, vector<32x64xbf16>
    %cst_8 = arith.constant dense<0.000000e+00> : vector<16x64xf32>
    %12 = tpu.matmul %7, %11, %cst_8 {dimension_numbers = #tpu.dot_dimension_numbers<[1], [0], [0], [1], [0, 0, 1, 1], [], []>} : vector<16x32xbf16>, vector<32x64xbf16>, vector<16x64xf32> -> vector<16x64xf32>
    %13 = vector.extract_strided_slice %12 {offsets = [0, 0], sizes = [16, 32], strides = [1, 1]} : vector<16x64xf32> to vector<16x32xf32>
    %14 = vector.extract_strided_slice %12 {offsets = [0, 32], sizes = [16, 32], strides = [1, 1]} : vector<16x64xf32> to vector<16x32xf32>
    %15 = vector.shape_cast %10 : vector<16x32xf32> to vector<16x4x8xf32>
    %16 = tpu.transpose %15, [1, 0, 2] : vector<16x4x8xf32> -> vector<4x16x8xf32>
    %17 = arith.truncf %16 : vector<4x16x8xf32> to vector<4x16x8xbf16>
    %18 = vector.shape_cast %13 : vector<16x32xf32> to vector<16x4x8xf32>
    %19 = tpu.transpose %18, [1, 0, 2] : vector<16x4x8xf32> -> vector<4x16x8xf32>
    %20 = arith.truncf %19 : vector<4x16x8xf32> to vector<4x16x8xbf16>
    %21 = vector.shape_cast %14 : vector<16x32xf32> to vector<16x4x8xf32>
    %22 = tpu.transpose %21, [1, 0, 2] : vector<16x4x8xf32> -> vector<4x16x8xf32>
    %23 = arith.truncf %22 : vector<4x16x8xf32> to vector<4x16x8xbf16>
    "tpu.trace_start"() <{level = 10 : i32, message = "hqd,hkd->hqk"}> : () -> ()
    %cst_9 = arith.constant dense<0.000000e+00> : vector<4x16x16xf32>
    %24 = tpu.matmul %17, %20, %cst_9 {dimension_numbers = #tpu.dot_dimension_numbers<[2], [2], [1], [1], [0, 0, 0, 1, 1, 1], [0], [0]>} : vector<4x16x8xbf16>, vector<4x16x8xbf16>, vector<4x16x16xf32> -> vector<4x16x16xf32>
    "tpu.trace_stop"() : () -> ()
    %c0_10 = arith.constant 0 : index
    %c0_11 = arith.constant 0 : index
    %c0_12 = arith.constant 0 : index
    %25 = vector.load %arg3[%c0_10, %c0_11, %c0_12] : memref<1x16x16xbf16, #tpu.memory_space<vmem>>, vector<1x16x16xbf16>
    %26 = vector.shape_cast %25 : vector<1x16x16xbf16> to vector<16x16xbf16>
    %27 = vector.shape_cast %26 : vector<16x16xbf16> to vector<1x16x16xbf16>
    %28 = arith.extf %27 : vector<1x16x16xbf16> to vector<1x16x16xf32>
    %29 = vector.broadcast %28 : vector<1x16x16xf32> to vector<4x16x16xf32>
    %30 = arith.addf %24, %29 : vector<4x16x16xf32>
    %cst_13 = arith.constant dense<0xFF800000> : vector<4x16xf32>
    %31 = vector.multi_reduction <maximumf>, %30, %cst_13 [2] : vector<4x16x16xf32> to vector<4x16xf32>
    %32 = vector.shape_cast %31 : vector<4x16xf32> to vector<4x16x1xf32>
    %33 = vector.broadcast %32 : vector<4x16x1xf32> to vector<4x16x16xf32>
    %34 = arith.subf %30, %33 : vector<4x16x16xf32>
    %35 = math.exp %34 : vector<4x16x16xf32>
    %cst_14 = arith.constant dense<0.000000e+00> : vector<4x16xf32>
    %36 = vector.multi_reduction <add>, %35, %cst_14 [2] : vector<4x16x16xf32> to vector<4x16xf32>
    %37 = vector.shape_cast %36 : vector<4x16xf32> to vector<4x16x1xf32>
    %38 = tpu.reciprocal %37 {approx = true} : vector<4x16x1xf32> -> vector<4x16x1xf32>
    %39 = vector.broadcast %38 : vector<4x16x1xf32> to vector<4x16x16xf32>
    %40 = arith.mulf %35, %39 : vector<4x16x16xf32>
    %41 = arith.truncf %40 : vector<4x16x16xf32> to vector<4x16x16xbf16>
    "tpu.trace_start"() <{level = 10 : i32, message = "hqk,hkd->hqd"}> : () -> ()
    %cst_15 = arith.constant dense<0.000000e+00> : vector<4x16x8xf32>
    %42 = tpu.matmul %41, %23, %cst_15 {dimension_numbers = #tpu.dot_dimension_numbers<[2], [1], [1], [2], [0, 0, 0, 1, 1, 2], [0], [0]>} : vector<4x16x16xbf16>, vector<4x16x8xbf16>, vector<4x16x8xf32> -> vector<4x16x8xf32>
    "tpu.trace_stop"() : () -> ()
    %43 = tpu.transpose %42, [1, 0, 2] : vector<4x16x8xf32> -> vector<16x4x8xf32>
    %44 = vector.shape_cast %43 : vector<16x4x8xf32> to vector<16x32xf32>
    %45 = arith.truncf %44 : vector<16x32xf32> to vector<16x32xbf16>
    %c0_16 = arith.constant 0 : index
    %c0_17 = arith.constant 0 : index
    %46 = vector.load %arg7[%c0_16, %c0_17] : memref<32x32xbf16, #tpu.memory_space<vmem>>, vector<32x32xbf16>
    %cst_18 = arith.constant dense<0.000000e+00> : vector<16x32xf32>
    %47 = tpu.matmul %45, %46, %cst_18 {dimension_numbers = #tpu.dot_dimension_numbers<[1], [0], [0], [1], [0, 0, 1, 1], [], []>} : vector<16x32xbf16>, vector<32x32xbf16>, vector<16x32xf32> -> vector<16x32xf32>
    %48 = arith.addf %47, %6 : vector<16x32xf32>
    %cst_19 = arith.constant dense<0.000000e+00> : vector<16xf32>
    %49 = vector.multi_reduction <add>, %48, %cst_19 [1] : vector<16x32xf32> to vector<16xf32>
    %50 = vector.shape_cast %49 : vector<16xf32> to vector<16x1xf32>
    %cst_20 = arith.constant 3.200000e+01 : f32
    %51 = vector.broadcast %cst_20 : f32 to vector<16x1xf32>
    %52 = arith.divf %50, %51 : vector<16x1xf32>
    %53 = vector.broadcast %52 : vector<16x1xf32> to vector<16x32xf32>
    %54 = arith.subf %48, %53 : vector<16x32xf32>
    %55 = arith.mulf %54, %54 : vector<16x32xf32>
    %cst_21 = arith.constant dense<0.000000e+00> : vector<16xf32>
    %56 = vector.multi_reduction <add>, %55, %cst_21 [1] : vector<16x32xf32> to vector<16xf32>
    %57 = vector.shape_cast %56 : vector<16xf32> to vector<16x1xf32>
    %cst_22 = arith.constant 3.200000e+01 : f32
    %58 = vector.broadcast %cst_22 : f32 to vector<16x1xf32>
    %59 = arith.divf %57, %58 : vector<16x1xf32>
    %60 = vector.broadcast %52 : vector<16x1xf32> to vector<16x32xf32>
    %61 = arith.subf %48, %60 : vector<16x32xf32>
    %cst_23 = arith.constant 9.99999997E-7 : f32
    %62 = vector.broadcast %cst_23 : f32 to vector<16x1xf32>
    %63 = arith.addf %59, %62 : vector<16x1xf32>
    %64 = math.rsqrt %63 : vector<16x1xf32>
    %65 = vector.broadcast %64 : vector<16x1xf32> to vector<16x32xf32>
    %66 = arith.mulf %61, %65 : vector<16x32xf32>
    %c0_24 = arith.constant 0 : index
    %c0_25 = arith.constant 0 : index
    %67 = vector.load %arg8[%c0_24, %c0_25] : memref<1x32xf32, #tpu.memory_space<vmem>>, vector<1x32xf32>
    %68 = vector.broadcast %67 : vector<1x32xf32> to vector<16x32xf32>
    %69 = arith.mulf %66, %68 : vector<16x32xf32>
    %c0_26 = arith.constant 0 : index
    %c0_27 = arith.constant 0 : index
    %70 = vector.load %arg9[%c0_26, %c0_27] : memref<1x32xf32, #tpu.memory_space<vmem>>, vector<1x32xf32>
    %71 = vector.broadcast %70 : vector<1x32xf32> to vector<16x32xf32>
    %72 = arith.addf %69, %71 : vector<16x32xf32>
    %c0_28 = arith.constant 0 : index
    %c0_29 = arith.constant 0 : index
    %73 = vector.load %arg10[%c0_28, %c0_29] : memref<32x32xbf16, #tpu.memory_space<vmem>>, vector<32x32xbf16>
    %cst_30 = arith.constant dense<0.000000e+00> : vector<16x32xf32>
    %74 = tpu.matmul %8, %73, %cst_30 {dimension_numbers = #tpu.dot_dimension_numbers<[1], [0], [0], [1], [0, 0, 1, 1], [], []>} : vector<16x32xbf16>, vector<32x32xbf16>, vector<16x32xf32> -> vector<16x32xf32>
    %c0_31 = arith.constant 0 : index
    %c0_32 = arith.constant 0 : index
    %75 = vector.load %arg11[%c0_31, %c0_32] : memref<32x64xbf16, #tpu.memory_space<vmem>>, vector<32x64xbf16>
    %cst_33 = arith.constant dense<0.000000e+00> : vector<16x64xf32>
    %76 = tpu.matmul %7, %75, %cst_33 {dimension_numbers = #tpu.dot_dimension_numbers<[1], [0], [0], [1], [0, 0, 1, 1], [], []>} : vector<16x32xbf16>, vector<32x64xbf16>, vector<16x64xf32> -> vector<16x64xf32>
    %77 = vector.extract_strided_slice %76 {offsets = [0, 0], sizes = [16, 32], strides = [1, 1]} : vector<16x64xf32> to vector<16x32xf32>
    %78 = vector.extract_strided_slice %76 {offsets = [0, 32], sizes = [16, 32], strides = [1, 1]} : vector<16x64xf32> to vector<16x32xf32>
    %79 = vector.shape_cast %74 : vector<16x32xf32> to vector<16x4x8xf32>
    %80 = tpu.transpose %79, [1, 0, 2] : vector<16x4x8xf32> -> vector<4x16x8xf32>
    %81 = arith.truncf %80 : vector<4x16x8xf32> to vector<4x16x8xbf16>
    %82 = vector.shape_cast %77 : vector<16x32xf32> to vector<16x4x8xf32>
    %83 = tpu.transpose %82, [1, 0, 2] : vector<16x4x8xf32> -> vector<4x16x8xf32>
    %84 = arith.truncf %83 : vector<4x16x8xf32> to vector<4x16x8xbf16>
    %85 = vector.shape_cast %78 : vector<16x32xf32> to vector<16x4x8xf32>
    %86 = tpu.transpose %85, [1, 0, 2] : vector<16x4x8xf32> -> vector<4x16x8xf32>
    %87 = arith.truncf %86 : vector<4x16x8xf32> to vector<4x16x8xbf16>
    "tpu.trace_start"() <{level = 10 : i32, message = "hqd,hkd->hqk"}> : () -> ()
    %cst_34 = arith.constant dense<0.000000e+00> : vector<4x16x16xf32>
    %88 = tpu.matmul %81, %84, %cst_34 {dimension_numbers = #tpu.dot_dimension_numbers<[2], [2], [1], [1], [0, 0, 0, 1, 1, 1], [0], [0]>} : vector<4x16x8xbf16>, vector<4x16x8xbf16>, vector<4x16x16xf32> -> vector<4x16x16xf32>
    "tpu.trace_stop"() : () -> ()
    %c0_35 = arith.constant 0 : index
    %c0_36 = arith.constant 0 : index
    %c0_37 = arith.constant 0 : index
    %89 = vector.load %arg4[%c0_35, %c0_36, %c0_37] : memref<1x16x16xbf16, #tpu.memory_space<vmem>>, vector<1x16x16xbf16>
    %90 = vector.shape_cast %89 : vector<1x16x16xbf16> to vector<16x16xbf16>
    %91 = vector.shape_cast %90 : vector<16x16xbf16> to vector<1x16x16xbf16>
    %92 = arith.extf %91 : vector<1x16x16xbf16> to vector<1x16x16xf32>
    %93 = vector.broadcast %92 : vector<1x16x16xf32> to vector<4x16x16xf32>
    %94 = arith.addf %88, %93 : vector<4x16x16xf32>
    %cst_38 = arith.constant dense<0xFF800000> : vector<4x16xf32>
    %95 = vector.multi_reduction <maximumf>, %94, %cst_38 [2] : vector<4x16x16xf32> to vector<4x16xf32>
    %96 = vector.shape_cast %95 : vector<4x16xf32> to vector<4x16x1xf32>
    %97 = vector.broadcast %96 : vector<4x16x1xf32> to vector<4x16x16xf32>
    %98 = arith.subf %94, %97 : vector<4x16x16xf32>
    %99 = math.exp %98 : vector<4x16x16xf32>
    %cst_39 = arith.constant dense<0.000000e+00> : vector<4x16xf32>
    %100 = vector.multi_reduction <add>, %99, %cst_39 [2] : vector<4x16x16xf32> to vector<4x16xf32>
    %101 = vector.shape_cast %100 : vector<4x16xf32> to vector<4x16x1xf32>
    %102 = tpu.reciprocal %101 {approx = true} : vector<4x16x1xf32> -> vector<4x16x1xf32>
    %103 = vector.broadcast %102 : vector<4x16x1xf32> to vector<4x16x16xf32>
    %104 = arith.mulf %99, %103 : vector<4x16x16xf32>
    %105 = arith.truncf %104 : vector<4x16x16xf32> to vector<4x16x16xbf16>
    "tpu.trace_start"() <{level = 10 : i32, message = "hqk,hkd->hqd"}> : () -> ()
    %cst_40 = arith.constant dense<0.000000e+00> : vector<4x16x8xf32>
    %106 = tpu.matmul %105, %87, %cst_40 {dimension_numbers = #tpu.dot_dimension_numbers<[2], [1], [1], [2], [0, 0, 0, 1, 1, 2], [0], [0]>} : vector<4x16x16xbf16>, vector<4x16x8xbf16>, vector<4x16x8xf32> -> vector<4x16x8xf32>
    "tpu.trace_stop"() : () -> ()
    %107 = tpu.transpose %106, [1, 0, 2] : vector<4x16x8xf32> -> vector<16x4x8xf32>
    %108 = vector.shape_cast %107 : vector<16x4x8xf32> to vector<16x32xf32>
    %109 = arith.truncf %108 : vector<16x32xf32> to vector<16x32xbf16>
    %c0_41 = arith.constant 0 : index
    %c0_42 = arith.constant 0 : index
    %110 = vector.load %arg12[%c0_41, %c0_42] : memref<32x32xbf16, #tpu.memory_space<vmem>>, vector<32x32xbf16>
    %cst_43 = arith.constant dense<0.000000e+00> : vector<16x32xf32>
    %111 = tpu.matmul %109, %110, %cst_43 {dimension_numbers = #tpu.dot_dimension_numbers<[1], [0], [0], [1], [0, 0, 1, 1], [], []>} : vector<16x32xbf16>, vector<32x32xbf16>, vector<16x32xf32> -> vector<16x32xf32>
    %112 = arith.addf %111, %6 : vector<16x32xf32>
    %cst_44 = arith.constant dense<0.000000e+00> : vector<16xf32>
    %113 = vector.multi_reduction <add>, %112, %cst_44 [1] : vector<16x32xf32> to vector<16xf32>
    %114 = vector.shape_cast %113 : vector<16xf32> to vector<16x1xf32>
    %cst_45 = arith.constant 3.200000e+01 : f32
    %115 = vector.broadcast %cst_45 : f32 to vector<16x1xf32>
    %116 = arith.divf %114, %115 : vector<16x1xf32>
    %117 = vector.broadcast %116 : vector<16x1xf32> to vector<16x32xf32>
    %118 = arith.subf %112, %117 : vector<16x32xf32>
    %119 = arith.mulf %118, %118 : vector<16x32xf32>
    %cst_46 = arith.constant dense<0.000000e+00> : vector<16xf32>
    %120 = vector.multi_reduction <add>, %119, %cst_46 [1] : vector<16x32xf32> to vector<16xf32>
    %121 = vector.shape_cast %120 : vector<16xf32> to vector<16x1xf32>
    %cst_47 = arith.constant 3.200000e+01 : f32
    %122 = vector.broadcast %cst_47 : f32 to vector<16x1xf32>
    %123 = arith.divf %121, %122 : vector<16x1xf32>
    %124 = vector.broadcast %116 : vector<16x1xf32> to vector<16x32xf32>
    %125 = arith.subf %112, %124 : vector<16x32xf32>
    %cst_48 = arith.constant 9.99999997E-7 : f32
    %126 = vector.broadcast %cst_48 : f32 to vector<16x1xf32>
    %127 = arith.addf %123, %126 : vector<16x1xf32>
    %128 = math.rsqrt %127 : vector<16x1xf32>
    %129 = vector.broadcast %128 : vector<16x1xf32> to vector<16x32xf32>
    %130 = arith.mulf %125, %129 : vector<16x32xf32>
    %c0_49 = arith.constant 0 : index
    %c0_50 = arith.constant 0 : index
    %131 = vector.load %arg13[%c0_49, %c0_50] : memref<1x32xf32, #tpu.memory_space<vmem>>, vector<1x32xf32>
    %132 = vector.broadcast %131 : vector<1x32xf32> to vector<16x32xf32>
    %133 = arith.mulf %130, %132 : vector<16x32xf32>
    %c0_51 = arith.constant 0 : index
    %c0_52 = arith.constant 0 : index
    %134 = vector.load %arg14[%c0_51, %c0_52] : memref<1x32xf32, #tpu.memory_space<vmem>>, vector<1x32xf32>
    %135 = vector.broadcast %134 : vector<1x32xf32> to vector<16x32xf32>
    %136 = arith.addf %133, %135 : vector<16x32xf32>
    %137 = arith.maximumf %72, %136 : vector<16x32xf32>
    %c0_53 = arith.constant 0 : index
    %c0_54 = arith.constant 0 : index
    %c0_55 = arith.constant 0 : index
    %138 = vector.load %arg15[%c0_53, %c0_54, %c0_55] : memref<1x16x32xf32, #tpu.memory_space<vmem>>, vector<1x16x32xf32>
    %139 = vector.shape_cast %138 : vector<1x16x32xf32> to vector<16x32xf32>
    %140 = vector.shape_cast %137 : vector<16x32xf32> to vector<1x16x32xf32>
    tpu.vector_store %arg15[%c0_53, %c0_54, %c0_55], %140 {strides = array<i32>} : memref<1x16x32xf32, #tpu.memory_space<vmem>>, vector<1x16x32xf32>,
    return
  }
  func.func @transform_0(%arg0: i32, %arg1: i32) -> (i32, i32, i32) {
    %c0_i32 = arith.constant 0 : i32
    %c0_i32_0 = arith.constant 0 : i32
    %c0_i32_1 = arith.constant 0 : i32
    return %arg0, %c0_i32, %c0_i32_0 : i32, i32, i32
  }
  func.func @transform_1(%arg0: i32, %arg1: i32) -> (i32, i32, i32) {
    %c0_i32 = arith.constant 0 : i32
    %c0_i32_0 = arith.constant 0 : i32
    return %arg0, %arg1, %c0_i32 : i32, i32, i32
  }
  func.func @transform_2(%arg0: i32, %arg1: i32) -> (i32, i32, i32) {
    %c0_i32 = arith.constant 0 : i32
    %c0_i32_0 = arith.constant 0 : i32
    return %arg0, %arg1, %c0_i32 : i32, i32, i32
  }
  func.func @transform_3(%arg0: i32, %arg1: i32) -> (i32, i32) {
    %c0_i32 = arith.constant 0 : i32
    %c0_i32_0 = arith.constant 0 : i32
    %c0_i32_1 = arith.constant 0 : i32
    return %c0_i32, %c0_i32_0 : i32, i32
  }
  func.func @transform_4(%arg0: i32, %arg1: i32) -> (i32, i32) {
    %c0_i32 = arith.constant 0 : i32
    %c0_i32_0 = arith.constant 0 : i32
    %c0_i32_1 = arith.constant 0 : i32
    return %c0_i32, %c0_i32_0 : i32, i32
  }
  func.func @transform_5(%arg0: i32, %arg1: i32) -> (i32, i32) {
    %c0_i32 = arith.constant 0 : i32
    %c0_i32_0 = arith.constant 0 : i32
    %c0_i32_1 = arith.constant 0 : i32
    return %c0_i32, %c0_i32_0 : i32, i32
  }
  func.func @transform_6(%arg0: i32, %arg1: i32) -> (i32, i32) {
    %c0_i32 = arith.constant 0 : i32
    %c0_i32_0 = arith.constant 0 : i32
    %c0_i32_1 = arith.constant 0 : i32
    return %c0_i32, %c0_i32_0 : i32, i32
  }
  func.func @transform_7(%arg0: i32, %arg1: i32) -> (i32, i32) {
    %c0_i32 = arith.constant 0 : i32
    %c0_i32_0 = arith.constant 0 : i32
    %c0_i32_1 = arith.constant 0 : i32
    return %c0_i32, %c0_i32_0 : i32, i32
  }
  func.func @transform_8(%arg0: i32, %arg1: i32) -> (i32, i32) {
    %c0_i32 = arith.constant 0 : i32
    %c0_i32_0 = arith.constant 0 : i32
    %c0_i32_1 = arith.constant 0 : i32
    return %c0_i32, %c0_i32_0 : i32, i32
  }
  func.func @transform_9(%arg0: i32, %arg1: i32) -> (i32, i32) {
    %c0_i32 = arith.constant 0 : i32
    %c0_i32_0 = arith.constant 0 : i32
    %c0_i32_1 = arith.constant 0 : i32
    return %c0_i32, %c0_i32_0 : i32, i32
  }
  func.func @transform_10(%arg0: i32, %arg1: i32) -> (i32, i32) {
    %c0_i32 = arith.constant 0 : i32
    %c0_i32_0 = arith.constant 0 : i32
    %c0_i32_1 = arith.constant 0 : i32
    return %c0_i32, %c0_i32_0 : i32, i32
  }
  func.func @transform_11(%arg0: i32, %arg1: i32) -> (i32, i32) {
    %c0_i32 = arith.constant 0 : i32
    %c0_i32_0 = arith.constant 0 : i32
    %c0_i32_1 = arith.constant 0 : i32
    return %c0_i32, %c0_i32_0 : i32, i32
  }
  func.func @transform_12(%arg0: i32, %arg1: i32) -> (i32, i32) {
    %c0_i32 = arith.constant 0 : i32
    %c0_i32_0 = arith.constant 0 : i32
    %c0_i32_1 = arith.constant 0 : i32
    return %c0_i32, %c0_i32_0 : i32, i32
  }
  func.func @transform_13(%arg0: i32, %arg1: i32) -> (i32, i32, i32) {
    %c0_i32 = arith.constant 0 : i32
    %c0_i32_0 = arith.constant 0 : i32
    return %arg0, %arg1, %c0_i32 : i32, i32, i32
  }
}

module attributes {stable_mosaic.version = 11 : i64} {
  func.func @pair_ffnn_kernel(%arg0: i32, %arg1: memref<1x4x32xf32, #tpu.memory_space<vmem>>, %arg2: memref<96x32xbf16, #tpu.memory_space<vmem>>, %arg3: memref<1x32xf32, #tpu.memory_space<vmem>>, %arg4: memref<32x128xbf16, #tpu.memory_space<vmem>>, %arg5: memref<1x128xf32, #tpu.memory_space<vmem>>, %arg6: memref<1x16x128xf32, #tpu.memory_space<vmem>>) attributes {dimension_semantics = [#tpu.dimension_semantics<parallel>], iteration_bounds = array<i64: 2>, scalar_prefetch = 0 : i64, scratch_operands = 0 : i64, tpu.core_type = #tpu.core_type<tc>, window_params = [{transform_indices = @transform_0, window_bounds = array<i64: 1, 4, 32>}, {pipeline_mode = #tpu.pipeline_mode<synchronous>, transform_indices = @transform_1, window_bounds = array<i64: 96, 32>}, {pipeline_mode = #tpu.pipeline_mode<synchronous>, transform_indices = @transform_2, window_bounds = array<i64: 1, 32>}, {pipeline_mode = #tpu.pipeline_mode<synchronous>, transform_indices = @transform_3, window_bounds = array<i64: 32, 128>}, {pipeline_mode = #tpu.pipeline_mode<synchronous>, transform_indices = @transform_4, window_bounds = array<i64: 1, 128>}, {transform_indices = @transform_5, window_bounds = array<i64: 1, 16, 128>}]} {
    %c0 = arith.constant 0 : index
    %c0_0 = arith.constant 0 : index
    %c0_1 = arith.constant 0 : index
    %0 = vector.load %arg1[%c0, %c0_0, %c0_1] : memref<1x4x32xf32, #tpu.memory_space<vmem>>, vector<1x4x32xf32>
    %1 = vector.shape_cast %0 : vector<1x4x32xf32> to vector<4x32xf32>
    %2 = arith.truncf %1 : vector<4x32xf32> to vector<4x32xbf16>
    %c0_2 = arith.constant 0 : index
    %c0_3 = arith.constant 0 : index
    %3 = vector.load %arg2[%c0_2, %c0_3] : memref<96x32xbf16, #tpu.memory_space<vmem>>, vector<96x32xbf16>
    %4 = vector.extract_strided_slice %3 {offsets = [0, 0], sizes = [32, 32], strides = [1, 1]} : vector<96x32xbf16> to vector<32x32xbf16>
    %cst = arith.constant dense<0.000000e+00> : vector<4x32xf32>
    %5 = tpu.matmul %2, %4, %cst {dimension_numbers = #tpu.dot_dimension_numbers<[1], [0], [0], [1], [0, 0, 1, 1], [], []>} : vector<4x32xbf16>, vector<32x32xbf16>, vector<4x32xf32> -> vector<4x32xf32>
    %6 = vector.extract_strided_slice %3 {offsets = [32, 0], sizes = [32, 32], strides = [1, 1]} : vector<96x32xbf16> to vector<32x32xbf16>
    %cst_4 = arith.constant dense<0.000000e+00> : vector<4x32xf32>
    %7 = tpu.matmul %2, %6, %cst_4 {dimension_numbers = #tpu.dot_dimension_numbers<[1], [0], [0], [1], [0, 0, 1, 1], [], []>} : vector<4x32xbf16>, vector<32x32xbf16>, vector<4x32xf32> -> vector<4x32xf32>
    %8 = vector.shape_cast %1 : vector<4x32xf32> to vector<4x1x32xf32>
    %9 = vector.shape_cast %8 : vector<4x1x32xf32> to vector<4x1x32xf32>
    %10 = vector.broadcast %9 : vector<4x1x32xf32> to vector<4x4x32xf32>
    %11 = vector.shape_cast %10 : vector<4x4x32xf32> to vector<16x32xf32>
    %12 = vector.shape_cast %1 : vector<4x32xf32> to vector<1x4x32xf32>
    %13 = vector.shape_cast %12 : vector<1x4x32xf32> to vector<1x4x32xf32>
    %14 = vector.broadcast %13 : vector<1x4x32xf32> to vector<4x4x32xf32>
    %15 = vector.shape_cast %14 : vector<4x4x32xf32> to vector<16x32xf32>
    %16 = arith.mulf %11, %15 : vector<16x32xf32>
    %17 = arith.truncf %16 : vector<16x32xf32> to vector<16x32xbf16>
    %18 = vector.extract_strided_slice %3 {offsets = [64, 0], sizes = [32, 32], strides = [1, 1]} : vector<96x32xbf16> to vector<32x32xbf16>
    %cst_5 = arith.constant dense<0.000000e+00> : vector<16x32xf32>
    %19 = tpu.matmul %17, %18, %cst_5 {dimension_numbers = #tpu.dot_dimension_numbers<[1], [0], [0], [1], [0, 0, 1, 1], [], []>} : vector<16x32xbf16>, vector<32x32xbf16>, vector<16x32xf32> -> vector<16x32xf32>
    %20 = vector.shape_cast %5 : vector<4x32xf32> to vector<4x1x32xf32>
    %21 = vector.shape_cast %20 : vector<4x1x32xf32> to vector<4x1x32xf32>
    %22 = vector.broadcast %21 : vector<4x1x32xf32> to vector<4x4x32xf32>
    %23 = vector.shape_cast %22 : vector<4x4x32xf32> to vector<16x32xf32>
    %24 = vector.shape_cast %7 : vector<4x32xf32> to vector<1x4x32xf32>
    %25 = vector.shape_cast %24 : vector<1x4x32xf32> to vector<1x4x32xf32>
    %26 = vector.broadcast %25 : vector<1x4x32xf32> to vector<4x4x32xf32>
    %27 = vector.shape_cast %26 : vector<4x4x32xf32> to vector<16x32xf32>
    %28 = arith.addf %23, %27 : vector<16x32xf32>
    %29 = arith.addf %28, %19 : vector<16x32xf32>
    %c0_6 = arith.constant 0 : index
    %c0_7 = arith.constant 0 : index
    %30 = vector.load %arg3[%c0_6, %c0_7] : memref<1x32xf32, #tpu.memory_space<vmem>>, vector<1x32xf32>
    %31 = vector.broadcast %30 : vector<1x32xf32> to vector<16x32xf32>
    %32 = arith.addf %29, %31 : vector<16x32xf32>
    %cst_8 = arith.constant 0.000000e+00 : f32
    %33 = vector.broadcast %cst_8 : f32 to vector<16x32xf32>
    %34 = arith.maximumf %32, %33 : vector<16x32xf32>
    %35 = arith.truncf %34 : vector<16x32xf32> to vector<16x32xbf16>
    %c0_9 = arith.constant 0 : index
    %c0_10 = arith.constant 0 : index
    %36 = vector.load %arg4[%c0_9, %c0_10] : memref<32x128xbf16, #tpu.memory_space<vmem>>, vector<32x128xbf16>
    %cst_11 = arith.constant dense<0.000000e+00> : vector<16x128xf32>
    %37 = tpu.matmul %35, %36, %cst_11 {dimension_numbers = #tpu.dot_dimension_numbers<[1], [0], [0], [1], [0, 0, 1, 1], [], []>} : vector<16x32xbf16>, vector<32x128xbf16>, vector<16x128xf32> -> vector<16x128xf32>
    %c0_12 = arith.constant 0 : index
    %c0_13 = arith.constant 0 : index
    %38 = vector.load %arg5[%c0_12, %c0_13] : memref<1x128xf32, #tpu.memory_space<vmem>>, vector<1x128xf32>
    %39 = vector.broadcast %38 : vector<1x128xf32> to vector<16x128xf32>
    %40 = arith.addf %37, %39 : vector<16x128xf32>
    %c0_14 = arith.constant 0 : index
    %c0_15 = arith.constant 0 : index
    %c0_16 = arith.constant 0 : index
    %41 = vector.load %arg6[%c0_14, %c0_15, %c0_16] : memref<1x16x128xf32, #tpu.memory_space<vmem>>, vector<1x16x128xf32>
    %42 = vector.shape_cast %41 : vector<1x16x128xf32> to vector<16x128xf32>
    %43 = vector.shape_cast %40 : vector<16x128xf32> to vector<1x16x128xf32>
    tpu.vector_store %arg6[%c0_14, %c0_15, %c0_16], %43 {strides = array<i32>} : memref<1x16x128xf32, #tpu.memory_space<vmem>>, vector<1x16x128xf32>,
    return
  }
  func.func @transform_0(%arg0: i32) -> (i32, i32, i32) {
    %c0_i32 = arith.constant 0 : i32
    %c0_i32_0 = arith.constant 0 : i32
    %c0_i32_1 = arith.constant 0 : i32
    return %arg0, %c0_i32, %c0_i32_0 : i32, i32, i32
  }
  func.func @transform_1(%arg0: i32) -> (i32, i32) {
    %c0_i32 = arith.constant 0 : i32
    %c0_i32_0 = arith.constant 0 : i32
    %c0_i32_1 = arith.constant 0 : i32
    return %c0_i32, %c0_i32_0 : i32, i32
  }
  func.func @transform_2(%arg0: i32) -> (i32, i32) {
    %c0_i32 = arith.constant 0 : i32
    %c0_i32_0 = arith.constant 0 : i32
    %c0_i32_1 = arith.constant 0 : i32
    return %c0_i32, %c0_i32_0 : i32, i32
  }
  func.func @transform_3(%arg0: i32) -> (i32, i32) {
    %c0_i32 = arith.constant 0 : i32
    %c0_i32_0 = arith.constant 0 : i32
    %c0_i32_1 = arith.constant 0 : i32
    return %c0_i32, %c0_i32_0 : i32, i32
  }
  func.func @transform_4(%arg0: i32) -> (i32, i32) {
    %c0_i32 = arith.constant 0 : i32
    %c0_i32_0 = arith.constant 0 : i32
    %c0_i32_1 = arith.constant 0 : i32
    return %c0_i32, %c0_i32_0 : i32, i32
  }
  func.func @transform_5(%arg0: i32) -> (i32, i32, i32) {
    %c0_i32 = arith.constant 0 : i32
    %c0_i32_0 = arith.constant 0 : i32
    %c0_i32_1 = arith.constant 0 : i32
    return %arg0, %c0_i32, %c0_i32_0 : i32, i32, i32
  }
}

</mosaic_0001>

<llo_original>
// kernel: model_forward.4
$region0: #{model_forward.4}
  #allocation0 [shape = 'u32[]', space=smem, size = 0x4, offset = 0x4, fixed_abs, tag = 'smem constant byte address 0x4 - core index']
  #allocation1 [shape = 'u32[144,128]{1,0:T(1,128)}', space=vmem, size = 0x12000, scoped, tag = 'internal scratch']
  %s0 = inlined_call_operand.vmem [shape: f32[16,64], index: 0, kind: input, shape index: {}]
  %s1 = inlined_call_operand.vmem [shape: bf16[64,32], index: 1, kind: input, shape index: {}]
  %s2 = inlined_call_operand.vmem [shape: f32[1,32], index: 2, kind: input, shape index: {}]
  %s3 = inlined_call_operand.vmem [shape: f32[16,32], index: 3, kind: output, shape index: {}]
  %s4 = sld [smem:[#allocation0]]
  $region22: #{model_forward.4} parent=0
    _
  %s6 = ssub.s32 1, %s4
  %s7 = scalar_select 0, %s6, %s4
  // Predicated region
  $region2: #{model_forward.4} parent=0 // pred_check
    _
  $region3: #{model_forward.4} parent=0 // pred_check_branch
    %9 = sbr.rel (0) target = $region5
  $region4: #{model_forward.4} parent=0 // pred_region
    _
  $region5: #{model_forward.4} parent=0 // pred_fallthru
    _
  // Predicated region
  $region6: #{model_forward.4} parent=0 // pred_check
    _
  $region7: #{model_forward.4} parent=0 // pred_check_branch
    %11 = sbr.rel (0) target = $region9
  $region8: #{model_forward.4} parent=0 // pred_region
    _
  $region9: #{model_forward.4} parent=0 // pred_fallthru
    _
  // Predicated region
  $region10: #{model_forward.4} parent=0 // pred_check
    _
  $region11: #{model_forward.4} parent=0 // pred_check_branch
    %13 = sbr.rel (0) target = $region13
  $region12: #{model_forward.4} parent=0 // pred_region
    _
  $region13: #{model_forward.4} parent=0 // pred_fallthru
    _
  %v15 = vld [vmem:[%s0] sm:$0xff]
  %v16 = vld [vmem:[%s0 + $0x8] sm:$0xff]
  %v17 = vpack.c.bf16 %v16, %v15
  %v18 = vld [vmem:[%s1] sm:$0xf]
  %v19 = vld [vmem:[%s1 + $0x4] sm:$0xf]
  %v20 = vld [vmem:[%s1 + $0x8] sm:$0xf]
  %v21 = vld [vmem:[%s1 + $0xc] sm:$0xf]
  %v22 = vld [vmem:[%s1 + $0x10] sm:$0xf]
  %v23 = vld [vmem:[%s1 + $0x14] sm:$0xf]
  %v24 = vld [vmem:[%s1 + $0x18] sm:$0xf]
  %v25 = vld [vmem:[%s1 + $0x1c] sm:$0xf]
  %v26 = vld [vmem:[%s2] sm:$0x1]
  %v28 = vlaneseq
  %v29 = vshrl.u32 %v28, 7
  %v30 = vsub.s32 0, %v29
  %v31 = vrot.slane %v26, %v30
  %v41 = vunpack.c.l.b16 %v18
  %v42 = vunpack.c.l.b16 %v19
  %v43 = vunpack.c.l.b16 %v20
  %v44 = vunpack.c.l.b16 %v21
  %v45 = vunpack.c.l.b16 %v22
  %v46 = vunpack.c.l.b16 %v23
  %v47 = vunpack.c.l.b16 %v24
  %v48 = vunpack.c.l.b16 %v25
  %v49 = vpack.c.b16 %v42, %v41
  %v50 = vpack.c.b16 %v44, %v43
  %v51 = vpack.c.b16 %v46, %v45
  %v52 = vpack.c.b16 %v48, %v47
  %vm57 = vcmask 523264
  %v59 = vsel %vm57, %v17, 0
  %61 = vmatprep.subr.bf16.mxu0 0
  %62 = vmatpush1.bf16.msra.mxu0 0
  %63 = vmatprep.subr.bf16.mxu0 0
  %64 = vmatpush1.bf16.msra.mxu0 0
  %65 = vmatprep.subr.bf16.mxu0 0
  %66 = vmatpush1.bf16.msra.mxu0 0
  %67 = vmatprep.subr.bf16.mxu0 0
  %68 = vmatpush1.bf16.msra.mxu0 0
  %69 = vmatprep.subr.bf16.mxu0 0
  %70 = vmatpush1.bf16.msra.mxu0 %v52
  %71 = vmatprep.subr.bf16.mxu0 0
  %72 = vmatpush1.bf16.msra.mxu0 %v51
  %73 = vmatprep.subr.bf16.mxu0 0
  %74 = vmatpush1.bf16.msra.mxu0 %v50
  %75 = vmatprep.subr.bf16.mxu0 0
  %76 = vmatpush1.bf16.msra.mxu0 %v49
  %77 = vmatprep.subr.bf16.mxu0 0
  %78 = vmatpush2.bf16.msra.mxu0 0
  %79 = vmatprep.subr.bf16.mxu0 0
  %80 = vmatpush2.bf16.msra.mxu0 0
  %81 = vmatprep.subr.bf16.mxu0 0
  %82 = vmatpush2.bf16.msra.mxu0 0
  %83 = vmatprep.subr.bf16.mxu0 0
  %84 = vmatpush2.bf16.msra.mxu0 0
  %85 = vmatprep.subr.bf16.mxu0 0
  %86 = vmatpush2.bf16.msra.mxu0 0
  %87 = vmatprep.subr.bf16.mxu0 0
  %88 = vmatpush2.bf16.msra.mxu0 0
  %89 = vmatprep.subr.bf16.mxu0 0
  %90 = vmatpush2.bf16.msra.mxu0 0
  %91 = vmatprep.subr.bf16.mxu0 0
  %92 = vmatpush2.bf16.msra.mxu0 0
  %93 = vmatprep.mubr.bf16.mxu0 0
  %94 = vmatmul.mubr.bf16.gmra.mxu0 %v59
  %v95 = vpop.f32.mrf.mxu0
  %v96 = vadd.f32 %v31, %v95
  %v97 = vpop.f32.mrf.mxu0
  %v98 = vpop.f32.mrf.mxu0
  %v99 = vadd.f32 %v31, %v98
  %v100 = vpop.f32.mrf.mxu0
  %101 = vdwg.mxu0
  %vm102 = vcmask 261120
  %103 = vst.msk [vmem:[%s3] sm:$0xff] %vm102, %v96
  %104 = vst.msk [vmem:[%s3 + $0x8] sm:$0xff] %vm102, %v99
  // Predicated region
  $region14: #{model_forward.4} parent=0 // pred_check
    _
  $region15: #{model_forward.4} parent=0 // pred_check_branch
    %106 = sbr.rel (0) target = $region17
  $region16: #{model_forward.4} parent=0 // pred_region
    _
  $region17: #{model_forward.4} parent=0 // pred_fallthru
    _
  // Predicated region
  $region18: #{model_forward.4} parent=0 // pred_check
    _
  $region19: #{model_forward.4} parent=0 // pred_check_branch
    %108 = sbr.rel (0) target = $region21
  $region20: #{model_forward.4} parent=0 // pred_region
    _
  $region21: #{model_forward.4} parent=0 // pred_fallthru
    _

// kernel: model_forward.5
$region0: #{model_forward.5}
  #allocation0 [shape = 'u32[]', space=smem, size = 0x4, offset = 0x4, fixed_abs, tag = 'smem constant byte address 0x4 - core index']
  #allocation1 [shape = 'u32[144,128]{1,0:T(1,128)}', space=vmem, size = 0x12000, scoped, tag = 'internal scratch']
  %s0 = inlined_call_operand.vmem [shape: f32[2,4,32], index: 0, kind: input, shape index: {}]
  %s1 = inlined_call_operand.vmem [shape: bf16[96,32], index: 1, kind: input, shape index: {}]
  %s2 = inlined_call_operand.vmem [shape: f32[1,32], index: 2, kind: input, shape index: {}]
  %s3 = inlined_call_operand.vmem [shape: bf16[32,128], index: 3, kind: input, shape index: {}]
  %s4 = inlined_call_operand.vmem [shape: f32[1,128], index: 4, kind: input, shape index: {}]
  %s5 = inlined_call_operand.hbm [shape: f32[2,16,128], index: 5, kind: output, shape index: {}]
  %s6 = sld [smem:[#allocation0]]
  $region53: #{model_forward.5} parent=0
    _
  %s8 = ssub.s32 1, %s6
  %s9 = scalar_select 0, %s8, %s6
  $region1: #{model_forward.5} parent=0
    #allocation2 [shape = 'u8[16384]{0}', space=vmem, size = 0x4000, scoped, tag = 'output window, operand 0']
    #allocation3 [shape = 's32[2]{0}', space=sflag, size = 0x8, scoped, tag = 'scoped memory for model_forward.5']
    %10 = vsyncpa [#allocation3], 0
    %s11 = scalar_lea.sflag [#allocation3], 1
    %12 = vsyncpa %s11, 0
    loop: start=0, step=1, limit=4
    $region2: #{model_forward.5} parent=1 // loop_pre_header
      _
    $region3: #{model_forward.5} parent=1 // loop_header
      %s14 = sphi 0, %s18
      %p15 = scmp.ge.s32.totalorder %s14, 4
      %s24 = sphi 0, %s26
      %s27 = sphi 0, %s24
      %s28 = sphi 0, %s27
      %s44 = sphi 0, %s28
      %s48 = sphi 0, %s48
      %s50 = sphi 0, %s48
      %s51 = sphi 0, %s50
      %s65 = sphi 0, %s51
      %s69 = sphi 0, %s69
      %s71 = sphi 0, %s69
      %s72 = sphi 0, %s71
      %s86 = sphi 0, %s72
      %s90 = sphi 0, %s90
      %s92 = sphi 0, %s90
      %s93 = sphi 0, %s92
      %s107 = sphi 0, %s93
      %s111 = sphi 0, %s111
      %s113 = sphi 0, %s111
      %s114 = sphi 0, %s113
      %s128 = sphi 0, %s114
      %s134 = sphi 0, %s136
      %s137 = sphi 0, %s134
      %s138 = sphi 0, %s137
      %s154 = sphi 0, %s138
    $region4: #{model_forward.5} parent=1 // loop_header_branch
      %17 = sbr.rel (%p15) target = $region8
    $region5: #{model_forward.5} parent=1 // loop_body
      %s19 = ssub.s32 %s14, 1
      %s20 = ssub.s32 %s14, 2
      %s21 = sadd.s32 %s14, 1
      %s22 = ssub.s32 %s14, %s21
      %p23 = scmp.eq.s32.totalorder %s22, 0
      %s25 = sadd.s32 %s24, 1
      %s26 = scalar_select %p23, %s24, %s25
      %p29 = pneg %p23
      %p30 = scmp.eq.s32.totalorder %s14, 1
      %p31 = por %p29, %p30
      %p32 = scmp.ne.s32.totalorder %s24, %s27
      %p33 = scmp.eq.s32.totalorder %s14, 0
      %p34 = por %p32, %p33
      %p35 = scmp.ne.s32.totalorder %s24, %s27
      %p36 = scmp.eq.s32.totalorder %s19, 1
      %p37 = por %p35, %p36
      %p38 = scmp.ne.s32.totalorder %s27, %s28
      %p39 = scmp.eq.s32.totalorder %s19, 0
      %p40 = por %p38, %p39
      %p41 = scmp.ne.s32.totalorder %s27, %s28
      %p42 = scmp.eq.s32.totalorder %s20, 1
      %p43 = por %p41, %p42
      %p45 = scmp.ne.s32.totalorder %s28, %s44
      %p46 = scmp.eq.s32.totalorder %s20, 0
      %p47 = por %p45, %p46
      %s49 = sadd.s32 %s48, 1
      %p52 = scmp.eq.s32.totalorder %s14, 1
      %p53 = scmp.ne.s32.totalorder %s48, %s50
      %p54 = scmp.eq.s32.totalorder %s14, 0
      %p55 = por %p53, %p54
      %p56 = scmp.ne.s32.totalorder %s48, %s50
      %p57 = scmp.eq.s32.totalorder %s19, 1
      %p58 = por %p56, %p57
      %p59 = scmp.ne.s32.totalorder %s50, %s51
      %p60 = scmp.eq.s32.totalorder %s19, 0
      %p61 = por %p59, %p60
      %p62 = scmp.ne.s32.totalorder %s50, %s51
      %p63 = scmp.eq.s32.totalorder %s20, 1
      %p64 = por %p62, %p63
      %p66 = scmp.ne.s32.totalorder %s51, %s65
      %p67 = scmp.eq.s32.totalorder %s20, 0
      %p68 = por %p66, %p67
      %s70 = sadd.s32 %s69, 1
      %p73 = scmp.eq.s32.totalorder %s14, 1
      %p74 = scmp.ne.s32.totalorder %s69, %s71
      %p75 = scmp.eq.s32.totalorder %s14, 0
      %p76 = por %p74, %p75
      %p77 = scmp.ne.s32.totalorder %s69, %s71
      %p78 = scmp.eq.s32.totalorder %s19, 1
      %p79 = por %p77, %p78
      %p80 = scmp.ne.s32.totalorder %s71, %s72
      %p81 = scmp.eq.s32.totalorder %s19, 0
      %p82 = por %p80, %p81
      %p83 = scmp.ne.s32.totalorder %s71, %s72
      %p84 = scmp.eq.s32.totalorder %s20, 1
      %p85 = por %p83, %p84
      %p87 = scmp.ne.s32.totalorder %s72, %s86
      %p88 = scmp.eq.s32.totalorder %s20, 0
      %p89 = por %p87, %p88
      %s91 = sadd.s32 %s90, 1
      %p94 = scmp.eq.s32.totalorder %s14, 1
      %p95 = scmp.ne.s32.totalorder %s90, %s92
      %p96 = scmp.eq.s32.totalorder %s14, 0
      %p97 = por %p95, %p96
      %p98 = scmp.ne.s32.totalorder %s90, %s92
      %p99 = scmp.eq.s32.totalorder %s19, 1
      %p100 = por %p98, %p99
      %p101 = scmp.ne.s32.totalorder %s92, %s93
      %p102 = scmp.eq.s32.totalorder %s19, 0
      %p103 = por %p101, %p102
      %p104 = scmp.ne.s32.totalorder %s92, %s93
      %p105 = scmp.eq.s32.totalorder %s20, 1
      %p106 = por %p104, %p105
      %p108 = scmp.ne.s32.totalorder %s93, %s107
      %p109 = scmp.eq.s32.totalorder %s20, 0
      %p110 = por %p108, %p109
      %s112 = sadd.s32 %s111, 1
      %p115 = scmp.eq.s32.totalorder %s14, 1
      %p116 = scmp.ne.s32.totalorder %s111, %s113
      %p117 = scmp.eq.s32.totalorder %s14, 0
      %p118 = por %p116, %p117
      %p119 = scmp.ne.s32.totalorder %s111, %s113
      %p120 = scmp.eq.s32.totalorder %s19, 1
      %p121 = por %p119, %p120
      %p122 = scmp.ne.s32.totalorder %s113, %s114
      %p123 = scmp.eq.s32.totalorder %s19, 0
      %p124 = por %p122, %p123
      %p125 = scmp.ne.s32.totalorder %s113, %s114
      %p126 = scmp.eq.s32.totalorder %s20, 1
      %p127 = por %p125, %p126
      %p129 = scmp.ne.s32.totalorder %s114, %s128
      %p130 = scmp.eq.s32.totalorder %s20, 0
      %p131 = por %p129, %p130
      %s132 = ssub.s32 %s14, %s21
      %p133 = scmp.eq.s32.totalorder %s132, 0
      %s135 = sadd.s32 %s134, 1
      %s136 = scalar_select %p133, %s134, %s135
      %p139 = pneg %p133
      %p140 = scmp.eq.s32.totalorder %s14, 1
      %p141 = por %p139, %p140
      %p142 = scmp.ne.s32.totalorder %s134, %s137
      %p143 = scmp.eq.s32.totalorder %s14, 0
      %p144 = por %p142, %p143
      %p145 = scmp.ne.s32.totalorder %s134, %s137
      %p146 = scmp.eq.s32.totalorder %s19, 1
      %p147 = por %p145, %p146
      %p148 = scmp.ne.s32.totalorder %s137, %s138
      %p149 = scmp.eq.s32.totalorder %s19, 0
      %p150 = por %p148, %p149
      %p151 = scmp.ne.s32.totalorder %s137, %s138
      %p152 = scmp.eq.s32.totalorder %s20, 1
      %p153 = por %p151, %p152
      %p155 = scmp.ne.s32.totalorder %s138, %s154
      %p156 = scmp.eq.s32.totalorder %s20, 0
      %p157 = por %p155, %p156
      %p158 = scmp.le.s32.totalorder 1, %s14
      %p159 = scmp.lt.s32.totalorder %s14, 3
      %p160 = pnand %p158, %p159
      %p161 = pneg %p160
      // Predicated region
      $region9: #{model_forward.5} parent=5 // pred_check
        _
      $region10: #{model_forward.5} parent=5 // pred_check_branch
        %163 = sbr.rel (%p160) target = $region12
      $region11: #{model_forward.5} parent=5 // pred_region
        %s164 = ssub.s32 %s14, 1
        // Predicated region
        $region13: #{model_forward.5} parent=11 // pred_check
          %p165 = pneg %p61
        $region14: #{model_forward.5} parent=11 // pred_check_branch
          %167 = sbr.rel (%p165) target = $region16
        $region15: #{model_forward.5} parent=11 // pred_region
          _
        $region16: #{model_forward.5} parent=11 // pred_fallthru
          _
        // Predicated region
        $region17: #{model_forward.5} parent=11 // pred_check
          %p168 = pneg %p82
        $region18: #{model_forward.5} parent=11 // pred_check_branch
          %170 = sbr.rel (%p168) target = $region20
        $region19: #{model_forward.5} parent=11 // pred_region
          _
        $region20: #{model_forward.5} parent=11 // pred_fallthru
          _
        // Predicated region
        $region21: #{model_forward.5} parent=11 // pred_check
          %p171 = pneg %p103
        $region22: #{model_forward.5} parent=11 // pred_check_branch
          %173 = sbr.rel (%p171) target = $region24
        $region23: #{model_forward.5} parent=11 // pred_region
          _
        $region24: #{model_forward.5} parent=11 // pred_fallthru
          _
        // Predicated region
        $region25: #{model_forward.5} parent=11 // pred_check
          %p174 = pneg %p124
        $region26: #{model_forward.5} parent=11 // pred_check_branch
          %176 = sbr.rel (%p174) target = $region28
        $region27: #{model_forward.5} parent=11 // pred_region
          _
        $region28: #{model_forward.5} parent=11 // pred_fallthru
          _
      $region12: #{model_forward.5} parent=5 // pred_fallthru
        _
      %p177 = scmp.lt.s32.totalorder %s14, 2
      // Predicated region
      $region29: #{model_forward.5} parent=5 // pred_check
        %p178 = pneg %p177
      $region30: #{model_forward.5} parent=5 // pred_check_branch
        %180 = sbr.rel (%p178) target = $region32
      $region31: #{model_forward.5} parent=5 // pred_region
        // Predicated region
        $region33: #{model_forward.5} parent=31 // pred_check
          %p181 = pneg %p34
        $region34: #{model_forward.5} parent=31 // pred_check_branch
          %183 = sbr.rel (%p181) target = $region36
        $region35: #{model_forward.5} parent=31 // pred_region
          %p184 = scmp.lt.s32.totalorder %s14, 1
          %s185 = scalar_select %p184, %s14, 1
          %s186 = smul.addr %s185, 4
          %s187 = scalar_lea.vmem %s0, %s186
        $region36: #{model_forward.5} parent=31 // pred_fallthru
          _
      $region32: #{model_forward.5} parent=5 // pred_fallthru
        _
      %p188 = scmp.le.s32.totalorder 1, %s14
      %p189 = scmp.lt.s32.totalorder %s14, 3
      %p190 = pnand %p188, %p189
      %p191 = pneg %p190
      // Predicated region
      $region37: #{model_forward.5} parent=5 // pred_check
        _
      $region38: #{model_forward.5} parent=5 // pred_check_branch
        %193 = sbr.rel (%p190) target = $region40
      $region39: #{model_forward.5} parent=5 // pred_region
        %s194 = ssub.s32 %s14, 1
        %p195 = scmp.lt.s32.totalorder %s19, 1
        %s196 = scalar_select %p195, %s19, 1
        %s197 = smul.addr %s196, 4
        %s198 = scalar_lea.vmem %s0, %s197
        %p199 = pneg %p40
        %p200 = pneg %p37
        %p201 = pneg %p61
        %p202 = pneg %p58
        %p203 = pneg %p82
        %p204 = pneg %p79
        %p205 = pneg %p103
        %p206 = pneg %p100
        %p207 = pneg %p124
        %p208 = pneg %p121
        %p209 = pneg %p150
        %p210 = pneg %p147
        %s211 = sand.u32 %s137, 1
        %s212 = scalar_lea.sflag [#allocation3], %s211
        %s213 = sand.u32 %s137, 1
        %s214 = smul.addr %s213, 16
        %s215 = scalar_lea.vmem [#allocation2], %s214
        %p216 = scmp.lt.s32.totalorder %s19, 1
        %s217 = scalar_select %p216, %s19, 1
        %s218 = smul.addr %s217, 4
        %s219 = scalar_lea.vmem %s0, %s218
        %v221 = vld [vmem:[%s219] sm:$0xf]
        %v222 = vpack.c.bf16 %v221, %v221
        %v223 = vld [vmem:[%s1] sm:$0xf]
        %v224 = vld [vmem:[%s1 + $0x4] sm:$0xf]
        %v225 = vld [vmem:[%s1 + $0x8] sm:$0xf]
        %v226 = vld [vmem:[%s1 + $0xc] sm:$0xf]
        %v227 = vld [vmem:[%s1 + $0x10] sm:$0xf]
        %v228 = vld [vmem:[%s1 + $0x14] sm:$0xf]
        %v229 = vld [vmem:[%s1 + $0x18] sm:$0xf]
        %v230 = vld [vmem:[%s1 + $0x1c] sm:$0xf]
        %v231 = vld [vmem:[%s1 + $0x20] sm:$0xf]
        %v232 = vld [vmem:[%s1 + $0x24] sm:$0xf]
        %v233 = vld [vmem:[%s1 + $0x28] sm:$0xf]
        %v234 = vld [vmem:[%s1 + $0x2c] sm:$0xf]
        %v239 = vunpack.c.l.b16 %v223
        %v240 = vunpack.c.l.b16 %v224
        %v241 = vunpack.c.l.b16 %v225
        %v242 = vunpack.c.l.b16 %v226
        %v243 = vpack.c.b16 %v240, %v239
        %v244 = vpack.c.b16 %v242, %v241
        %vm247 = vcmask 261120
        %v249 = vsel %vm247, %v222, 0
        %251 = vmatprep.subr.bf16.mxu0 0
        %252 = vmatpush1.bf16.msra.mxu0 0
        %253 = vmatprep.subr.bf16.mxu0 0
        %254 = vmatpush1.bf16.msra.mxu0 0
        %255 = vmatprep.subr.bf16.mxu0 0
        %256 = vmatpush1.bf16.msra.mxu0 0
        %257 = vmatprep.subr.bf16.mxu0 0
        %258 = vmatpush1.bf16.msra.mxu0 0
        %259 = vmatprep.subr.bf16.mxu0 0
        %260 = vmatpush1.bf16.msra.mxu0 0
        %261 = vmatprep.subr.bf16.mxu0 0
        %262 = vmatpush1.bf16.msra.mxu0 0
        %263 = vmatprep.subr.bf16.mxu0 0
        %264 = vmatpush1.bf16.msra.mxu0 %v244
        %265 = vmatprep.subr.bf16.mxu0 0
        %266 = vmatpush1.bf16.msra.mxu0 %v243
        %267 = vmatprep.subr.bf16.mxu0 0
        %268 = vmatpush2.bf16.msra.mxu0 0
        %269 = vmatprep.subr.bf16.mxu0 0
        %270 = vmatpush2.bf16.msra.mxu0 0
        %271 = vmatprep.subr.bf16.mxu0 0
        %272 = vmatpush2.bf16.msra.mxu0 0
        %273 = vmatprep.subr.bf16.mxu0 0
        %274 = vmatpush2.bf16.msra.mxu0 0
        %275 = vmatprep.subr.bf16.mxu0 0
        %276 = vmatpush2.bf16.msra.mxu0 0
        %277 = vmatprep.subr.bf16.mxu0 0
        %278 = vmatpush2.bf16.msra.mxu0 0
        %279 = vmatprep.subr.bf16.mxu0 0
        %280 = vmatpush2.bf16.msra.mxu0 0
        %281 = vmatprep.subr.bf16.mxu0 0
        %282 = vmatpush2.bf16.msra.mxu0 0
        %283 = vmatprep.mubr.bf16.mxu0 0
        %284 = vmatmul.mubr.bf16.gmra.mxu0 %v249
        %v285 = vpop.f32.mrf.mxu0
        %v286 = vadd.f32 0.0, %v285
        %v287 = vpop.f32.mrf.mxu0
        %v288 = vpop.f32.mrf.mxu0
        %v289 = vpop.f32.mrf.mxu0
        %290 = vdwg.mxu0
        %v295 = vunpack.c.l.b16 %v227
        %v296 = vunpack.c.l.b16 %v228
        %v297 = vunpack.c.l.b16 %v229
        %v298 = vunpack.c.l.b16 %v230
        %v299 = vpack.c.b16 %v296, %v295
        %v300 = vpack.c.b16 %v298, %v297
        %303 = vmatprep.subr.bf16.mxu0 0
        %304 = vmatpush1.bf16.msra.mxu0 0
        %305 = vmatprep.subr.bf16.mxu0 0
        %306 = vmatpush1.bf16.msra.mxu0 0
        %307 = vmatprep.subr.bf16.mxu0 0
        %308 = vmatpush1.bf16.msra.mxu0 0
        %309 = vmatprep.subr.bf16.mxu0 0
        %310 = vmatpush1.bf16.msra.mxu0 0
        %311 = vmatprep.subr.bf16.mxu0 0
        %312 = vmatpush1.bf16.msra.mxu0 0
        %313 = vmatprep.subr.bf16.mxu0 0
        %314 = vmatpush1.bf16.msra.mxu0 0
        %315 = vmatprep.subr.bf16.mxu0 0
        %316 = vmatpush1.bf16.msra.mxu0 %v300
        %317 = vmatprep.subr.bf16.mxu0 0
        %318 = vmatpush1.bf16.msra.mxu0 %v299
        %319 = vmatprep.subr.bf16.mxu0 0
        %320 = vmatpush2.bf16.msra.mxu0 0
        %321 = vmatprep.subr.bf16.mxu0 0
        %322 = vmatpush2.bf16.msra.mxu0 0
        %323 = vmatprep.subr.bf16.mxu0 0
        %324 = vmatpush2.bf16.msra.mxu0 0
        %325 = vmatprep.subr.bf16.mxu0 0
        %326 = vmatpush2.bf16.msra.mxu0 0
        %327 = vmatprep.subr.bf16.mxu0 0
        %328 = vmatpush2.bf16.msra.mxu0 0
        %329 = vmatprep.subr.bf16.mxu0 0
        %330 = vmatpush2.bf16.msra.mxu0 0
        %331 = vmatprep.subr.bf16.mxu0 0
        %332 = vmatpush2.bf16.msra.mxu0 0
        %333 = vmatprep.subr.bf16.mxu0 0
        %334 = vmatpush2.bf16.msra.mxu0 0
        %335 = vmatprep.mubr.bf16.mxu0 0
        %336 = vmatmul.mubr.bf16.gmra.mxu0 %v249
        %v337 = vpop.f32.mrf.mxu0
        %v338 = vadd.f32 0.0, %v337
        %v339 = vpop.f32.mrf.mxu0
        %v340 = vpop.f32.mrf.mxu0
        %v341 = vpop.f32.mrf.mxu0
        %342 = vdwg.mxu0
        %v345 = vunpack.c.l.s4 1966171168
        %v346 = vunpack.c.0.s8 %v345
        %v347 = vlaneseq
        %v348 = vshrl.u32 %v347, 7
        %v349 = vsub.s32 %v346, %v348
        %v350 = vrot.slane %v221, %v349
        %v351 = vcombine.high %v350, %v350
        %v353 = vunpack.c.l.s4 1966171168
        %v354 = vunpack.c.0.s8 %v353
        %v355 = vlaneseq
        %v356 = vshrl.u32 %v355, 7
        %v357 = vsub.s32 %v354, %v356
        %v358 = vrot.slane %v350, %v357
        %v360 = vunpack.c.l.s4 1966171168
        %v361 = vunpack.c.0.s8 %v360
        %v362 = vlaneseq
        %v363 = vshrl.u32 %v362, 7
        %v364 = vsub.s32 %v361, %v363
        %v365 = vrot.slane %v351, %v364
        %v366 = vcombine.high %v358, %v358
        %v367 = vcombine.high %v365, %v365
        %v368 = vlaneseq
        %v369 = vshrl.u32 %v368, 7
        %v370 = vsub.s32 0, %v369
        %v371 = vrot.slane %v358, %v370
        %v372 = vlaneseq
        %v373 = vshrl.u32 %v372, 7
        %v374 = vsub.s32 0, %v373
        %v375 = vrot.slane %v365, %v374
        %v376 = vlaneseq
        %v377 = vshrl.u32 %v376, 7
        %v378 = vsub.s32 0, %v377
        %v379 = vrot.slane %v366, %v378
        %v380 = vlaneseq
        %v381 = vshrl.u32 %v380, 7
        %v382 = vsub.s32 0, %v381
        %v383 = vrot.slane %v367, %v382
        %v388 = vmul.f32 %v371, %v221
        %v389 = vmul.f32 %v375, %v221
        %v390 = vmul.f32 %v379, %v221
        %v391 = vmul.f32 %v383, %v221
        %v396 = vcombine.low %v388, %v389
        %v397 = vcombine.low %v390, %v391
        %v400 = vpack.c.bf16 %v397, %v396
        %v405 = vunpack.c.l.b16 %v231
        %v406 = vunpack.c.l.b16 %v232
        %v407 = vunpack.c.l.b16 %v233
        %v408 = vunpack.c.l.b16 %v234
        %v409 = vpack.c.b16 %v406, %v405
        %v410 = vpack.c.b16 %v408, %v407
        %v414 = vsel %vm247, %v400, 0
        %416 = vmatprep.subr.bf16.mxu0 0
        %417 = vmatpush1.bf16.msra.mxu0 0
        %418 = vmatprep.subr.bf16.mxu0 0
        %419 = vmatpush1.bf16.msra.mxu0 0
        %420 = vmatprep.subr.bf16.mxu0 0
        %421 = vmatpush1.bf16.msra.mxu0 0
        %422 = vmatprep.subr.bf16.mxu0 0
        %423 = vmatpush1.bf16.msra.mxu0 0
        %424 = vmatprep.subr.bf16.mxu0 0
        %425 = vmatpush1.bf16.msra.mxu0 0
        %426 = vmatprep.subr.bf16.mxu0 0
        %427 = vmatpush1.bf16.msra.mxu0 0
        %428 = vmatprep.subr.bf16.mxu0 0
        %429 = vmatpush1.bf16.msra.mxu0 %v410
        %430 = vmatprep.subr.bf16.mxu0 0
        %431 = vmatpush1.bf16.msra.mxu0 %v409
        %432 = vmatprep.subr.bf16.mxu0 0
        %433 = vmatpush2.bf16.msra.mxu0 0
        %434 = vmatprep.subr.bf16.mxu0 0
        %435 = vmatpush2.bf16.msra.mxu0 0
        %436 = vmatprep.subr.bf16.mxu0 0
        %437 = vmatpush2.bf16.msra.mxu0 0
        %438 = vmatprep.subr.bf16.mxu0 0
        %439 = vmatpush2.bf16.msra.mxu0 0
        %440 = vmatprep.subr.bf16.mxu0 0
        %441 = vmatpush2.bf16.msra.mxu0 0
        %442 = vmatprep.subr.bf16.mxu0 0
        %443 = vmatpush2.bf16.msra.mxu0 0
        %444 = vmatprep.subr.bf16.mxu0 0
        %445 = vmatpush2.bf16.msra.mxu0 0
        %446 = vmatprep.subr.bf16.mxu0 0
        %447 = vmatpush2.bf16.msra.mxu0 0
        %448 = vmatprep.mubr.bf16.mxu0 0
        %449 = vmatmul.mubr.bf16.gmra.mxu0 %v414
        %v450 = vpop.f32.mrf.mxu0
        %v451 = vadd.f32 0.0, %v450
        %v452 = vpop.f32.mrf.mxu0
        %v453 = vpop.f32.mrf.mxu0
        %v454 = vadd.f32 0.0, %v453
        %v455 = vpop.f32.mrf.mxu0
        %456 = vdwg.mxu0
        %v459 = vunpack.c.l.s4 1966171168
        %v460 = vunpack.c.0.s8 %v459
        %v461 = vlaneseq
        %v462 = vshrl.u32 %v461, 7
        %v463 = vsub.s32 %v460, %v462
        %v464 = vrot.slane %v286, %v463
        %v465 = vcombine.high %v464, %v464
        %v467 = vunpack.c.l.s4 1966171168
        %v468 = vunpack.c.0.s8 %v467
        %v469 = vlaneseq
        %v470 = vshrl.u32 %v469, 7
        %v471 = vsub.s32 %v468, %v470
        %v472 = vrot.slane %v464, %v471
        %v474 = vunpack.c.l.s4 1966171168
        %v475 = vunpack.c.0.s8 %v474
        %v476 = vlaneseq
        %v477 = vshrl.u32 %v476, 7
        %v478 = vsub.s32 %v475, %v477
        %v479 = vrot.slane %v465, %v478
        %v480 = vcombine.high %v472, %v472
        %v481 = vcombine.high %v479, %v479
        %v482 = vlaneseq
        %v483 = vshrl.u32 %v482, 7
        %v484 = vsub.s32 0, %v483
        %v485 = vrot.slane %v472, %v484
        %v486 = vlaneseq
        %v487 = vshrl.u32 %v486, 7
        %v488 = vsub.s32 0, %v487
        %v489 = vrot.slane %v479, %v488
        %v490 = vlaneseq
        %v491 = vshrl.u32 %v490, 7
        %v492 = vsub.s32 0, %v491
        %v493 = vrot.slane %v480, %v492
        %v494 = vlaneseq
        %v495 = vshrl.u32 %v494, 7
        %v496 = vsub.s32 0, %v495
        %v497 = vrot.slane %v481, %v496
        %v502 = vadd.f32 %v485, %v338
        %v503 = vadd.f32 %v489, %v338
        %v504 = vadd.f32 %v493, %v338
        %v505 = vadd.f32 %v497, %v338
        %v508 = vcombine.high %v451, %v451
        %v509 = vcombine.high %v454, %v454
        %v512 = vadd.f32 %v502, %v451
        %v513 = vadd.f32 %v503, %v508
        %v514 = vadd.f32 %v504, %v454
        %v515 = vadd.f32 %v505, %v509
        %v516 = vld [vmem:[%s2] sm:$0x1]
        %v518 = vlaneseq
        %v519 = vshrl.u32 %v518, 7
        %v520 = vsub.s32 0, %v519
        %v521 = vrot.slane %v516, %v520
        %v523 = vcombine.high %v521, %v521
        %v525 = vadd.f32 %v512, %v521
        %v526 = vadd.f32 %v513, %v523
        %v527 = vadd.f32 %v514, %v521
        %v528 = vadd.f32 %v515, %v523
        %v529 = vmax.f32 %v525, 0.0
        %v530 = vmax.f32 %v526, 0.0
        %v531 = vmax.f32 %v527, 0.0
        %v532 = vmax.f32 %v528, 0.0
        %v537 = vcombine.low %v529, %v530
        %v538 = vcombine.low %v531, %v532
        %v541 = vpack.c.bf16 %v538, %v537
        %v542 = vld [vmem:[%s3] sm:$0xf]
        %v543 = vld [vmem:[%s3 + $0x4] sm:$0xf]
        %v544 = vld [vmem:[%s3 + $0x8] sm:$0xf]
        %v545 = vld [vmem:[%s3 + $0xc] sm:$0xf]
        %v546 = vld [vmem:[%s4] sm:$0x1]
        %v548 = vlaneseq
        %v549 = vshrl.u32 %v548, 7
        %v550 = vsub.s32 0, %v549
        %v551 = vrot.slane %v546, %v550
        %v557 = vunpack.c.l.b16 %v542
        %v558 = vunpack.c.l.b16 %v543
        %v559 = vunpack.c.l.b16 %v544
        %v560 = vunpack.c.l.b16 %v545
        %v561 = vpack.c.b16 %v558, %v557
        %v562 = vpack.c.b16 %v560, %v559
        %v566 = vsel %vm247, %v541, 0
        %568 = vmatprep.subr.bf16.mxu0 0
        %569 = vmatpush1.bf16.msra.mxu0 0
        %570 = vmatprep.subr.bf16.mxu0 0
        %571 = vmatpush1.bf16.msra.mxu0 0
        %572 = vmatprep.subr.bf16.mxu0 0
        %573 = vmatpush1.bf16.msra.mxu0 0
        %574 = vmatprep.subr.bf16.mxu0 0
        %575 = vmatpush1.bf16.msra.mxu0 0
        %576 = vmatprep.subr.bf16.mxu0 0
        %577 = vmatpush1.bf16.msra.mxu0 0
        %578 = vmatprep.subr.bf16.mxu0 0
        %579 = vmatpush1.bf16.msra.mxu0 0
        %580 = vmatprep.subr.bf16.mxu0 0
        %581 = vmatpush1.bf16.msra.mxu0 %v562
        %582 = vmatprep.subr.bf16.mxu0 0
        %583 = vmatpush1.bf16.msra.mxu0 %v561
        %584 = vmatprep.subr.bf16.mxu0 0
        %585 = vmatpush2.bf16.msra.mxu0 0
        %586 = vmatprep.subr.bf16.mxu0 0
        %587 = vmatpush2.bf16.msra.mxu0 0
        %588 = vmatprep.subr.bf16.mxu0 0
        %589 = vmatpush2.bf16.msra.mxu0 0
        %590 = vmatprep.subr.bf16.mxu0 0
        %591 = vmatpush2.bf16.msra.mxu0 0
        %592 = vmatprep.subr.bf16.mxu0 0
        %593 = vmatpush2.bf16.msra.mxu0 0
        %594 = vmatprep.subr.bf16.mxu0 0
        %595 = vmatpush2.bf16.msra.mxu0 0
        %596 = vmatprep.subr.bf16.mxu0 0
        %597 = vmatpush2.bf16.msra.mxu0 0
        %598 = vmatprep.subr.bf16.mxu0 0
        %599 = vmatpush2.bf16.msra.mxu0 0
        %600 = vmatprep.mubr.bf16.mxu0 0
        %601 = vmatmul.mubr.bf16.gmra.mxu0 %v566
        %v602 = vpop.f32.mrf.mxu0
        %v603 = vadd.f32 %v551, %v602
        %v604 = vpop.f32.mrf.mxu0
        %v605 = vpop.f32.mrf.mxu0
        %v606 = vadd.f32 %v551, %v605
        %v607 = vpop.f32.mrf.mxu0
        %608 = vdwg.mxu0
        %609 = vst [vmem:[%s215] sm:$0xff] %v603
        %610 = vst [vmem:[%s215 + $0x8] sm:$0xff] %v606
        %s611 = sand.u32 %s137, 1
        %s612 = scalar_lea.sflag [#allocation3], %s611
        %s613 = sand.u32 %s137, 1
        %s614 = smul.addr %s613, 16
        %s615 = scalar_lea.vmem [#allocation2], %s614
        // Predicated region
        $region41: #{model_forward.5} parent=39 // pred_check
          %p616 = pneg %p147
        $region42: #{model_forward.5} parent=39 // pred_check_branch
          %618 = sbr.rel (%p616) target = $region44
        $region43: #{model_forward.5} parent=39 // pred_region
          %s620 = ssub.s32 256, 256
          %621 = vsyncadd %s612, %s620
          %s622 = smul.addr %s19, 2
          %s623 = smul.addr %s622, 128
          %s624 = scalar_lea.hbm %s5, %s623
          %s625 = sshll.u32 %s615, 4
          %s626 = int_to_ptr.vmem [resolvable:$true] %s625
          %631 = dma.vmem_to_hbm [thread:$0]  %s626, 256, %s624, %s612, 128, 128, 8
        $region44: #{model_forward.5} parent=39 // pred_fallthru
          _
      $region40: #{model_forward.5} parent=5 // pred_fallthru
        _
      %p632 = scmp.le.s32.totalorder 2, %s14
      // Predicated region
      $region45: #{model_forward.5} parent=5 // pred_check
        %p633 = pneg %p632
      $region46: #{model_forward.5} parent=5 // pred_check_branch
        %635 = sbr.rel (%p633) target = $region48
      $region47: #{model_forward.5} parent=5 // pred_region
        %s636 = ssub.s32 %s14, 2
        // Predicated region
        $region49: #{model_forward.5} parent=47 // pred_check
          %p637 = pneg %p153
        $region50: #{model_forward.5} parent=47 // pred_check_branch
          %639 = sbr.rel (%p637) target = $region52
        $region51: #{model_forward.5} parent=47 // pred_region
          %s640 = sand.u32 %s138, 1
          %s641 = scalar_lea.sflag [#allocation3], %s640
          %s642 = sand.u32 %s138, 1
          %s643 = smul.addr %s642, 16
          %s644 = scalar_lea.vmem [#allocation2], %s643
          %645 = dma.done %s641, 256
        $region52: #{model_forward.5} parent=47 // pred_fallthru
          _
      $region48: #{model_forward.5} parent=5 // pred_fallthru
        _
    $region6: #{model_forward.5} parent=1 // loop_footer
      %s18 = sadd.s32 1, %s14
    $region7: #{model_forward.5} parent=1 // loop_footer_branch
      %13 = sbr.rel target = $region3
    $region8: #{model_forward.5} parent=1 // loop_exit
      _
    %646 = vsyncpa [#allocation3], 1
    %s647 = scalar_lea.sflag [#allocation3], 1
    %648 = vsyncpa %s647, 1

// kernel: model_forward.3
$region0: #{model_forward.3}
  #allocation0 [shape = 'u32[]', space=smem, size = 0x4, offset = 0x4, fixed_abs, tag = 'smem constant byte address 0x4 - core index']
  #allocation1 [shape = 'u32[144,128]{1,0:T(1,128)}', space=vmem, size = 0x12000, scoped, tag = 'internal scratch']
  %s0 = inlined_call_operand.vmem [shape: f32[2,16,32], index: 0, kind: input, shape index: {}]
  %s1 = inlined_call_operand.vmem [shape: bf16[2,16,16], index: 1, kind: input, shape index: {}]
  %s2 = inlined_call_operand.vmem [shape: bf16[2,16,16], index: 2, kind: input, shape index: {}]
  %s3 = inlined_call_operand.vmem [shape: bf16[32,32], index: 3, kind: input, shape index: {}]
  %s4 = inlined_call_operand.vmem [shape: bf16[32,64], index: 4, kind: input, shape index: {}]
  %s5 = inlined_call_operand.vmem [shape: bf16[32,32], index: 5, kind: input, shape index: {}]
  %s6 = inlined_call_operand.vmem [shape: f32[1,32], index: 6, kind: input, shape index: {}]
  %s7 = inlined_call_operand.vmem [shape: f32[1,32], index: 7, kind: input, shape index: {}]
  %s8 = inlined_call_operand.vmem [shape: bf16[32,32], index: 8, kind: input, shape index: {}]
  %s9 = inlined_call_operand.vmem [shape: bf16[32,64], index: 9, kind: input, shape index: {}]
  %s10 = inlined_call_operand.vmem [shape: bf16[32,32], index: 10, kind: input, shape index: {}]
  %s11 = inlined_call_operand.vmem [shape: f32[1,32], index: 11, kind: input, shape index: {}]
  %s12 = inlined_call_operand.vmem [shape: f32[1,32], index: 12, kind: input, shape index: {}]
  %s13 = inlined_call_operand.vmem [shape: f32[2,16,32], index: 13, kind: output, shape index: {}]
  %s14 = sld [smem:[#allocation0]]
  $region85: #{model_forward.3} parent=0
    _
  %s16 = ssub.s32 1, %s14
  %s17 = scalar_select 0, %s16, %s14
  loop: start=0, step=1, limit=4
  $region2: #{model_forward.3} parent=0 // loop_pre_header
    _
  $region3: #{model_forward.3} parent=0 // loop_header
    %s19 = sphi 0, %s23
    %p20 = scmp.ge.s32.totalorder %s19, 4
    %s26 = sphi 0, %s38
    %s27 = sphi 0, %s34
    %s28 = sphi 0, %s26
    %s29 = sphi 0, %s27
    %s30 = sphi 0, %s28
    %s31 = sphi 0, %s29
    %s41 = sphi 0, %s43
    %s44 = sphi 0, %s41
    %s45 = sphi 0, %s44
    %s61 = sphi 0, %s45
    %s69 = sphi 0, %s71
    %s72 = sphi 0, %s69
    %s73 = sphi 0, %s72
    %s89 = sphi 0, %s73
    %s97 = sphi 0, %s99
    %s100 = sphi 0, %s97
    %s101 = sphi 0, %s100
    %s117 = sphi 0, %s101
    %s121 = sphi 0, %s121
    %s123 = sphi 0, %s121
    %s124 = sphi 0, %s123
    %s138 = sphi 0, %s124
    %s142 = sphi 0, %s142
    %s144 = sphi 0, %s142
    %s145 = sphi 0, %s144
    %s159 = sphi 0, %s145
    %s163 = sphi 0, %s163
    %s165 = sphi 0, %s163
    %s166 = sphi 0, %s165
    %s180 = sphi 0, %s166
    %s184 = sphi 0, %s184
    %s186 = sphi 0, %s184
    %s187 = sphi 0, %s186
    %s201 = sphi 0, %s187
    %s205 = sphi 0, %s205
    %s207 = sphi 0, %s205
    %s208 = sphi 0, %s207
    %s222 = sphi 0, %s208
    %s226 = sphi 0, %s226
    %s228 = sphi 0, %s226
    %s229 = sphi 0, %s228
    %s243 = sphi 0, %s229
    %s247 = sphi 0, %s247
    %s249 = sphi 0, %s247
    %s250 = sphi 0, %s249
    %s264 = sphi 0, %s250
    %s268 = sphi 0, %s268
    %s270 = sphi 0, %s268
    %s271 = sphi 0, %s270
    %s285 = sphi 0, %s271
    %s289 = sphi 0, %s289
    %s291 = sphi 0, %s289
    %s292 = sphi 0, %s291
    %s306 = sphi 0, %s292
    %s310 = sphi 0, %s310
    %s312 = sphi 0, %s310
    %s313 = sphi 0, %s312
    %s327 = sphi 0, %s313
    %s335 = sphi 0, %s337
    %s338 = sphi 0, %s335
    %s339 = sphi 0, %s338
    %s355 = sphi 0, %s339
  $region4: #{model_forward.3} parent=0 // loop_header_branch
    %22 = sbr.rel (%p20) target = $region8
  $region5: #{model_forward.3} parent=0 // loop_body
    %s24 = ssub.s32 %s19, 1
    %s25 = ssub.s32 %s19, 2
    %s32 = sadd.s32 1, %s27
    %p33 = scmp.ge.s32.totalorder %s32, 1
    %s34 = scalar_select %p33, 0, %s32
    %s35 = sadd.s32 1, %s26
    %s36 = scalar_select %p33, %s35, %s26
    %p37 = scmp.ge.s32.totalorder %s36, 2
    %s38 = scalar_select %p37, 0, %s36
    %s39 = ssub.s32 %s26, %s38
    %p40 = scmp.eq.s32.totalorder %s39, 0
    %s42 = sadd.s32 %s41, 1
    %s43 = scalar_select %p40, %s41, %s42
    %p46 = pneg %p40
    %p47 = scmp.eq.s32.totalorder %s19, 1
    %p48 = por %p46, %p47
    %p49 = scmp.ne.s32.totalorder %s41, %s44
    %p50 = scmp.eq.s32.totalorder %s19, 0
    %p51 = por %p49, %p50
    %p52 = scmp.ne.s32.totalorder %s41, %s44
    %p53 = scmp.eq.s32.totalorder %s24, 1
    %p54 = por %p52, %p53
    %p55 = scmp.ne.s32.totalorder %s44, %s45
    %p56 = scmp.eq.s32.totalorder %s24, 0
    %p57 = por %p55, %p56
    %p58 = scmp.ne.s32.totalorder %s44, %s45
    %p59 = scmp.eq.s32.totalorder %s25, 1
    %p60 = por %p58, %p59
    %p62 = scmp.ne.s32.totalorder %s45, %s61
    %p63 = scmp.eq.s32.totalorder %s25, 0
    %p64 = por %p62, %p63
    %s65 = ssub.s32 %s26, %s38
    %s66 = ssub.s32 %s27, %s34
    %s67 = sor.u32 %s65, %s66
    %p68 = scmp.eq.s32.totalorder %s67, 0
    %s70 = sadd.s32 %s69, 1
    %s71 = scalar_select %p68, %s69, %s70
    %p74 = pneg %p68
    %p75 = scmp.eq.s32.totalorder %s19, 1
    %p76 = por %p74, %p75
    %p77 = scmp.ne.s32.totalorder %s69, %s72
    %p78 = scmp.eq.s32.totalorder %s19, 0
    %p79 = por %p77, %p78
    %p80 = scmp.ne.s32.totalorder %s69, %s72
    %p81 = scmp.eq.s32.totalorder %s24, 1
    %p82 = por %p80, %p81
    %p83 = scmp.ne.s32.totalorder %s72, %s73
    %p84 = scmp.eq.s32.totalorder %s24, 0
    %p85 = por %p83, %p84
    %p86 = scmp.ne.s32.totalorder %s72, %s73
    %p87 = scmp.eq.s32.totalorder %s25, 1
    %p88 = por %p86, %p87
    %p90 = scmp.ne.s32.totalorder %s73, %s89
    %p91 = scmp.eq.s32.totalorder %s25, 0
    %p92 = por %p90, %p91
    %s93 = ssub.s32 %s26, %s38
    %s94 = ssub.s32 %s27, %s34
    %s95 = sor.u32 %s93, %s94
    %p96 = scmp.eq.s32.totalorder %s95, 0
    %s98 = sadd.s32 %s97, 1
    %s99 = scalar_select %p96, %s97, %s98
    %p102 = pneg %p96
    %p103 = scmp.eq.s32.totalorder %s19, 1
    %p104 = por %p102, %p103
    %p105 = scmp.ne.s32.totalorder %s97, %s100
    %p106 = scmp.eq.s32.totalorder %s19, 0
    %p107 = por %p105, %p106
    %p108 = scmp.ne.s32.totalorder %s97, %s100
    %p109 = scmp.eq.s32.totalorder %s24, 1
    %p110 = por %p108, %p109
    %p111 = scmp.ne.s32.totalorder %s100, %s101
    %p112 = scmp.eq.s32.totalorder %s24, 0
    %p113 = por %p111, %p112
    %p114 = scmp.ne.s32.totalorder %s100, %s101
    %p115 = scmp.eq.s32.totalorder %s25, 1
    %p116 = por %p114, %p115
    %p118 = scmp.ne.s32.totalorder %s101, %s117
    %p119 = scmp.eq.s32.totalorder %s25, 0
    %p120 = por %p118, %p119
    %s122 = sadd.s32 %s121, 1
    %p125 = scmp.eq.s32.totalorder %s19, 1
    %p126 = scmp.ne.s32.totalorder %s121, %s123
    %p127 = scmp.eq.s32.totalorder %s19, 0
    %p128 = por %p126, %p127
    %p129 = scmp.ne.s32.totalorder %s121, %s123
    %p130 = scmp.eq.s32.totalorder %s24, 1
    %p131 = por %p129, %p130
    %p132 = scmp.ne.s32.totalorder %s123, %s124
    %p133 = scmp.eq.s32.totalorder %s24, 0
    %p134 = por %p132, %p133
    %p135 = scmp.ne.s32.totalorder %s123, %s124
    %p136 = scmp.eq.s32.totalorder %s25, 1
    %p137 = por %p135, %p136
    %p139 = scmp.ne.s32.totalorder %s124, %s138
    %p140 = scmp.eq.s32.totalorder %s25, 0
    %p141 = por %p139, %p140
    %s143 = sadd.s32 %s142, 1
    %p146 = scmp.eq.s32.totalorder %s19, 1
    %p147 = scmp.ne.s32.totalorder %s142, %s144
    %p148 = scmp.eq.s32.totalorder %s19, 0
    %p149 = por %p147, %p148
    %p150 = scmp.ne.s32.totalorder %s142, %s144
    %p151 = scmp.eq.s32.totalorder %s24, 1
    %p152 = por %p150, %p151
    %p153 = scmp.ne.s32.totalorder %s144, %s145
    %p154 = scmp.eq.s32.totalorder %s24, 0
    %p155 = por %p153, %p154
    %p156 = scmp.ne.s32.totalorder %s144, %s145
    %p157 = scmp.eq.s32.totalorder %s25, 1
    %p158 = por %p156, %p157
    %p160 = scmp.ne.s32.totalorder %s145, %s159
    %p161 = scmp.eq.s32.totalorder %s25, 0
    %p162 = por %p160, %p161
    %s164 = sadd.s32 %s163, 1
    %p167 = scmp.eq.s32.totalorder %s19, 1
    %p168 = scmp.ne.s32.totalorder %s163, %s165
    %p169 = scmp.eq.s32.totalorder %s19, 0
    %p170 = por %p168, %p169
    %p171 = scmp.ne.s32.totalorder %s163, %s165
    %p172 = scmp.eq.s32.totalorder %s24, 1
    %p173 = por %p171, %p172
    %p174 = scmp.ne.s32.totalorder %s165, %s166
    %p175 = scmp.eq.s32.totalorder %s24, 0
    %p176 = por %p174, %p175
    %p177 = scmp.ne.s32.totalorder %s165, %s166
    %p178 = scmp.eq.s32.totalorder %s25, 1
    %p179 = por %p177, %p178
    %p181 = scmp.ne.s32.totalorder %s166, %s180
    %p182 = scmp.eq.s32.totalorder %s25, 0
    %p183 = por %p181, %p182
    %s185 = sadd.s32 %s184, 1
    %p188 = scmp.eq.s32.totalorder %s19, 1
    %p189 = scmp.ne.s32.totalorder %s184, %s186
    %p190 = scmp.eq.s32.totalorder %s19, 0
    %p191 = por %p189, %p190
    %p192 = scmp.ne.s32.totalorder %s184, %s186
    %p193 = scmp.eq.s32.totalorder %s24, 1
    %p194 = por %p192, %p193
    %p195 = scmp.ne.s32.totalorder %s186, %s187
    %p196 = scmp.eq.s32.totalorder %s24, 0
    %p197 = por %p195, %p196
    %p198 = scmp.ne.s32.totalorder %s186, %s187
    %p199 = scmp.eq.s32.totalorder %s25, 1
    %p200 = por %p198, %p199
    %p202 = scmp.ne.s32.totalorder %s187, %s201
    %p203 = scmp.eq.s32.totalorder %s25, 0
    %p204 = por %p202, %p203
    %s206 = sadd.s32 %s205, 1
    %p209 = scmp.eq.s32.totalorder %s19, 1
    %p210 = scmp.ne.s32.totalorder %s205, %s207
    %p211 = scmp.eq.s32.totalorder %s19, 0
    %p212 = por %p210, %p211
    %p213 = scmp.ne.s32.totalorder %s205, %s207
    %p214 = scmp.eq.s32.totalorder %s24, 1
    %p215 = por %p213, %p214
    %p216 = scmp.ne.s32.totalorder %s207, %s208
    %p217 = scmp.eq.s32.totalorder %s24, 0
    %p218 = por %p216, %p217
    %p219 = scmp.ne.s32.totalorder %s207, %s208
    %p220 = scmp.eq.s32.totalorder %s25, 1
    %p221 = por %p219, %p220
    %p223 = scmp.ne.s32.totalorder %s208, %s222
    %p224 = scmp.eq.s32.totalorder %s25, 0
    %p225 = por %p223, %p224
    %s227 = sadd.s32 %s226, 1
    %p230 = scmp.eq.s32.totalorder %s19, 1
    %p231 = scmp.ne.s32.totalorder %s226, %s228
    %p232 = scmp.eq.s32.totalorder %s19, 0
    %p233 = por %p231, %p232
    %p234 = scmp.ne.s32.totalorder %s226, %s228
    %p235 = scmp.eq.s32.totalorder %s24, 1
    %p236 = por %p234, %p235
    %p237 = scmp.ne.s32.totalorder %s228, %s229
    %p238 = scmp.eq.s32.totalorder %s24, 0
    %p239 = por %p237, %p238
    %p240 = scmp.ne.s32.totalorder %s228, %s229
    %p241 = scmp.eq.s32.totalorder %s25, 1
    %p242 = por %p240, %p241
    %p244 = scmp.ne.s32.totalorder %s229, %s243
    %p245 = scmp.eq.s32.totalorder %s25, 0
    %p246 = por %p244, %p245
    %s248 = sadd.s32 %s247, 1
    %p251 = scmp.eq.s32.totalorder %s19, 1
    %p252 = scmp.ne.s32.totalorder %s247, %s249
    %p253 = scmp.eq.s32.totalorder %s19, 0
    %p254 = por %p252, %p253
    %p255 = scmp.ne.s32.totalorder %s247, %s249
    %p256 = scmp.eq.s32.totalorder %s24, 1
    %p257 = por %p255, %p256
    %p258 = scmp.ne.s32.totalorder %s249, %s250
    %p259 = scmp.eq.s32.totalorder %s24, 0
    %p260 = por %p258, %p259
    %p261 = scmp.ne.s32.totalorder %s249, %s250
    %p262 = scmp.eq.s32.totalorder %s25, 1
    %p263 = por %p261, %p262
    %p265 = scmp.ne.s32.totalorder %s250, %s264
    %p266 = scmp.eq.s32.totalorder %s25, 0
    %p267 = por %p265, %p266
    %s269 = sadd.s32 %s268, 1
    %p272 = scmp.eq.s32.totalorder %s19, 1
    %p273 = scmp.ne.s32.totalorder %s268, %s270
    %p274 = scmp.eq.s32.totalorder %s19, 0
    %p275 = por %p273, %p274
    %p276 = scmp.ne.s32.totalorder %s268, %s270
    %p277 = scmp.eq.s32.totalorder %s24, 1
    %p278 = por %p276, %p277
    %p279 = scmp.ne.s32.totalorder %s270, %s271
    %p280 = scmp.eq.s32.totalorder %s24, 0
    %p281 = por %p279, %p280
    %p282 = scmp.ne.s32.totalorder %s270, %s271
    %p283 = scmp.eq.s32.totalorder %s25, 1
    %p284 = por %p282, %p283
    %p286 = scmp.ne.s32.totalorder %s271, %s285
    %p287 = scmp.eq.s32.totalorder %s25, 0
    %p288 = por %p286, %p287
    %s290 = sadd.s32 %s289, 1
    %p293 = scmp.eq.s32.totalorder %s19, 1
    %p294 = scmp.ne.s32.totalorder %s289, %s291
    %p295 = scmp.eq.s32.totalorder %s19, 0
    %p296 = por %p294, %p295
    %p297 = scmp.ne.s32.totalorder %s289, %s291
    %p298 = scmp.eq.s32.totalorder %s24, 1
    %p299 = por %p297, %p298
    %p300 = scmp.ne.s32.totalorder %s291, %s292
    %p301 = scmp.eq.s32.totalorder %s24, 0
    %p302 = por %p300, %p301
    %p303 = scmp.ne.s32.totalorder %s291, %s292
    %p304 = scmp.eq.s32.totalorder %s25, 1
    %p305 = por %p303, %p304
    %p307 = scmp.ne.s32.totalorder %s292, %s306
    %p308 = scmp.eq.s32.totalorder %s25, 0
    %p309 = por %p307, %p308
    %s311 = sadd.s32 %s310, 1
    %p314 = scmp.eq.s32.totalorder %s19, 1
    %p315 = scmp.ne.s32.totalorder %s310, %s312
    %p316 = scmp.eq.s32.totalorder %s19, 0
    %p317 = por %p315, %p316
    %p318 = scmp.ne.s32.totalorder %s310, %s312
    %p319 = scmp.eq.s32.totalorder %s24, 1
    %p320 = por %p318, %p319
    %p321 = scmp.ne.s32.totalorder %s312, %s313
    %p322 = scmp.eq.s32.totalorder %s24, 0
    %p323 = por %p321, %p322
    %p324 = scmp.ne.s32.totalorder %s312, %s313
    %p325 = scmp.eq.s32.totalorder %s25, 1
    %p326 = por %p324, %p325
    %p328 = scmp.ne.s32.totalorder %s313, %s327
    %p329 = scmp.eq.s32.totalorder %s25, 0
    %p330 = por %p328, %p329
    %s331 = ssub.s32 %s26, %s38
    %s332 = ssub.s32 %s27, %s34
    %s333 = sor.u32 %s331, %s332
    %p334 = scmp.eq.s32.totalorder %s333, 0
    %s336 = sadd.s32 %s335, 1
    %s337 = scalar_select %p334, %s335, %s336
    %p340 = pneg %p334
    %p341 = scmp.eq.s32.totalorder %s19, 1
    %p342 = por %p340, %p341
    %p343 = scmp.ne.s32.totalorder %s335, %s338
    %p344 = scmp.eq.s32.totalorder %s19, 0
    %p345 = por %p343, %p344
    %p346 = scmp.ne.s32.totalorder %s335, %s338
    %p347 = scmp.eq.s32.totalorder %s24, 1
    %p348 = por %p346, %p347
    %p349 = scmp.ne.s32.totalorder %s338, %s339
    %p350 = scmp.eq.s32.totalorder %s24, 0
    %p351 = por %p349, %p350
    %p352 = scmp.ne.s32.totalorder %s338, %s339
    %p353 = scmp.eq.s32.totalorder %s25, 1
    %p354 = por %p352, %p353
    %p356 = scmp.ne.s32.totalorder %s339, %s355
    %p357 = scmp.eq.s32.totalorder %s25, 0
    %p358 = por %p356, %p357
    %p359 = scmp.le.s32.totalorder 1, %s19
    %p360 = scmp.lt.s32.totalorder %s19, 3
    %p361 = pnand %p359, %p360
    %p362 = pneg %p361
    // Predicated region
    $region9: #{model_forward.3} parent=5 // pred_check
      _
    $region10: #{model_forward.3} parent=5 // pred_check_branch
      %364 = sbr.rel (%p361) target = $region12
    $region11: #{model_forward.3} parent=5 // pred_region
      %s365 = ssub.s32 %s19, 1
      // Predicated region
      $region13: #{model_forward.3} parent=11 // pred_check
        %p366 = pneg %p134
      $region14: #{model_forward.3} parent=11 // pred_check_branch
        %368 = sbr.rel (%p366) target = $region16
      $region15: #{model_forward.3} parent=11 // pred_region
        _
      $region16: #{model_forward.3} parent=11 // pred_fallthru
        _
      // Predicated region
      $region17: #{model_forward.3} parent=11 // pred_check
        %p369 = pneg %p155
      $region18: #{model_forward.3} parent=11 // pred_check_branch
        %371 = sbr.rel (%p369) target = $region20
      $region19: #{model_forward.3} parent=11 // pred_region
        _
      $region20: #{model_forward.3} parent=11 // pred_fallthru
        _
      // Predicated region
      $region21: #{model_forward.3} parent=11 // pred_check
        %p372 = pneg %p176
      $region22: #{model_forward.3} parent=11 // pred_check_branch
        %374 = sbr.rel (%p372) target = $region24
      $region23: #{model_forward.3} parent=11 // pred_region
        _
      $region24: #{model_forward.3} parent=11 // pred_fallthru
        _
      // Predicated region
      $region25: #{model_forward.3} parent=11 // pred_check
        %p375 = pneg %p197
      $region26: #{model_forward.3} parent=11 // pred_check_branch
        %377 = sbr.rel (%p375) target = $region28
      $region27: #{model_forward.3} parent=11 // pred_region
        _
      $region28: #{model_forward.3} parent=11 // pred_fallthru
        _
      // Predicated region
      $region29: #{model_forward.3} parent=11 // pred_check
        %p378 = pneg %p218
      $region30: #{model_forward.3} parent=11 // pred_check_branch
        %380 = sbr.rel (%p378) target = $region32
      $region31: #{model_forward.3} parent=11 // pred_region
        _
      $region32: #{model_forward.3} parent=11 // pred_fallthru
        _
      // Predicated region
      $region33: #{model_forward.3} parent=11 // pred_check
        %p381 = pneg %p239
      $region34: #{model_forward.3} parent=11 // pred_check_branch
        %383 = sbr.rel (%p381) target = $region36
      $region35: #{model_forward.3} parent=11 // pred_region
        _
      $region36: #{model_forward.3} parent=11 // pred_fallthru
        _
      // Predicated region
      $region37: #{model_forward.3} parent=11 // pred_check
        %p384 = pneg %p260
      $region38: #{model_forward.3} parent=11 // pred_check_branch
        %386 = sbr.rel (%p384) target = $region40
      $region39: #{model_forward.3} parent=11 // pred_region
        _
      $region40: #{model_forward.3} parent=11 // pred_fallthru
        _
      // Predicated region
      $region41: #{model_forward.3} parent=11 // pred_check
        %p387 = pneg %p281
      $region42: #{model_forward.3} parent=11 // pred_check_branch
        %389 = sbr.rel (%p387) target = $region44
      $region43: #{model_forward.3} parent=11 // pred_region
        _
      $region44: #{model_forward.3} parent=11 // pred_fallthru
        _
      // Predicated region
      $region45: #{model_forward.3} parent=11 // pred_check
        %p390 = pneg %p302
      $region46: #{model_forward.3} parent=11 // pred_check_branch
        %392 = sbr.rel (%p390) target = $region48
      $region47: #{model_forward.3} parent=11 // pred_region
        _
      $region48: #{model_forward.3} parent=11 // pred_fallthru
        _
      // Predicated region
      $region49: #{model_forward.3} parent=11 // pred_check
        %p393 = pneg %p323
      $region50: #{model_forward.3} parent=11 // pred_check_branch
        %395 = sbr.rel (%p393) target = $region52
      $region51: #{model_forward.3} parent=11 // pred_region
        _
      $region52: #{model_forward.3} parent=11 // pred_fallthru
        _
    $region12: #{model_forward.3} parent=5 // pred_fallthru
      _
    %p396 = scmp.lt.s32.totalorder %s19, 2
    // Predicated region
    $region53: #{model_forward.3} parent=5 // pred_check
      %p397 = pneg %p396
    $region54: #{model_forward.3} parent=5 // pred_check_branch
      %399 = sbr.rel (%p397) target = $region56
    $region55: #{model_forward.3} parent=5 // pred_region
      // Predicated region
      $region57: #{model_forward.3} parent=55 // pred_check
        %p400 = pneg %p51
      $region58: #{model_forward.3} parent=55 // pred_check_branch
        %402 = sbr.rel (%p400) target = $region60
      $region59: #{model_forward.3} parent=55 // pred_region
        %p403 = scmp.lt.s32.totalorder %s26, 1
        %s404 = scalar_select %p403, %s26, 1
        %s405 = smul.addr %s404, 2
        %s406 = smul.addr %s405, 8
        %s407 = scalar_lea.vmem %s0, %s406
      $region60: #{model_forward.3} parent=55 // pred_fallthru
        _
      // Predicated region
      $region61: #{model_forward.3} parent=55 // pred_check
        %p408 = pneg %p79
      $region62: #{model_forward.3} parent=55 // pred_check_branch
        %410 = sbr.rel (%p408) target = $region64
      $region63: #{model_forward.3} parent=55 // pred_region
        %s411 = smul.u32 2, %s27
        %p412 = scmp.lt.s32.totalorder %s26, 1
        %s413 = scalar_select %p412, %s26, 1
        %p414 = scmp.lt.s32.totalorder %s411, 1
        %s415 = scalar_select %p414, %s411, 1
        %s416 = smul.addr %s413, 2
        %s417 = sadd.s32 %s415, %s416
        %s418 = smul.addr %s417, 4
        %s419 = scalar_lea.vmem %s1, %s418
        %s420 = smul.u32 2, %s27
      $region64: #{model_forward.3} parent=55 // pred_fallthru
        _
      // Predicated region
      $region65: #{model_forward.3} parent=55 // pred_check
        %p421 = pneg %p107
      $region66: #{model_forward.3} parent=55 // pred_check_branch
        %423 = sbr.rel (%p421) target = $region68
      $region67: #{model_forward.3} parent=55 // pred_region
        %s424 = smul.u32 2, %s27
        %p425 = scmp.lt.s32.totalorder %s26, 1
        %s426 = scalar_select %p425, %s26, 1
        %p427 = scmp.lt.s32.totalorder %s424, 1
        %s428 = scalar_select %p427, %s424, 1
        %s429 = smul.addr %s426, 2
        %s430 = sadd.s32 %s428, %s429
        %s431 = smul.addr %s430, 4
        %s432 = scalar_lea.vmem %s2, %s431
        %s433 = smul.u32 2, %s27
      $region68: #{model_forward.3} parent=55 // pred_fallthru
        _
    $region56: #{model_forward.3} parent=5 // pred_fallthru
      _
    %p434 = scmp.le.s32.totalorder 1, %s19
    %p435 = scmp.lt.s32.totalorder %s19, 3
    %p436 = pnand %p434, %p435
    %p437 = pneg %p436
    // Predicated region
    $region69: #{model_forward.3} parent=5 // pred_check
      _
    $region70: #{model_forward.3} parent=5 // pred_check_branch
      %439 = sbr.rel (%p436) target = $region72
    $region71: #{model_forward.3} parent=5 // pred_region
      %s440 = ssub.s32 %s19, 1
      %p441 = scmp.lt.s32.totalorder %s28, 1
      %s442 = scalar_select %p441, %s28, 1
      %s443 = smul.addr %s442, 2
      %s444 = smul.addr %s443, 8
      %s445 = scalar_lea.vmem %s0, %s444
      %p446 = pneg %p57
      %p447 = pneg %p54
      %s448 = smul.u32 2, %s29
      %p449 = scmp.lt.s32.totalorder %s28, 1
      %s450 = scalar_select %p449, %s28, 1
      %p451 = scmp.lt.s32.totalorder %s448, 1
      %s452 = scalar_select %p451, %s448, 1
      %s453 = smul.addr %s450, 2
      %s454 = sadd.s32 %s452, %s453
      %s455 = smul.addr %s454, 4
      %s456 = scalar_lea.vmem %s1, %s455
      %p457 = pneg %p85
      %p458 = pneg %p82
      %s459 = smul.u32 2, %s29
      %p460 = scmp.lt.s32.totalorder %s28, 1
      %s461 = scalar_select %p460, %s28, 1
      %p462 = scmp.lt.s32.totalorder %s459, 1
      %s463 = scalar_select %p462, %s459, 1
      %s464 = smul.addr %s461, 2
      %s465 = sadd.s32 %s463, %s464
      %s466 = smul.addr %s465, 4
      %s467 = scalar_lea.vmem %s2, %s466
      %p468 = pneg %p113
      %p469 = pneg %p110
      %p470 = pneg %p134
      %p471 = pneg %p131
      %p472 = pneg %p155
      %p473 = pneg %p152
      %p474 = pneg %p176
      %p475 = pneg %p173
      %p476 = pneg %p197
      %p477 = pneg %p194
      %p478 = pneg %p218
      %p479 = pneg %p215
      %p480 = pneg %p239
      %p481 = pneg %p236
      %p482 = pneg %p260
      %p483 = pneg %p257
      %p484 = pneg %p281
      %p485 = pneg %p278
      %p486 = pneg %p302
      %p487 = pneg %p299
      %p488 = pneg %p323
      %p489 = pneg %p320
      %p490 = pneg %p351
      %p491 = pneg %p348
      %s492 = smul.u32 2, %s29
      %p493 = scmp.lt.s32.totalorder %s28, 1
      %s494 = scalar_select %p493, %s28, 1
      %p495 = scmp.lt.s32.totalorder %s492, 1
      %s496 = scalar_select %p495, %s492, 1
      %s497 = smul.addr %s494, 2
      %s498 = sadd.s32 %s496, %s497
      %s499 = smul.addr %s498, 8
      %s500 = scalar_lea.vmem %s13, %s499
      %p501 = scmp.lt.s32.totalorder %s28, 1
      %s502 = scalar_select %p501, %s28, 1
      %s503 = smul.addr %s502, 2
      %s504 = smul.addr %s503, 8
      %s505 = scalar_lea.vmem %s0, %s504
      %s506 = smul.u32 2, %s29
      %p507 = scmp.lt.s32.totalorder %s28, 1
      %s508 = scalar_select %p507, %s28, 1
      %p509 = scmp.lt.s32.totalorder %s506, 1
      %s510 = scalar_select %p509, %s506, 1
      %s511 = smul.addr %s508, 2
      %s512 = sadd.s32 %s510, %s511
      %s513 = smul.addr %s512, 4
      %s514 = scalar_lea.vmem %s1, %s513
      %s515 = smul.u32 2, %s29
      %s516 = smul.u32 2, %s29
      %p517 = scmp.lt.s32.totalorder %s28, 1
      %s518 = scalar_select %p517, %s28, 1
      %p519 = scmp.lt.s32.totalorder %s516, 1
      %s520 = scalar_select %p519, %s516, 1
      %s521 = smul.addr %s518, 2
      %s522 = sadd.s32 %s520, %s521
      %s523 = smul.addr %s522, 4
      %s524 = scalar_lea.vmem %s2, %s523
      %s525 = smul.u32 2, %s29
      %s526 = smul.u32 2, %s29
      %p527 = scmp.lt.s32.totalorder %s28, 1
      %s528 = scalar_select %p527, %s28, 1
      %p529 = scmp.lt.s32.totalorder %s526, 1
      %s530 = scalar_select %p529, %s526, 1
      %s531 = smul.addr %s528, 2
      %s532 = sadd.s32 %s530, %s531
      %s533 = smul.addr %s532, 8
      %s534 = scalar_lea.vmem %s13, %s533
      %s535 = smul.u32 2, %s29
      %v537 = vld [vmem:[%s505] sm:$0xff]
      %v538 = vld [vmem:[%s505 + $0x8] sm:$0xff]
      %s539 = smul.u32 %s29, 16
      %s540 = scalar_lea.vmem %s505, %s539
      %v541 = vld [vmem:[%s540] sm:$0xff]
      %v542 = vld [vmem:[%s540 + $0x8] sm:$0xff]
      %v543 = vpack.c.bf16 %v538, %v537
      %v544 = vpack.c.bf16 %v542, %v541
      %v545 = vld [vmem:[%s3] sm:$0xf]
      %v546 = vld [vmem:[%s3 + $0x4] sm:$0xf]
      %v547 = vld [vmem:[%s3 + $0x8] sm:$0xf]
      %v548 = vld [vmem:[%s3 + $0xc] sm:$0xf]
      %v553 = vunpack.c.l.b16 %v545
      %v554 = vunpack.c.l.b16 %v546
      %v555 = vunpack.c.l.b16 %v547
      %v556 = vunpack.c.l.b16 %v548
      %v557 = vpack.c.b16 %v554, %v553
      %v558 = vpack.c.b16 %v556, %v555
      %vm561 = vcmask 261120
      %v563 = vsel %vm561, %v544, 0
      %565 = vmatprep.subr.bf16.mxu0 0
      %566 = vmatpush1.bf16.msra.mxu0 0
      %567 = vmatprep.subr.bf16.mxu0 0
      %568 = vmatpush1.bf16.msra.mxu0 0
      %569 = vmatprep.subr.bf16.mxu0 0
      %570 = vmatpush1.bf16.msra.mxu0 0
      %571 = vmatprep.subr.bf16.mxu0 0
      %572 = vmatpush1.bf16.msra.mxu0 0
      %573 = vmatprep.subr.bf16.mxu0 0
      %574 = vmatpush1.bf16.msra.mxu0 0
      %575 = vmatprep.subr.bf16.mxu0 0
      %576 = vmatpush1.bf16.msra.mxu0 0
      %577 = vmatprep.subr.bf16.mxu0 0
      %578 = vmatpush1.bf16.msra.mxu0 %v558
      %579 = vmatprep.subr.bf16.mxu0 0
      %580 = vmatpush1.bf16.msra.mxu0 %v557
      %581 = vmatprep.subr.bf16.mxu0 0
      %582 = vmatpush2.bf16.msra.mxu0 0
      %583 = vmatprep.subr.bf16.mxu0 0
      %584 = vmatpush2.bf16.msra.mxu0 0
      %585 = vmatprep.subr.bf16.mxu0 0
      %586 = vmatpush2.bf16.msra.mxu0 0
      %587 = vmatprep.subr.bf16.mxu0 0
      %588 = vmatpush2.bf16.msra.mxu0 0
      %589 = vmatprep.subr.bf16.mxu0 0
      %590 = vmatpush2.bf16.msra.mxu0 0
      %591 = vmatprep.subr.bf16.mxu0 0
      %592 = vmatpush2.bf16.msra.mxu0 0
      %593 = vmatprep.subr.bf16.mxu0 0
      %594 = vmatpush2.bf16.msra.mxu0 0
      %595 = vmatprep.subr.bf16.mxu0 0
      %596 = vmatpush2.bf16.msra.mxu0 0
      %597 = vmatprep.mubr.bf16.mxu0 0
      %598 = vmatmul.mubr.bf16.gmra.mxu0 %v563
      %v599 = vpop.f32.mrf.mxu0
      %v600 = vadd.f32 0.0, %v599
      %v601 = vpop.f32.mrf.mxu0
      %v602 = vpop.f32.mrf.mxu0
      %v603 = vadd.f32 0.0, %v602
      %v604 = vpop.f32.mrf.mxu0
      %605 = vdwg.mxu0
      %v606 = vld [vmem:[%s4] sm:$0xf]
      %v607 = vld [vmem:[%s4 + $0x4] sm:$0xf]
      %v608 = vld [vmem:[%s4 + $0x8] sm:$0xf]
      %v609 = vld [vmem:[%s4 + $0xc] sm:$0xf]
      %v614 = vunpack.c.l.b16 %v606
      %v615 = vunpack.c.l.b16 %v607
      %v616 = vunpack.c.l.b16 %v608
      %v617 = vunpack.c.l.b16 %v609
      %v618 = vpack.c.b16 %v615, %v614
      %v619 = vpack.c.b16 %v617, %v616
      %v623 = vsel %vm561, %v543, 0
      %625 = vmatprep.subr.bf16.mxu0 0
      %626 = vmatpush1.bf16.msra.mxu0 0
      %627 = vmatprep.subr.bf16.mxu0 0
      %628 = vmatpush1.bf16.msra.mxu0 0
      %629 = vmatprep.subr.bf16.mxu0 0
      %630 = vmatpush1.bf16.msra.mxu0 0
      %631 = vmatprep.subr.bf16.mxu0 0
      %632 = vmatpush1.bf16.msra.mxu0 0
      %633 = vmatprep.subr.bf16.mxu0 0
      %634 = vmatpush1.bf16.msra.mxu0 0
      %635 = vmatprep.subr.bf16.mxu0 0
      %636 = vmatpush1.bf16.msra.mxu0 0
      %637 = vmatprep.subr.bf16.mxu0 0
      %638 = vmatpush1.bf16.msra.mxu0 %v619
      %639 = vmatprep.subr.bf16.mxu0 0
      %640 = vmatpush1.bf16.msra.mxu0 %v618
      %641 = vmatprep.subr.bf16.mxu0 0
      %642 = vmatpush2.bf16.msra.mxu0 0
      %643 = vmatprep.subr.bf16.mxu0 0
      %644 = vmatpush2.bf16.msra.mxu0 0
      %645 = vmatprep.subr.bf16.mxu0 0
      %646 = vmatpush2.bf16.msra.mxu0 0
      %647 = vmatprep.subr.bf16.mxu0 0
      %648 = vmatpush2.bf16.msra.mxu0 0
      %649 = vmatprep.subr.bf16.mxu0 0
      %650 = vmatpush2.bf16.msra.mxu0 0
      %651 = vmatprep.subr.bf16.mxu0 0
      %652 = vmatpush2.bf16.msra.mxu0 0
      %653 = vmatprep.subr.bf16.mxu0 0
      %654 = vmatpush2.bf16.msra.mxu0 0
      %655 = vmatprep.subr.bf16.mxu0 0
      %656 = vmatpush2.bf16.msra.mxu0 0
      %657 = vmatprep.mubr.bf16.mxu0 0
      %658 = vmatmul.mubr.bf16.gmra.mxu0 %v623
      %v659 = vpop.f32.mrf.mxu0
      %v660 = vadd.f32 0.0, %v659
      %v661 = vpop.f32.mrf.mxu0
      %v662 = vpop.f32.mrf.mxu0
      %v663 = vadd.f32 0.0, %v662
      %v664 = vpop.f32.mrf.mxu0
      %665 = vdwg.mxu0
      %668 = vrot.lane.b32.xlu0 %v600, 120
      %v669 = vpop.permute.xlu0 %668
      %670 = vrot.lane.b32.xlu0 %v603, 120
      %v671 = vpop.permute.xlu0 %670
      %674 = vrot.lane.b32.xlu0 %v600, 112
      %v675 = vpop.permute.xlu0 %674
      %676 = vrot.lane.b32.xlu0 %v603, 112
      %v677 = vpop.permute.xlu0 %676
      %680 = vrot.lane.b32.xlu0 %v600, 104
      %v681 = vpop.permute.xlu0 %680
      %682 = vrot.lane.b32.xlu0 %v603, 104
      %v683 = vpop.permute.xlu0 %682
      %v686 = vcombine.low %v600, %v675
      %v687 = vcombine.high %v600, %v675
      %v689 = vunpack.c.l.s4 1983009808
      %v690 = vunpack.c.0.s8 %v689
      %v691 = vlaneseq
      %v692 = vshrl.u32 %v691, 7
      %v693 = vsub.s32 %v690, %v692
      %v694 = vrot.slane %v686, %v693
      %v696 = vunpack.c.l.s4 1983009808
      %v697 = vunpack.c.0.s8 %v696
      %v698 = vlaneseq
      %v699 = vshrl.u32 %v698, 7
      %v700 = vsub.s32 %v697, %v699
      %v701 = vrot.slane %v687, %v700
      %v702 = vcombine.low %v669, %v681
      %v703 = vcombine.high %v669, %v681
      %v705 = vunpack.c.l.s4 1983009808
      %v706 = vunpack.c.0.s8 %v705
      %v707 = vlaneseq
      %v708 = vshrl.u32 %v707, 7
      %v709 = vsub.s32 %v706, %v708
      %v710 = vrot.slane %v702, %v709
      %v712 = vunpack.c.l.s4 1983009808
      %v713 = vunpack.c.0.s8 %v712
      %v714 = vlaneseq
      %v715 = vshrl.u32 %v714, 7
      %v716 = vsub.s32 %v713, %v715
      %v717 = vrot.slane %v703, %v716
      %v718 = vcombine.low %v694, %v710
      %v719 = vcombine.high %v694, %v710
      %v721 = vunpack.c.l.s4 1934713408
      %v722 = vunpack.c.0.s8 %v721
      %v723 = vlaneseq
      %v724 = vshrl.u32 %v723, 7
      %v725 = vsub.s32 %v722, %v724
      %v726 = vrot.slane %v718, %v725
      %v728 = vunpack.c.l.s4 1934713408
      %v729 = vunpack.c.0.s8 %v728
      %v730 = vlaneseq
      %v731 = vshrl.u32 %v730, 7
      %v732 = vsub.s32 %v729, %v731
      %v733 = vrot.slane %v719, %v732
      %v734 = vcombine.low %v701, %v717
      %v735 = vcombine.high %v701, %v717
      %v737 = vunpack.c.l.s4 1934713408
      %v738 = vunpack.c.0.s8 %v737
      %v739 = vlaneseq
      %v740 = vshrl.u32 %v739, 7
      %v741 = vsub.s32 %v738, %v740
      %v742 = vrot.slane %v734, %v741
      %v744 = vunpack.c.l.s4 1934713408
      %v745 = vunpack.c.0.s8 %v744
      %v746 = vlaneseq
      %v747 = vshrl.u32 %v746, 7
      %v748 = vsub.s32 %v745, %v747
      %v749 = vrot.slane %v735, %v748
      %v750 = vcombine.high %v726, 0.0
      %v751 = vcombine.high %v733, 0.0
      %v752 = vcombine.high %v742, 0.0
      %v753 = vcombine.high %v749, 0.0
      %v754 = vcombine.low %v603, %v677
      %v755 = vcombine.high %v603, %v677
      %v757 = vunpack.c.l.s4 1983009808
      %v758 = vunpack.c.0.s8 %v757
      %v759 = vlaneseq
      %v760 = vshrl.u32 %v759, 7
      %v761 = vsub.s32 %v758, %v760
      %v762 = vrot.slane %v754, %v761
      %v764 = vunpack.c.l.s4 1983009808
      %v765 = vunpack.c.0.s8 %v764
      %v766 = vlaneseq
      %v767 = vshrl.u32 %v766, 7
      %v768 = vsub.s32 %v765, %v767
      %v769 = vrot.slane %v755, %v768
      %v770 = vcombine.low %v671, %v683
      %v771 = vcombine.high %v671, %v683
      %v773 = vunpack.c.l.s4 1983009808
      %v774 = vunpack.c.0.s8 %v773
      %v775 = vlaneseq
      %v776 = vshrl.u32 %v775, 7
      %v777 = vsub.s32 %v774, %v776
      %v778 = vrot.slane %v770, %v777
      %v780 = vunpack.c.l.s4 1983009808
      %v781 = vunpack.c.0.s8 %v780
      %v782 = vlaneseq
      %v783 = vshrl.u32 %v782, 7
      %v784 = vsub.s32 %v781, %v783
      %v785 = vrot.slane %v771, %v784
      %v786 = vcombine.low %v762, %v778
      %v787 = vcombine.high %v762, %v778
      %v789 = vunpack.c.l.s4 1934713408
      %v790 = vunpack.c.0.s8 %v789
      %v791 = vlaneseq
      %v792 = vshrl.u32 %v791, 7
      %v793 = vsub.s32 %v790, %v792
      %v794 = vrot.slane %v786, %v793
      %v796 = vunpack.c.l.s4 1934713408
      %v797 = vunpack.c.0.s8 %v796
      %v798 = vlaneseq
      %v799 = vshrl.u32 %v798, 7
      %v800 = vsub.s32 %v797, %v799
      %v801 = vrot.slane %v787, %v800
      %v802 = vcombine.low %v769, %v785
      %v803 = vcombine.high %v769, %v785
      %v805 = vunpack.c.l.s4 1934713408
      %v806 = vunpack.c.0.s8 %v805
      %v807 = vlaneseq
      %v808 = vshrl.u32 %v807, 7
      %v809 = vsub.s32 %v806, %v808
      %v810 = vrot.slane %v802, %v809
      %v812 = vunpack.c.l.s4 1934713408
      %v813 = vunpack.c.0.s8 %v812
      %v814 = vlaneseq
      %v815 = vshrl.u32 %v814, 7
      %v816 = vsub.s32 %v813, %v815
      %v817 = vrot.slane %v803, %v816
      %v818 = vcombine.high %v794, 0.0
      %v819 = vcombine.high %v801, 0.0
      %v820 = vcombine.high %v810, 0.0
      %v821 = vcombine.high %v817, 0.0
      %v822 = vcombine.low %v726, %v733
      %v824 = vunpack.c.l.s4 1983009808
      %v825 = vunpack.c.0.s8 %v824
      %v826 = vlaneseq
      %v827 = vshrl.u32 %v826, 7
      %v828 = vsub.s32 %v825, %v827
      %v829 = vrot.slane %v822, %v828
      %v830 = vcombine.low %v750, %v751
      %v832 = vunpack.c.l.s4 1983009808
      %v833 = vunpack.c.0.s8 %v832
      %v834 = vlaneseq
      %v835 = vshrl.u32 %v834, 7
      %v836 = vsub.s32 %v833, %v835
      %v837 = vrot.slane %v830, %v836
      %v838 = vcombine.low %v742, %v749
      %v840 = vunpack.c.l.s4 1983009808
      %v841 = vunpack.c.0.s8 %v840
      %v842 = vlaneseq
      %v843 = vshrl.u32 %v842, 7
      %v844 = vsub.s32 %v841, %v843
      %v845 = vrot.slane %v838, %v844
      %v846 = vcombine.low %v752, %v753
      %v848 = vunpack.c.l.s4 1983009808
      %v849 = vunpack.c.0.s8 %v848
      %v850 = vlaneseq
      %v851 = vshrl.u32 %v850, 7
      %v852 = vsub.s32 %v849, %v851
      %v853 = vrot.slane %v846, %v852
      %v854 = vcombine.low %v829, %v837
      %v855 = vcombine.high %v829, %v837
      %v857 = vunpack.c.l.s4 1934713408
      %v858 = vunpack.c.0.s8 %v857
      %v859 = vlaneseq
      %v860 = vshrl.u32 %v859, 7
      %v861 = vsub.s32 %v858, %v860
      %v862 = vrot.slane %v854, %v861
      %v864 = vunpack.c.l.s4 1934713408
      %v865 = vunpack.c.0.s8 %v864
      %v866 = vlaneseq
      %v867 = vshrl.u32 %v866, 7
      %v868 = vsub.s32 %v865, %v867
      %v869 = vrot.slane %v855, %v868
      %v870 = vcombine.low %v845, %v853
      %v871 = vcombine.high %v845, %v853
      %v873 = vunpack.c.l.s4 1934713408
      %v874 = vunpack.c.0.s8 %v873
      %v875 = vlaneseq
      %v876 = vshrl.u32 %v875, 7
      %v877 = vsub.s32 %v874, %v876
      %v878 = vrot.slane %v870, %v877
      %v880 = vunpack.c.l.s4 1934713408
      %v881 = vunpack.c.0.s8 %v880
      %v882 = vlaneseq
      %v883 = vshrl.u32 %v882, 7
      %v884 = vsub.s32 %v881, %v883
      %v885 = vrot.slane %v871, %v884
      %v886 = vcombine.low %v862, %v878
      %v887 = vcombine.high %v862, %v878
      %v888 = vcombine.low %v869, %v885
      %v889 = vcombine.high %v869, %v885
      %v890 = vcombine.low %v794, %v801
      %v892 = vunpack.c.l.s4 1983009808
      %v893 = vunpack.c.0.s8 %v892
      %v894 = vlaneseq
      %v895 = vshrl.u32 %v894, 7
      %v896 = vsub.s32 %v893, %v895
      %v897 = vrot.slane %v890, %v896
      %v898 = vcombine.low %v818, %v819
      %v900 = vunpack.c.l.s4 1983009808
      %v901 = vunpack.c.0.s8 %v900
      %v902 = vlaneseq
      %v903 = vshrl.u32 %v902, 7
      %v904 = vsub.s32 %v901, %v903
      %v905 = vrot.slane %v898, %v904
      %v906 = vcombine.low %v810, %v817
      %v908 = vunpack.c.l.s4 1983009808
      %v909 = vunpack.c.0.s8 %v908
      %v910 = vlaneseq
      %v911 = vshrl.u32 %v910, 7
      %v912 = vsub.s32 %v909, %v911
      %v913 = vrot.slane %v906, %v912
      %v914 = vcombine.low %v820, %v821
      %v916 = vunpack.c.l.s4 1983009808
      %v917 = vunpack.c.0.s8 %v916
      %v918 = vlaneseq
      %v919 = vshrl.u32 %v918, 7
      %v920 = vsub.s32 %v917, %v919
      %v921 = vrot.slane %v914, %v920
      %v922 = vcombine.low %v897, %v905
      %v923 = vcombine.high %v897, %v905
      %v925 = vunpack.c.l.s4 1934713408
      %v926 = vunpack.c.0.s8 %v925
      %v927 = vlaneseq
      %v928 = vshrl.u32 %v927, 7
      %v929 = vsub.s32 %v926, %v928
      %v930 = vrot.slane %v922, %v929
      %v932 = vunpack.c.l.s4 1934713408
      %v933 = vunpack.c.0.s8 %v932
      %v934 = vlaneseq
      %v935 = vshrl.u32 %v934, 7
      %v936 = vsub.s32 %v933, %v935
      %v937 = vrot.slane %v923, %v936
      %v938 = vcombine.low %v913, %v921
      %v939 = vcombine.high %v913, %v921
      %v941 = vunpack.c.l.s4 1934713408
      %v942 = vunpack.c.0.s8 %v941
      %v943 = vlaneseq
      %v944 = vshrl.u32 %v943, 7
      %v945 = vsub.s32 %v942, %v944
      %v946 = vrot.slane %v938, %v945
      %v948 = vunpack.c.l.s4 1934713408
      %v949 = vunpack.c.0.s8 %v948
      %v950 = vlaneseq
      %v951 = vshrl.u32 %v950, 7
      %v952 = vsub.s32 %v949, %v951
      %v953 = vrot.slane %v939, %v952
      %v954 = vcombine.low %v930, %v946
      %v955 = vcombine.high %v930, %v946
      %v956 = vcombine.low %v937, %v953
      %v957 = vcombine.high %v937, %v953
      %v958 = vpack.c.bf16 %v954, %v886
      %v959 = vpack.c.bf16 %v955, %v887
      %v960 = vpack.c.bf16 %v956, %v888
      %v961 = vpack.c.bf16 %v957, %v889
      %964 = vrot.lane.b32.xlu0 %v660, 120
      %v965 = vpop.permute.xlu0 %964
      %966 = vrot.lane.b32.xlu0 %v663, 120
      %v967 = vpop.permute.xlu0 %966
      %970 = vrot.lane.b32.xlu0 %v660, 112
      %v971 = vpop.permute.xlu0 %970
      %972 = vrot.lane.b32.xlu0 %v663, 112
      %v973 = vpop.permute.xlu0 %972
      %976 = vrot.lane.b32.xlu0 %v660, 104
      %v977 = vpop.permute.xlu0 %976
      %978 = vrot.lane.b32.xlu0 %v663, 104
      %v979 = vpop.permute.xlu0 %978
      %v982 = vcombine.low %v660, %v971
      %v983 = vcombine.high %v660, %v971
      %v985 = vunpack.c.l.s4 1983009808
      %v986 = vunpack.c.0.s8 %v985
      %v987 = vlaneseq
      %v988 = vshrl.u32 %v987, 7
      %v989 = vsub.s32 %v986, %v988
      %v990 = vrot.slane %v982, %v989
      %v992 = vunpack.c.l.s4 1983009808
      %v993 = vunpack.c.0.s8 %v992
      %v994 = vlaneseq
      %v995 = vshrl.u32 %v994, 7
      %v996 = vsub.s32 %v993, %v995
      %v997 = vrot.slane %v983, %v996
      %v998 = vcombine.low %v965, %v977
      %v999 = vcombine.high %v965, %v977
      %v1001 = vunpack.c.l.s4 1983009808
      %v1002 = vunpack.c.0.s8 %v1001
      %v1003 = vlaneseq
      %v1004 = vshrl.u32 %v1003, 7
      %v1005 = vsub.s32 %v1002, %v1004
      %v1006 = vrot.slane %v998, %v1005
      %v1008 = vunpack.c.l.s4 1983009808
      %v1009 = vunpack.c.0.s8 %v1008
      %v1010 = vlaneseq
      %v1011 = vshrl.u32 %v1010, 7
      %v1012 = vsub.s32 %v1009, %v1011
      %v1013 = vrot.slane %v999, %v1012
      %v1014 = vcombine.low %v990, %v1006
      %v1015 = vcombine.high %v990, %v1006
      %v1017 = vunpack.c.l.s4 1934713408
      %v1018 = vunpack.c.0.s8 %v1017
      %v1019 = vlaneseq
      %v1020 = vshrl.u32 %v1019, 7
      %v1021 = vsub.s32 %v1018, %v1020
      %v1022 = vrot.slane %v1014, %v1021
      %v1024 = vunpack.c.l.s4 1934713408
      %v1025 = vunpack.c.0.s8 %v1024
      %v1026 = vlaneseq
      %v1027 = vshrl.u32 %v1026, 7
      %v1028 = vsub.s32 %v1025, %v1027
      %v1029 = vrot.slane %v1015, %v1028
      %v1030 = vcombine.low %v997, %v1013
      %v1031 = vcombine.high %v997, %v1013
      %v1033 = vunpack.c.l.s4 1934713408
      %v1034 = vunpack.c.0.s8 %v1033
      %v1035 = vlaneseq
      %v1036 = vshrl.u32 %v1035, 7
      %v1037 = vsub.s32 %v1034, %v1036
      %v1038 = vrot.slane %v1030, %v1037
      %v1040 = vunpack.c.l.s4 1934713408
      %v1041 = vunpack.c.0.s8 %v1040
      %v1042 = vlaneseq
      %v1043 = vshrl.u32 %v1042, 7
      %v1044 = vsub.s32 %v1041, %v1043
      %v1045 = vrot.slane %v1031, %v1044
      %v1046 = vcombine.high %v1022, 0.0
      %v1047 = vcombine.high %v1029, 0.0
      %v1048 = vcombine.high %v1038, 0.0
      %v1049 = vcombine.high %v1045, 0.0
      %v1050 = vcombine.low %v663, %v973
      %v1051 = vcombine.high %v663, %v973
      %v1053 = vunpack.c.l.s4 1983009808
      %v1054 = vunpack.c.0.s8 %v1053
      %v1055 = vlaneseq
      %v1056 = vshrl.u32 %v1055, 7
      %v1057 = vsub.s32 %v1054, %v1056
      %v1058 = vrot.slane %v1050, %v1057
      %v1060 = vunpack.c.l.s4 1983009808
      %v1061 = vunpack.c.0.s8 %v1060
      %v1062 = vlaneseq
      %v1063 = vshrl.u32 %v1062, 7
      %v1064 = vsub.s32 %v1061, %v1063
      %v1065 = vrot.slane %v1051, %v1064
      %v1066 = vcombine.low %v967, %v979
      %v1067 = vcombine.high %v967, %v979
      %v1069 = vunpack.c.l.s4 1983009808
      %v1070 = vunpack.c.0.s8 %v1069
      %v1071 = vlaneseq
      %v1072 = vshrl.u32 %v1071, 7
      %v1073 = vsub.s32 %v1070, %v1072
      %v1074 = vrot.slane %v1066, %v1073
      %v1076 = vunpack.c.l.s4 1983009808
      %v1077 = vunpack.c.0.s8 %v1076
      %v1078 = vlaneseq
      %v1079 = vshrl.u32 %v1078, 7
      %v1080 = vsub.s32 %v1077, %v1079
      %v1081 = vrot.slane %v1067, %v1080
      %v1082 = vcombine.low %v1058, %v1074
      %v1083 = vcombine.high %v1058, %v1074
      %v1085 = vunpack.c.l.s4 1934713408
      %v1086 = vunpack.c.0.s8 %v1085
      %v1087 = vlaneseq
      %v1088 = vshrl.u32 %v1087, 7
      %v1089 = vsub.s32 %v1086, %v1088
      %v1090 = vrot.slane %v1082, %v1089
      %v1092 = vunpack.c.l.s4 1934713408
      %v1093 = vunpack.c.0.s8 %v1092
      %v1094 = vlaneseq
      %v1095 = vshrl.u32 %v1094, 7
      %v1096 = vsub.s32 %v1093, %v1095
      %v1097 = vrot.slane %v1083, %v1096
      %v1098 = vcombine.low %v1065, %v1081
      %v1099 = vcombine.high %v1065, %v1081
      %v1101 = vunpack.c.l.s4 1934713408
      %v1102 = vunpack.c.0.s8 %v1101
      %v1103 = vlaneseq
      %v1104 = vshrl.u32 %v1103, 7
      %v1105 = vsub.s32 %v1102, %v1104
      %v1106 = vrot.slane %v1098, %v1105
      %v1108 = vunpack.c.l.s4 1934713408
      %v1109 = vunpack.c.0.s8 %v1108
      %v1110 = vlaneseq
      %v1111 = vshrl.u32 %v1110, 7
      %v1112 = vsub.s32 %v1109, %v1111
      %v1113 = vrot.slane %v1099, %v1112
      %v1114 = vcombine.high %v1090, 0.0
      %v1115 = vcombine.high %v1097, 0.0
      %v1116 = vcombine.high %v1106, 0.0
      %v1117 = vcombine.high %v1113, 0.0
      %v1118 = vcombine.low %v1022, %v1029
      %v1120 = vunpack.c.l.s4 1983009808
      %v1121 = vunpack.c.0.s8 %v1120
      %v1122 = vlaneseq
      %v1123 = vshrl.u32 %v1122, 7
      %v1124 = vsub.s32 %v1121, %v1123
      %v1125 = vrot.slane %v1118, %v1124
      %v1126 = vcombine.low %v1046, %v1047
      %v1128 = vunpack.c.l.s4 1983009808
      %v1129 = vunpack.c.0.s8 %v1128
      %v1130 = vlaneseq
      %v1131 = vshrl.u32 %v1130, 7
      %v1132 = vsub.s32 %v1129, %v1131
      %v1133 = vrot.slane %v1126, %v1132
      %v1134 = vcombine.low %v1038, %v1045
      %v1136 = vunpack.c.l.s4 1983009808
      %v1137 = vunpack.c.0.s8 %v1136
      %v1138 = vlaneseq
      %v1139 = vshrl.u32 %v1138, 7
      %v1140 = vsub.s32 %v1137, %v1139
      %v1141 = vrot.slane %v1134, %v1140
      %v1142 = vcombine.low %v1048, %v1049
      %v1144 = vunpack.c.l.s4 1983009808
      %v1145 = vunpack.c.0.s8 %v1144
      %v1146 = vlaneseq
      %v1147 = vshrl.u32 %v1146, 7
      %v1148 = vsub.s32 %v1145, %v1147
      %v1149 = vrot.slane %v1142, %v1148
      %v1150 = vcombine.low %v1125, %v1133
      %v1151 = vcombine.high %v1125, %v1133
      %v1153 = vunpack.c.l.s4 1934713408
      %v1154 = vunpack.c.0.s8 %v1153
      %v1155 = vlaneseq
      %v1156 = vshrl.u32 %v1155, 7
      %v1157 = vsub.s32 %v1154, %v1156
      %v1158 = vrot.slane %v1150, %v1157
      %v1160 = vunpack.c.l.s4 1934713408
      %v1161 = vunpack.c.0.s8 %v1160
      %v1162 = vlaneseq
      %v1163 = vshrl.u32 %v1162, 7
      %v1164 = vsub.s32 %v1161, %v1163
      %v1165 = vrot.slane %v1151, %v1164
      %v1166 = vcombine.low %v1141, %v1149
      %v1167 = vcombine.high %v1141, %v1149
      %v1169 = vunpack.c.l.s4 1934713408
      %v1170 = vunpack.c.0.s8 %v1169
      %v1171 = vlaneseq
      %v1172 = vshrl.u32 %v1171, 7
      %v1173 = vsub.s32 %v1170, %v1172
      %v1174 = vrot.slane %v1166, %v1173
      %v1176 = vunpack.c.l.s4 1934713408
      %v1177 = vunpack.c.0.s8 %v1176
      %v1178 = vlaneseq
      %v1179 = vshrl.u32 %v1178, 7
      %v1180 = vsub.s32 %v1177, %v1179
      %v1181 = vrot.slane %v1167, %v1180
      %v1182 = vcombine.low %v1158, %v1174
      %v1183 = vcombine.high %v1158, %v1174
      %v1184 = vcombine.low %v1165, %v1181
      %v1185 = vcombine.high %v1165, %v1181
      %v1186 = vcombine.low %v1090, %v1097
      %v1188 = vunpack.c.l.s4 1983009808
      %v1189 = vunpack.c.0.s8 %v1188
      %v1190 = vlaneseq
      %v1191 = vshrl.u32 %v1190, 7
      %v1192 = vsub.s32 %v1189, %v1191
      %v1193 = vrot.slane %v1186, %v1192
      %v1194 = vcombine.low %v1114, %v1115
      %v1196 = vunpack.c.l.s4 1983009808
      %v1197 = vunpack.c.0.s8 %v1196
      %v1198 = vlaneseq
      %v1199 = vshrl.u32 %v1198, 7
      %v1200 = vsub.s32 %v1197, %v1199
      %v1201 = vrot.slane %v1194, %v1200
      %v1202 = vcombine.low %v1106, %v1113
      %v1204 = vunpack.c.l.s4 1983009808
      %v1205 = vunpack.c.0.s8 %v1204
      %v1206 = vlaneseq
      %v1207 = vshrl.u32 %v1206, 7
      %v1208 = vsub.s32 %v1205, %v1207
      %v1209 = vrot.slane %v1202, %v1208
      %v1210 = vcombine.low %v1116, %v1117
      %v1212 = vunpack.c.l.s4 1983009808
      %v1213 = vunpack.c.0.s8 %v1212
      %v1214 = vlaneseq
      %v1215 = vshrl.u32 %v1214, 7
      %v1216 = vsub.s32 %v1213, %v1215
      %v1217 = vrot.slane %v1210, %v1216
      %v1218 = vcombine.low %v1193, %v1201
      %v1219 = vcombine.high %v1193, %v1201
      %v1221 = vunpack.c.l.s4 1934713408
      %v1222 = vunpack.c.0.s8 %v1221
      %v1223 = vlaneseq
      %v1224 = vshrl.u32 %v1223, 7
      %v1225 = vsub.s32 %v1222, %v1224
      %v1226 = vrot.slane %v1218, %v1225
      %v1228 = vunpack.c.l.s4 1934713408
      %v1229 = vunpack.c.0.s8 %v1228
      %v1230 = vlaneseq
      %v1231 = vshrl.u32 %v1230, 7
      %v1232 = vsub.s32 %v1229, %v1231
      %v1233 = vrot.slane %v1219, %v1232
      %v1234 = vcombine.low %v1209, %v1217
      %v1235 = vcombine.high %v1209, %v1217
      %v1237 = vunpack.c.l.s4 1934713408
      %v1238 = vunpack.c.0.s8 %v1237
      %v1239 = vlaneseq
      %v1240 = vshrl.u32 %v1239, 7
      %v1241 = vsub.s32 %v1238, %v1240
      %v1242 = vrot.slane %v1234, %v1241
      %v1244 = vunpack.c.l.s4 1934713408
      %v1245 = vunpack.c.0.s8 %v1244
      %v1246 = vlaneseq
      %v1247 = vshrl.u32 %v1246, 7
      %v1248 = vsub.s32 %v1245, %v1247
      %v1249 = vrot.slane %v1235, %v1248
      %v1250 = vcombine.low %v1226, %v1242
      %v1251 = vcombine.high %v1226, %v1242
      %v1252 = vcombine.low %v1233, %v1249
      %v1253 = vcombine.high %v1233, %v1249
      %v1254 = vpack.c.bf16 %v1250, %v1182
      %v1255 = vpack.c.bf16 %v1251, %v1183
      %v1256 = vpack.c.bf16 %v1252, %v1184
      %v1257 = vpack.c.bf16 %v1253, %v1185
      %1258 = vrot.lane.b32.xlu0 %v660, 96
      %v1259 = vpop.permute.xlu0 %1258
      %1260 = vrot.lane.b32.xlu0 %v663, 96
      %v1261 = vpop.permute.xlu0 %1260
      %1262 = vrot.lane.b32.xlu0 %v965, 96
      %v1263 = vpop.permute.xlu0 %1262
      %1264 = vrot.lane.b32.xlu0 %v967, 96
      %v1265 = vpop.permute.xlu0 %1264
      %1266 = vrot.lane.b32.xlu0 %v971, 96
      %v1267 = vpop.permute.xlu0 %1266
      %1268 = vrot.lane.b32.xlu0 %v973, 96
      %v1269 = vpop.permute.xlu0 %1268
      %1270 = vrot.lane.b32.xlu0 %v977, 96
      %v1271 = vpop.permute.xlu0 %1270
      %1272 = vrot.lane.b32.xlu0 %v979, 96
      %v1273 = vpop.permute.xlu0 %1272
      %v1282 = vcombine.low %v1259, %v1267
      %v1283 = vcombine.high %v1259, %v1267
      %v1285 = vunpack.c.l.s4 1983009808
      %v1286 = vunpack.c.0.s8 %v1285
      %v1287 = vlaneseq
      %v1288 = vshrl.u32 %v1287, 7
      %v1289 = vsub.s32 %v1286, %v1288
      %v1290 = vrot.slane %v1282, %v1289
      %v1292 = vunpack.c.l.s4 1983009808
      %v1293 = vunpack.c.0.s8 %v1292
      %v1294 = vlaneseq
      %v1295 = vshrl.u32 %v1294, 7
      %v1296 = vsub.s32 %v1293, %v1295
      %v1297 = vrot.slane %v1283, %v1296
      %v1298 = vcombine.low %v1263, %v1271
      %v1299 = vcombine.high %v1263, %v1271
      %v1301 = vunpack.c.l.s4 1983009808
      %v1302 = vunpack.c.0.s8 %v1301
      %v1303 = vlaneseq
      %v1304 = vshrl.u32 %v1303, 7
      %v1305 = vsub.s32 %v1302, %v1304
      %v1306 = vrot.slane %v1298, %v1305
      %v1308 = vunpack.c.l.s4 1983009808
      %v1309 = vunpack.c.0.s8 %v1308
      %v1310 = vlaneseq
      %v1311 = vshrl.u32 %v1310, 7
      %v1312 = vsub.s32 %v1309, %v1311
      %v1313 = vrot.slane %v1299, %v1312
      %v1314 = vcombine.low %v1290, %v1306
      %v1315 = vcombine.high %v1290, %v1306
      %v1317 = vunpack.c.l.s4 1934713408
      %v1318 = vunpack.c.0.s8 %v1317
      %v1319 = vlaneseq
      %v1320 = vshrl.u32 %v1319, 7
      %v1321 = vsub.s32 %v1318, %v1320
      %v1322 = vrot.slane %v1314, %v1321
      %v1324 = vunpack.c.l.s4 1934713408
      %v1325 = vunpack.c.0.s8 %v1324
      %v1326 = vlaneseq
      %v1327 = vshrl.u32 %v1326, 7
      %v1328 = vsub.s32 %v1325, %v1327
      %v1329 = vrot.slane %v1315, %v1328
      %v1330 = vcombine.low %v1297, %v1313
      %v1331 = vcombine.high %v1297, %v1313
      %v1333 = vunpack.c.l.s4 1934713408
      %v1334 = vunpack.c.0.s8 %v1333
      %v1335 = vlaneseq
      %v1336 = vshrl.u32 %v1335, 7
      %v1337 = vsub.s32 %v1334, %v1336
      %v1338 = vrot.slane %v1330, %v1337
      %v1340 = vunpack.c.l.s4 1934713408
      %v1341 = vunpack.c.0.s8 %v1340
      %v1342 = vlaneseq
      %v1343 = vshrl.u32 %v1342, 7
      %v1344 = vsub.s32 %v1341, %v1343
      %v1345 = vrot.slane %v1331, %v1344
      %v1346 = vcombine.high %v1322, 0.0
      %v1347 = vcombine.high %v1329, 0.0
      %v1348 = vcombine.high %v1338, 0.0
      %v1349 = vcombine.high %v1345, 0.0
      %v1350 = vcombine.low %v1261, %v1269
      %v1351 = vcombine.high %v1261, %v1269
      %v1353 = vunpack.c.l.s4 1983009808
      %v1354 = vunpack.c.0.s8 %v1353
      %v1355 = vlaneseq
      %v1356 = vshrl.u32 %v1355, 7
      %v1357 = vsub.s32 %v1354, %v1356
      %v1358 = vrot.slane %v1350, %v1357
      %v1360 = vunpack.c.l.s4 1983009808
      %v1361 = vunpack.c.0.s8 %v1360
      %v1362 = vlaneseq
      %v1363 = vshrl.u32 %v1362, 7
      %v1364 = vsub.s32 %v1361, %v1363
      %v1365 = vrot.slane %v1351, %v1364
      %v1366 = vcombine.low %v1265, %v1273
      %v1367 = vcombine.high %v1265, %v1273
      %v1369 = vunpack.c.l.s4 1983009808
      %v1370 = vunpack.c.0.s8 %v1369
      %v1371 = vlaneseq
      %v1372 = vshrl.u32 %v1371, 7
      %v1373 = vsub.s32 %v1370, %v1372
      %v1374 = vrot.slane %v1366, %v1373
      %v1376 = vunpack.c.l.s4 1983009808
      %v1377 = vunpack.c.0.s8 %v1376
      %v1378 = vlaneseq
      %v1379 = vshrl.u32 %v1378, 7
      %v1380 = vsub.s32 %v1377, %v1379
      %v1381 = vrot.slane %v1367, %v1380
      %v1382 = vcombine.low %v1358, %v1374
      %v1383 = vcombine.high %v1358, %v1374
      %v1385 = vunpack.c.l.s4 1934713408
      %v1386 = vunpack.c.0.s8 %v1385
      %v1387 = vlaneseq
      %v1388 = vshrl.u32 %v1387, 7
      %v1389 = vsub.s32 %v1386, %v1388
      %v1390 = vrot.slane %v1382, %v1389
      %v1392 = vunpack.c.l.s4 1934713408
      %v1393 = vunpack.c.0.s8 %v1392
      %v1394 = vlaneseq
      %v1395 = vshrl.u32 %v1394, 7
      %v1396 = vsub.s32 %v1393, %v1395
      %v1397 = vrot.slane %v1383, %v1396
      %v1398 = vcombine.low %v1365, %v1381
      %v1399 = vcombine.high %v1365, %v1381
      %v1401 = vunpack.c.l.s4 1934713408
      %v1402 = vunpack.c.0.s8 %v1401
      %v1403 = vlaneseq
      %v1404 = vshrl.u32 %v1403, 7
      %v1405 = vsub.s32 %v1402, %v1404
      %v1406 = vrot.slane %v1398, %v1405
      %v1408 = vunpack.c.l.s4 1934713408
      %v1409 = vunpack.c.0.s8 %v1408
      %v1410 = vlaneseq
      %v1411 = vshrl.u32 %v1410, 7
      %v1412 = vsub.s32 %v1409, %v1411
      %v1413 = vrot.slane %v1399, %v1412
      %v1414 = vcombine.high %v1390, 0.0
      %v1415 = vcombine.high %v1397, 0.0
      %v1416 = vcombine.high %v1406, 0.0
      %v1417 = vcombine.high %v1413, 0.0
      %v1418 = vcombine.low %v1322, %v1329
      %v1420 = vunpack.c.l.s4 1983009808
      %v1421 = vunpack.c.0.s8 %v1420
      %v1422 = vlaneseq
      %v1423 = vshrl.u32 %v1422, 7
      %v1424 = vsub.s32 %v1421, %v1423
      %v1425 = vrot.slane %v1418, %v1424
      %v1426 = vcombine.low %v1346, %v1347
      %v1428 = vunpack.c.l.s4 1983009808
      %v1429 = vunpack.c.0.s8 %v1428
      %v1430 = vlaneseq
      %v1431 = vshrl.u32 %v1430, 7
      %v1432 = vsub.s32 %v1429, %v1431
      %v1433 = vrot.slane %v1426, %v1432
      %v1434 = vcombine.low %v1338, %v1345
      %v1436 = vunpack.c.l.s4 1983009808
      %v1437 = vunpack.c.0.s8 %v1436
      %v1438 = vlaneseq
      %v1439 = vshrl.u32 %v1438, 7
      %v1440 = vsub.s32 %v1437, %v1439
      %v1441 = vrot.slane %v1434, %v1440
      %v1442 = vcombine.low %v1348, %v1349
      %v1444 = vunpack.c.l.s4 1983009808
      %v1445 = vunpack.c.0.s8 %v1444
      %v1446 = vlaneseq
      %v1447 = vshrl.u32 %v1446, 7
      %v1448 = vsub.s32 %v1445, %v1447
      %v1449 = vrot.slane %v1442, %v1448
      %v1450 = vcombine.low %v1425, %v1433
      %v1451 = vcombine.high %v1425, %v1433
      %v1453 = vunpack.c.l.s4 1934713408
      %v1454 = vunpack.c.0.s8 %v1453
      %v1455 = vlaneseq
      %v1456 = vshrl.u32 %v1455, 7
      %v1457 = vsub.s32 %v1454, %v1456
      %v1458 = vrot.slane %v1450, %v1457
      %v1460 = vunpack.c.l.s4 1934713408
      %v1461 = vunpack.c.0.s8 %v1460
      %v1462 = vlaneseq
      %v1463 = vshrl.u32 %v1462, 7
      %v1464 = vsub.s32 %v1461, %v1463
      %v1465 = vrot.slane %v1451, %v1464
      %v1466 = vcombine.low %v1441, %v1449
      %v1467 = vcombine.high %v1441, %v1449
      %v1469 = vunpack.c.l.s4 1934713408
      %v1470 = vunpack.c.0.s8 %v1469
      %v1471 = vlaneseq
      %v1472 = vshrl.u32 %v1471, 7
      %v1473 = vsub.s32 %v1470, %v1472
      %v1474 = vrot.slane %v1466, %v1473
      %v1476 = vunpack.c.l.s4 1934713408
      %v1477 = vunpack.c.0.s8 %v1476
      %v1478 = vlaneseq
      %v1479 = vshrl.u32 %v1478, 7
      %v1480 = vsub.s32 %v1477, %v1479
      %v1481 = vrot.slane %v1467, %v1480
      %v1482 = vcombine.low %v1458, %v1474
      %v1483 = vcombine.high %v1458, %v1474
      %v1484 = vcombine.low %v1465, %v1481
      %v1485 = vcombine.high %v1465, %v1481
      %v1486 = vcombine.low %v1390, %v1397
      %v1488 = vunpack.c.l.s4 1983009808
      %v1489 = vunpack.c.0.s8 %v1488
      %v1490 = vlaneseq
      %v1491 = vshrl.u32 %v1490, 7
      %v1492 = vsub.s32 %v1489, %v1491
      %v1493 = vrot.slane %v1486, %v1492
      %v1494 = vcombine.low %v1414, %v1415
      %v1496 = vunpack.c.l.s4 1983009808
      %v1497 = vunpack.c.0.s8 %v1496
      %v1498 = vlaneseq
      %v1499 = vshrl.u32 %v1498, 7
      %v1500 = vsub.s32 %v1497, %v1499
      %v1501 = vrot.slane %v1494, %v1500
      %v1502 = vcombine.low %v1406, %v1413
      %v1504 = vunpack.c.l.s4 1983009808
      %v1505 = vunpack.c.0.s8 %v1504
      %v1506 = vlaneseq
      %v1507 = vshrl.u32 %v1506, 7
      %v1508 = vsub.s32 %v1505, %v1507
      %v1509 = vrot.slane %v1502, %v1508
      %v1510 = vcombine.low %v1416, %v1417
      %v1512 = vunpack.c.l.s4 1983009808
      %v1513 = vunpack.c.0.s8 %v1512
      %v1514 = vlaneseq
      %v1515 = vshrl.u32 %v1514, 7
      %v1516 = vsub.s32 %v1513, %v1515
      %v1517 = vrot.slane %v1510, %v1516
      %v1518 = vcombine.low %v1493, %v1501
      %v1519 = vcombine.high %v1493, %v1501
      %v1521 = vunpack.c.l.s4 1934713408
      %v1522 = vunpack.c.0.s8 %v1521
      %v1523 = vlaneseq
      %v1524 = vshrl.u32 %v1523, 7
      %v1525 = vsub.s32 %v1522, %v1524
      %v1526 = vrot.slane %v1518, %v1525
      %v1528 = vunpack.c.l.s4 1934713408
      %v1529 = vunpack.c.0.s8 %v1528
      %v1530 = vlaneseq
      %v1531 = vshrl.u32 %v1530, 7
      %v1532 = vsub.s32 %v1529, %v1531
      %v1533 = vrot.slane %v1519, %v1532
      %v1534 = vcombine.low %v1509, %v1517
      %v1535 = vcombine.high %v1509, %v1517
      %v1537 = vunpack.c.l.s4 1934713408
      %v1538 = vunpack.c.0.s8 %v1537
      %v1539 = vlaneseq
      %v1540 = vshrl.u32 %v1539, 7
      %v1541 = vsub.s32 %v1538, %v1540
      %v1542 = vrot.slane %v1534, %v1541
      %v1544 = vunpack.c.l.s4 1934713408
      %v1545 = vunpack.c.0.s8 %v1544
      %v1546 = vlaneseq
      %v1547 = vshrl.u32 %v1546, 7
      %v1548 = vsub.s32 %v1545, %v1547
      %v1549 = vrot.slane %v1535, %v1548
      %v1550 = vcombine.low %v1526, %v1542
      %v1551 = vcombine.high %v1526, %v1542
      %v1552 = vcombine.low %v1533, %v1549
      %v1553 = vcombine.high %v1533, %v1549
      %v1554 = vpack.c.bf16 %v1550, %v1482
      %v1555 = vpack.c.bf16 %v1551, %v1483
      %v1556 = vpack.c.bf16 %v1552, %v1484
      %v1557 = vpack.c.bf16 %v1553, %v1485
      %v1558 = vld [vmem:[%s514] sm:$0xf]
      %v1559 = vld [vmem:[%s514 + $0x4] sm:$0xf]
      %v1560 = vunpack.c.l.bf16 %v1558
      %v1561 = vunpack.c.l.bf16 %v1559
      %vm1562 = vcmask 64512
      %v1564 = vsel %vm1562, %v958, 0
      %v1567 = vsel %vm1562, %v1254, 0
      %1569 = vmatprep.subr.bf16.mxu0 0
      %1570 = vmatpush1.bf16.xpose.msra.mxu0 0
      %1571 = vmatprep.subr.bf16.mxu0 0
      %1572 = vmatpush1.bf16.xpose.msra.mxu0 0
      %1573 = vmatprep.subr.bf16.mxu0 0
      %1574 = vmatpush1.bf16.xpose.msra.mxu0 0
      %1575 = vmatprep.subr.bf16.mxu0 0
      %1576 = vmatpush1.bf16.xpose.msra.mxu0 0
      %1577 = vmatprep.subr.bf16.mxu0 0
      %1578 = vmatpush1.bf16.xpose.msra.mxu0 0
      %1579 = vmatprep.subr.bf16.mxu0 0
      %1580 = vmatpush1.bf16.xpose.msra.mxu0 0
      %1581 = vmatprep.subr.bf16.mxu0 0
      %1582 = vmatpush1.bf16.xpose.msra.mxu0 0
      %1583 = vmatprep.subr.bf16.mxu0 0
      %1584 = vmatpush1.bf16.xpose.msra.mxu0 %v1567
      %1585 = vmatprep.subr.bf16.mxu0 0
      %1586 = vmatpush2.bf16.xpose.msra.mxu0 0
      %1587 = vmatprep.subr.bf16.mxu0 0
      %1588 = vmatpush2.bf16.xpose.msra.mxu0 0
      %1589 = vmatprep.subr.bf16.mxu0 0
      %1590 = vmatpush2.bf16.xpose.msra.mxu0 0
      %1591 = vmatprep.subr.bf16.mxu0 0
      %1592 = vmatpush2.bf16.xpose.msra.mxu0 0
      %1593 = vmatprep.subr.bf16.mxu0 0
      %1594 = vmatpush2.bf16.xpose.msra.mxu0 0
      %1595 = vmatprep.subr.bf16.mxu0 0
      %1596 = vmatpush2.bf16.xpose.msra.mxu0 0
      %1597 = vmatprep.subr.bf16.mxu0 0
      %1598 = vmatpush2.bf16.xpose.msra.mxu0 0
      %1599 = vmatprep.subr.bf16.mxu0 0
      %1600 = vmatpush2.bf16.xpose.msra.mxu0 0
      %1601 = vmatprep.mubr.bf16.mxu0 0
      %1602 = vmatmul.mubr.bf16.gmra.mxu0 %v1564
      %v1603 = vpop.f32.mrf.mxu0
      %v1604 = vadd.f32 %v1560, %v1603
      %v1605 = vpop.f32.mrf.mxu0
      %v1606 = vpop.f32.mrf.mxu0
      %v1607 = vadd.f32 %v1561, %v1606
      %v1608 = vpop.f32.mrf.mxu0
      %1609 = vdwg.mxu0
      %v1611 = vsel %vm1562, %v959, 0
      %v1614 = vsel %vm1562, %v1255, 0
      %1616 = vmatprep.subr.bf16.mxu0 0
      %1617 = vmatpush1.bf16.xpose.msra.mxu0 0
      %1618 = vmatprep.subr.bf16.mxu0 0
      %1619 = vmatpush1.bf16.xpose.msra.mxu0 0
      %1620 = vmatprep.subr.bf16.mxu0 0
      %1621 = vmatpush1.bf16.xpose.msra.mxu0 0
      %1622 = vmatprep.subr.bf16.mxu0 0
      %1623 = vmatpush1.bf16.xpose.msra.mxu0 0
      %1624 = vmatprep.subr.bf16.mxu0 0
      %1625 = vmatpush1.bf16.xpose.msra.mxu0 0
      %1626 = vmatprep.subr.bf16.mxu0 0
      %1627 = vmatpush1.bf16.xpose.msra.mxu0 0
      %1628 = vmatprep.subr.bf16.mxu0 0
      %1629 = vmatpush1.bf16.xpose.msra.mxu0 0
      %1630 = vmatprep.subr.bf16.mxu0 0
      %1631 = vmatpush1.bf16.xpose.msra.mxu0 %v1614
      %1632 = vmatprep.subr.bf16.mxu0 0
      %1633 = vmatpush2.bf16.xpose.msra.mxu0 0
      %1634 = vmatprep.subr.bf16.mxu0 0
      %1635 = vmatpush2.bf16.xpose.msra.mxu0 0
      %1636 = vmatprep.subr.bf16.mxu0 0
      %1637 = vmatpush2.bf16.xpose.msra.mxu0 0
      %1638 = vmatprep.subr.bf16.mxu0 0
      %1639 = vmatpush2.bf16.xpose.msra.mxu0 0
      %1640 = vmatprep.subr.bf16.mxu0 0
      %1641 = vmatpush2.bf16.xpose.msra.mxu0 0
      %1642 = vmatprep.subr.bf16.mxu0 0
      %1643 = vmatpush2.bf16.xpose.msra.mxu0 0
      %1644 = vmatprep.subr.bf16.mxu0 0
      %1645 = vmatpush2.bf16.xpose.msra.mxu0 0
      %1646 = vmatprep.subr.bf16.mxu0 0
      %1647 = vmatpush2.bf16.xpose.msra.mxu0 0
      %1648 = vmatprep.mubr.bf16.mxu0 0
      %1649 = vmatmul.mubr.bf16.gmra.mxu0 %v1611
      %v1650 = vpop.f32.mrf.mxu0
      %v1651 = vadd.f32 %v1560, %v1650
      %v1652 = vpop.f32.mrf.mxu0
      %v1653 = vpop.f32.mrf.mxu0
      %v1654 = vadd.f32 %v1561, %v1653
      %v1655 = vpop.f32.mrf.mxu0
      %1656 = vdwg.mxu0
      %v1658 = vsel %vm1562, %v960, 0
      %v1661 = vsel %vm1562, %v1256, 0
      %1663 = vmatprep.subr.bf16.mxu0 0
      %1664 = vmatpush1.bf16.xpose.msra.mxu0 0
      %1665 = vmatprep.subr.bf16.mxu0 0
      %1666 = vmatpush1.bf16.xpose.msra.mxu0 0
      %1667 = vmatprep.subr.bf16.mxu0 0
      %1668 = vmatpush1.bf16.xpose.msra.mxu0 0
      %1669 = vmatprep.subr.bf16.mxu0 0
      %1670 = vmatpush1.bf16.xpose.msra.mxu0 0
      %1671 = vmatprep.subr.bf16.mxu0 0
      %1672 = vmatpush1.bf16.xpose.msra.mxu0 0
      %1673 = vmatprep.subr.bf16.mxu0 0
      %1674 = vmatpush1.bf16.xpose.msra.mxu0 0
      %1675 = vmatprep.subr.bf16.mxu0 0
      %1676 = vmatpush1.bf16.xpose.msra.mxu0 0
      %1677 = vmatprep.subr.bf16.mxu0 0
      %1678 = vmatpush1.bf16.xpose.msra.mxu0 %v1661
      %1679 = vmatprep.subr.bf16.mxu0 0
      %1680 = vmatpush2.bf16.xpose.msra.mxu0 0
      %1681 = vmatprep.subr.bf16.mxu0 0
      %1682 = vmatpush2.bf16.xpose.msra.mxu0 0
      %1683 = vmatprep.subr.bf16.mxu0 0
      %1684 = vmatpush2.bf16.xpose.msra.mxu0 0
      %1685 = vmatprep.subr.bf16.mxu0 0
      %1686 = vmatpush2.bf16.xpose.msra.mxu0 0
      %1687 = vmatprep.subr.bf16.mxu0 0
      %1688 = vmatpush2.bf16.xpose.msra.mxu0 0
      %1689 = vmatprep.subr.bf16.mxu0 0
      %1690 = vmatpush2.bf16.xpose.msra.mxu0 0
      %1691 = vmatprep.subr.bf16.mxu0 0
      %1692 = vmatpush2.bf16.xpose.msra.mxu0 0
      %1693 = vmatprep.subr.bf16.mxu0 0
      %1694 = vmatpush2.bf16.xpose.msra.mxu0 0
      %1695 = vmatprep.mubr.bf16.mxu0 0
      %1696 = vmatmul.mubr.bf16.gmra.mxu0 %v1658
      %v1697 = vpop.f32.mrf.mxu0
      %v1698 = vadd.f32 %v1560, %v1697
      %v1699 = vpop.f32.mrf.mxu0
      %v1700 = vpop.f32.mrf.mxu0
      %v1701 = vadd.f32 %v1561, %v1700
      %v1702 = vpop.f32.mrf.mxu0
      %1703 = vdwg.mxu0
      %v1705 = vsel %vm1562, %v961, 0
      %v1708 = vsel %vm1562, %v1257, 0
      %1710 = vmatprep.subr.bf16.mxu0 0
      %1711 = vmatpush1.bf16.xpose.msra.mxu0 0
      %1712 = vmatprep.subr.bf16.mxu0 0
      %1713 = vmatpush1.bf16.xpose.msra.mxu0 0
      %1714 = vmatprep.subr.bf16.mxu0 0
      %1715 = vmatpush1.bf16.xpose.msra.mxu0 0
      %1716 = vmatprep.subr.bf16.mxu0 0
      %1717 = vmatpush1.bf16.xpose.msra.mxu0 0
      %1718 = vmatprep.subr.bf16.mxu0 0
      %1719 = vmatpush1.bf16.xpose.msra.mxu0 0
      %1720 = vmatprep.subr.bf16.mxu0 0
      %1721 = vmatpush1.bf16.xpose.msra.mxu0 0
      %1722 = vmatprep.subr.bf16.mxu0 0
      %1723 = vmatpush1.bf16.xpose.msra.mxu0 0
      %1724 = vmatprep.subr.bf16.mxu0 0
      %1725 = vmatpush1.bf16.xpose.msra.mxu0 %v1708
      %1726 = vmatprep.subr.bf16.mxu0 0
      %1727 = vmatpush2.bf16.xpose.msra.mxu0 0
      %1728 = vmatprep.subr.bf16.mxu0 0
      %1729 = vmatpush2.bf16.xpose.msra.mxu0 0
      %1730 = vmatprep.subr.bf16.mxu0 0
      %1731 = vmatpush2.bf16.xpose.msra.mxu0 0
      %1732 = vmatprep.subr.bf16.mxu0 0
      %1733 = vmatpush2.bf16.xpose.msra.mxu0 0
      %1734 = vmatprep.subr.bf16.mxu0 0
      %1735 = vmatpush2.bf16.xpose.msra.mxu0 0
      %1736 = vmatprep.subr.bf16.mxu0 0
      %1737 = vmatpush2.bf16.xpose.msra.mxu0 0
      %1738 = vmatprep.subr.bf16.mxu0 0
      %1739 = vmatpush2.bf16.xpose.msra.mxu0 0
      %1740 = vmatprep.subr.bf16.mxu0 0
      %1741 = vmatpush2.bf16.xpose.msra.mxu0 0
      %1742 = vmatprep.mubr.bf16.mxu0 0
      %1743 = vmatmul.mubr.bf16.gmra.mxu0 %v1705
      %v1744 = vpop.f32.mrf.mxu0
      %v1745 = vadd.f32 %v1560, %v1744
      %v1746 = vpop.f32.mrf.mxu0
      %v1747 = vpop.f32.mrf.mxu0
      %v1748 = vadd.f32 %v1561, %v1747
      %v1749 = vpop.f32.mrf.mxu0
      %1750 = vdwg.mxu0
      %vm1751 = vcmask 130048
      %v1752 = vsel %vm1751, %v1604, -inf
      %1753 = vmax.xlane.f32.xlu0 %v1752
      %v1754 = vpop.xlane.xlu0 %1753
      %v1755 = vsel %vm1751, %v1607, -inf
      %1756 = vmax.xlane.f32.xlu0 %v1755
      %v1757 = vpop.xlane.xlu0 %1756
      %v1758 = vsel %vm1751, %v1651, -inf
      %1759 = vmax.xlane.f32.xlu0 %v1758
      %v1760 = vpop.xlane.xlu0 %1759
      %v1761 = vsel %vm1751, %v1654, -inf
      %1762 = vmax.xlane.f32.xlu0 %v1761
      %v1763 = vpop.xlane.xlu0 %1762
      %v1764 = vsel %vm1751, %v1698, -inf
      %1765 = vmax.xlane.f32.xlu0 %v1764
      %v1766 = vpop.xlane.xlu0 %1765
      %v1767 = vsel %vm1751, %v1701, -inf
      %1768 = vmax.xlane.f32.xlu0 %v1767
      %v1769 = vpop.xlane.xlu0 %1768
      %v1770 = vsel %vm1751, %v1745, -inf
      %1771 = vmax.xlane.f32.xlu0 %v1770
      %v1772 = vpop.xlane.xlu0 %1771
      %v1773 = vsel %vm1751, %v1748, -inf
      %1774 = vmax.xlane.f32.xlu0 %v1773
      %v1775 = vpop.xlane.xlu0 %1774
      %v1776 = vsub.f32 %v1604, %v1754
      %v1777 = vsub.f32 %v1607, %v1757
      %v1778 = vsub.f32 %v1651, %v1760
      %v1779 = vsub.f32 %v1654, %v1763
      %v1780 = vsub.f32 %v1698, %v1766
      %v1781 = vsub.f32 %v1701, %v1769
      %v1782 = vsub.f32 %v1745, %v1772
      %v1783 = vsub.f32 %v1748, %v1775
      %v1784 = vmul.f32 %v1776, 1.442695
      %v1785 = vpow.pop %v1784
      %v1786 = vmul.f32 %v1777, 1.442695
      %v1787 = vpow.pop %v1786
      %v1788 = vmul.f32 %v1778, 1.442695
      %v1789 = vpow.pop %v1788
      %v1790 = vmul.f32 %v1779, 1.442695
      %v1791 = vpow.pop %v1790
      %v1792 = vmul.f32 %v1780, 1.442695
      %v1793 = vpow.pop %v1792
      %v1794 = vmul.f32 %v1781, 1.442695
      %v1795 = vpow.pop %v1794
      %v1796 = vmul.f32 %v1782, 1.442695
      %v1797 = vpow.pop %v1796
      %v1798 = vmul.f32 %v1783, 1.442695
      %v1799 = vpow.pop %v1798
      %v1800 = vsel %vm1751, %v1785, 0.0
      %1801 = vadd.xlane.f32.xlu0 %v1800
      %v1802 = vpop.xlane.xlu0 %1801
      %v1803 = vsel %vm1751, %v1787, 0.0
      %1804 = vadd.xlane.f32.xlu0 %v1803
      %v1805 = vpop.xlane.xlu0 %1804
      %v1806 = vsel %vm1751, %v1789, 0.0
      %1807 = vadd.xlane.f32.xlu0 %v1806
      %v1808 = vpop.xlane.xlu0 %1807
      %v1809 = vsel %vm1751, %v1791, 0.0
      %1810 = vadd.xlane.f32.xlu0 %v1809
      %v1811 = vpop.xlane.xlu0 %1810
      %v1812 = vsel %vm1751, %v1793, 0.0
      %1813 = vadd.xlane.f32.xlu0 %v1812
      %v1814 = vpop.xlane.xlu0 %1813
      %v1815 = vsel %vm1751, %v1795, 0.0
      %1816 = vadd.xlane.f32.xlu0 %v1815
      %v1817 = vpop.xlane.xlu0 %1816
      %v1818 = vsel %vm1751, %v1797, 0.0
      %1819 = vadd.xlane.f32.xlu0 %v1818
      %v1820 = vpop.xlane.xlu0 %1819
      %v1821 = vsel %vm1751, %v1799, 0.0
      %1822 = vadd.xlane.f32.xlu0 %v1821
      %v1823 = vpop.xlane.xlu0 %1822
      %v1824 = vrcp.pop %v1802
      %v1825 = vrcp.pop %v1805
      %v1826 = vrcp.pop %v1808
      %v1827 = vrcp.pop %v1811
      %v1828 = vrcp.pop %v1814
      %v1829 = vrcp.pop %v1817
      %v1830 = vrcp.pop %v1820
      %v1831 = vrcp.pop %v1823
      %v1832 = vmul.f32 %v1785, %v1824
      %v1833 = vmul.f32 %v1787, %v1825
      %v1834 = vmul.f32 %v1789, %v1826
      %v1835 = vmul.f32 %v1791, %v1827
      %v1836 = vmul.f32 %v1793, %v1828
      %v1837 = vmul.f32 %v1795, %v1829
      %v1838 = vmul.f32 %v1797, %v1830
      %v1839 = vmul.f32 %v1799, %v1831
      %v1840 = vpack.c.bf16 %v1833, %v1832
      %v1841 = vpack.c.bf16 %v1835, %v1834
      %v1842 = vpack.c.bf16 %v1837, %v1836
      %v1843 = vpack.c.bf16 %v1839, %v1838
      %v1845 = vsel %vm1751, %v1840, 0
      %1847 = vmatprep.subr.bf16.mxu0 0
      %1848 = vmatpush1.bf16.msra.mxu0 0
      %1849 = vmatprep.subr.bf16.mxu0 0
      %1850 = vmatpush1.bf16.msra.mxu0 0
      %1851 = vmatprep.subr.bf16.mxu0 0
      %1852 = vmatpush1.bf16.msra.mxu0 0
      %1853 = vmatprep.subr.bf16.mxu0 0
      %1854 = vmatpush1.bf16.msra.mxu0 0
      %1855 = vmatprep.subr.bf16.mxu0 0
      %1856 = vmatpush1.bf16.msra.mxu0 0
      %1857 = vmatprep.subr.bf16.mxu0 0
      %1858 = vmatpush1.bf16.msra.mxu0 0
      %1859 = vmatprep.subr.bf16.mxu0 0
      %1860 = vmatpush1.bf16.msra.mxu0 0
      %1861 = vmatprep.subr.bf16.mxu0 0
      %1862 = vmatpush1.bf16.msra.mxu0 %v1554
      %1863 = vmatprep.subr.bf16.mxu0 0
      %1864 = vmatpush2.bf16.msra.mxu0 0
      %1865 = vmatprep.subr.bf16.mxu0 0
      %1866 = vmatpush2.bf16.msra.mxu0 0
      %1867 = vmatprep.subr.bf16.mxu0 0
      %1868 = vmatpush2.bf16.msra.mxu0 0
      %1869 = vmatprep.subr.bf16.mxu0 0
      %1870 = vmatpush2.bf16.msra.mxu0 0
      %1871 = vmatprep.subr.bf16.mxu0 0
      %1872 = vmatpush2.bf16.msra.mxu0 0
      %1873 = vmatprep.subr.bf16.mxu0 0
      %1874 = vmatpush2.bf16.msra.mxu0 0
      %1875 = vmatprep.subr.bf16.mxu0 0
      %1876 = vmatpush2.bf16.msra.mxu0 0
      %1877 = vmatprep.subr.bf16.mxu0 0
      %1878 = vmatpush2.bf16.msra.mxu0 0
      %1879 = vmatprep.mubr.bf16.mxu0 0
      %1880 = vmatmul.mubr.bf16.gmra.mxu0 %v1845
      %v1881 = vpop.f32.mrf.mxu0
      %v1882 = vadd.f32 0.0, %v1881
      %v1883 = vpop.f32.mrf.mxu0
      %v1884 = vpop.f32.mrf.mxu0
      %v1885 = vadd.f32 0.0, %v1884
      %v1886 = vpop.f32.mrf.mxu0
      %1887 = vdwg.mxu0
      %v1889 = vsel %vm1751, %v1841, 0
      %1891 = vmatprep.subr.bf16.mxu0 0
      %1892 = vmatpush1.bf16.msra.mxu0 0
      %1893 = vmatprep.subr.bf16.mxu0 0
      %1894 = vmatpush1.bf16.msra.mxu0 0
      %1895 = vmatprep.subr.bf16.mxu0 0
      %1896 = vmatpush1.bf16.msra.mxu0 0
      %1897 = vmatprep.subr.bf16.mxu0 0
      %1898 = vmatpush1.bf16.msra.mxu0 0
      %1899 = vmatprep.subr.bf16.mxu0 0
      %1900 = vmatpush1.bf16.msra.mxu0 0
      %1901 = vmatprep.subr.bf16.mxu0 0
      %1902 = vmatpush1.bf16.msra.mxu0 0
      %1903 = vmatprep.subr.bf16.mxu0 0
      %1904 = vmatpush1.bf16.msra.mxu0 0
      %1905 = vmatprep.subr.bf16.mxu0 0
      %1906 = vmatpush1.bf16.msra.mxu0 %v1555
      %1907 = vmatprep.subr.bf16.mxu0 0
      %1908 = vmatpush2.bf16.msra.mxu0 0
      %1909 = vmatprep.subr.bf16.mxu0 0
      %1910 = vmatpush2.bf16.msra.mxu0 0
      %1911 = vmatprep.subr.bf16.mxu0 0
      %1912 = vmatpush2.bf16.msra.mxu0 0
      %1913 = vmatprep.subr.bf16.mxu0 0
      %1914 = vmatpush2.bf16.msra.mxu0 0
      %1915 = vmatprep.subr.bf16.mxu0 0
      %1916 = vmatpush2.bf16.msra.mxu0 0
      %1917 = vmatprep.subr.bf16.mxu0 0
      %1918 = vmatpush2.bf16.msra.mxu0 0
      %1919 = vmatprep.subr.bf16.mxu0 0
      %1920 = vmatpush2.bf16.msra.mxu0 0
      %1921 = vmatprep.subr.bf16.mxu0 0
      %1922 = vmatpush2.bf16.msra.mxu0 0
      %1923 = vmatprep.mubr.bf16.mxu0 0
      %1924 = vmatmul.mubr.bf16.gmra.mxu0 %v1889
      %v1925 = vpop.f32.mrf.mxu0
      %v1926 = vadd.f32 0.0, %v1925
      %v1927 = vpop.f32.mrf.mxu0
      %v1928 = vpop.f32.mrf.mxu0
      %v1929 = vadd.f32 0.0, %v1928
      %v1930 = vpop.f32.mrf.mxu0
      %1931 = vdwg.mxu0
      %v1933 = vsel %vm1751, %v1842, 0
      %1935 = vmatprep.subr.bf16.mxu0 0
      %1936 = vmatpush1.bf16.msra.mxu0 0
      %1937 = vmatprep.subr.bf16.mxu0 0
      %1938 = vmatpush1.bf16.msra.mxu0 0
      %1939 = vmatprep.subr.bf16.mxu0 0
      %1940 = vmatpush1.bf16.msra.mxu0 0
      %1941 = vmatprep.subr.bf16.mxu0 0
      %1942 = vmatpush1.bf16.msra.mxu0 0
      %1943 = vmatprep.subr.bf16.mxu0 0
      %1944 = vmatpush1.bf16.msra.mxu0 0
      %1945 = vmatprep.subr.bf16.mxu0 0
      %1946 = vmatpush1.bf16.msra.mxu0 0
      %1947 = vmatprep.subr.bf16.mxu0 0
      %1948 = vmatpush1.bf16.msra.mxu0 0
      %1949 = vmatprep.subr.bf16.mxu0 0
      %1950 = vmatpush1.bf16.msra.mxu0 %v1556
      %1951 = vmatprep.subr.bf16.mxu0 0
      %1952 = vmatpush2.bf16.msra.mxu0 0
      %1953 = vmatprep.subr.bf16.mxu0 0
      %1954 = vmatpush2.bf16.msra.mxu0 0
      %1955 = vmatprep.subr.bf16.mxu0 0
      %1956 = vmatpush2.bf16.msra.mxu0 0
      %1957 = vmatprep.subr.bf16.mxu0 0
      %1958 = vmatpush2.bf16.msra.mxu0 0
      %1959 = vmatprep.subr.bf16.mxu0 0
      %1960 = vmatpush2.bf16.msra.mxu0 0
      %1961 = vmatprep.subr.bf16.mxu0 0
      %1962 = vmatpush2.bf16.msra.mxu0 0
      %1963 = vmatprep.subr.bf16.mxu0 0
      %1964 = vmatpush2.bf16.msra.mxu0 0
      %1965 = vmatprep.subr.bf16.mxu0 0
      %1966 = vmatpush2.bf16.msra.mxu0 0
      %1967 = vmatprep.mubr.bf16.mxu0 0
      %1968 = vmatmul.mubr.bf16.gmra.mxu0 %v1933
      %v1969 = vpop.f32.mrf.mxu0
      %v1970 = vadd.f32 0.0, %v1969
      %v1971 = vpop.f32.mrf.mxu0
      %v1972 = vpop.f32.mrf.mxu0
      %v1973 = vadd.f32 0.0, %v1972
      %v1974 = vpop.f32.mrf.mxu0
      %1975 = vdwg.mxu0
      %v1977 = vsel %vm1751, %v1843, 0
      %1979 = vmatprep.subr.bf16.mxu0 0
      %1980 = vmatpush1.bf16.msra.mxu0 0
      %1981 = vmatprep.subr.bf16.mxu0 0
      %1982 = vmatpush1.bf16.msra.mxu0 0
      %1983 = vmatprep.subr.bf16.mxu0 0
      %1984 = vmatpush1.bf16.msra.mxu0 0
      %1985 = vmatprep.subr.bf16.mxu0 0
      %1986 = vmatpush1.bf16.msra.mxu0 0
      %1987 = vmatprep.subr.bf16.mxu0 0
      %1988 = vmatpush1.bf16.msra.mxu0 0
      %1989 = vmatprep.subr.bf16.mxu0 0
      %1990 = vmatpush1.bf16.msra.mxu0 0
      %1991 = vmatprep.subr.bf16.mxu0 0
      %1992 = vmatpush1.bf16.msra.mxu0 0
      %1993 = vmatprep.subr.bf16.mxu0 0
      %1994 = vmatpush1.bf16.msra.mxu0 %v1557
      %1995 = vmatprep.subr.bf16.mxu0 0
      %1996 = vmatpush2.bf16.msra.mxu0 0
      %1997 = vmatprep.subr.bf16.mxu0 0
      %1998 = vmatpush2.bf16.msra.mxu0 0
      %1999 = vmatprep.subr.bf16.mxu0 0
      %2000 = vmatpush2.bf16.msra.mxu0 0
      %2001 = vmatprep.subr.bf16.mxu0 0
      %2002 = vmatpush2.bf16.msra.mxu0 0
      %2003 = vmatprep.subr.bf16.mxu0 0
      %2004 = vmatpush2.bf16.msra.mxu0 0
      %2005 = vmatprep.subr.bf16.mxu0 0
      %2006 = vmatpush2.bf16.msra.mxu0 0
      %2007 = vmatprep.subr.bf16.mxu0 0
      %2008 = vmatpush2.bf16.msra.mxu0 0
      %2009 = vmatprep.subr.bf16.mxu0 0
      %2010 = vmatpush2.bf16.msra.mxu0 0
      %2011 = vmatprep.mubr.bf16.mxu0 0
      %2012 = vmatmul.mubr.bf16.gmra.mxu0 %v1977
      %v2013 = vpop.f32.mrf.mxu0
      %v2014 = vadd.f32 0.0, %v2013
      %v2015 = vpop.f32.mrf.mxu0
      %v2016 = vpop.f32.mrf.mxu0
      %v2017 = vadd.f32 0.0, %v2016
      %v2018 = vpop.f32.mrf.mxu0
      %2019 = vdwg.mxu0
      %v2020 = vcombine.low %v1882, %v1970
      %v2021 = vcombine.high %v1882, %v1970
      %v2023 = vunpack.c.l.s4 1983009808
      %v2024 = vunpack.c.0.s8 %v2023
      %v2025 = vlaneseq
      %v2026 = vshrl.u32 %v2025, 7
      %v2027 = vsub.s32 %v2024, %v2026
      %v2028 = vrot.slane %v2020, %v2027
      %v2030 = vunpack.c.l.s4 1983009808
      %v2031 = vunpack.c.0.s8 %v2030
      %v2032 = vlaneseq
      %v2033 = vshrl.u32 %v2032, 7
      %v2034 = vsub.s32 %v2031, %v2033
      %v2035 = vrot.slane %v2021, %v2034
      %v2036 = vcombine.low %v1926, %v2014
      %v2037 = vcombine.high %v1926, %v2014
      %v2039 = vunpack.c.l.s4 1983009808
      %v2040 = vunpack.c.0.s8 %v2039
      %v2041 = vlaneseq
      %v2042 = vshrl.u32 %v2041, 7
      %v2043 = vsub.s32 %v2040, %v2042
      %v2044 = vrot.slane %v2036, %v2043
      %v2046 = vunpack.c.l.s4 1983009808
      %v2047 = vunpack.c.0.s8 %v2046
      %v2048 = vlaneseq
      %v2049 = vshrl.u32 %v2048, 7
      %v2050 = vsub.s32 %v2047, %v2049
      %v2051 = vrot.slane %v2037, %v2050
      %v2052 = vcombine.low %v2028, %v2044
      %v2053 = vcombine.high %v2028, %v2044
      %v2055 = vunpack.c.l.s4 1934713408
      %v2056 = vunpack.c.0.s8 %v2055
      %v2057 = vlaneseq
      %v2058 = vshrl.u32 %v2057, 7
      %v2059 = vsub.s32 %v2056, %v2058
      %v2060 = vrot.slane %v2052, %v2059
      %v2062 = vunpack.c.l.s4 1934713408
      %v2063 = vunpack.c.0.s8 %v2062
      %v2064 = vlaneseq
      %v2065 = vshrl.u32 %v2064, 7
      %v2066 = vsub.s32 %v2063, %v2065
      %v2067 = vrot.slane %v2053, %v2066
      %v2068 = vcombine.low %v2035, %v2051
      %v2069 = vcombine.high %v2035, %v2051
      %v2071 = vunpack.c.l.s4 1934713408
      %v2072 = vunpack.c.0.s8 %v2071
      %v2073 = vlaneseq
      %v2074 = vshrl.u32 %v2073, 7
      %v2075 = vsub.s32 %v2072, %v2074
      %v2076 = vrot.slane %v2068, %v2075
      %v2078 = vunpack.c.l.s4 1934713408
      %v2079 = vunpack.c.0.s8 %v2078
      %v2080 = vlaneseq
      %v2081 = vshrl.u32 %v2080, 7
      %v2082 = vsub.s32 %v2079, %v2081
      %v2083 = vrot.slane %v2069, %v2082
      %v2084 = vcombine.high %v2060, 0.0
      %v2085 = vcombine.high %v2067, 0.0
      %v2086 = vcombine.high %v2076, 0.0
      %v2087 = vcombine.high %v2083, 0.0
      %v2088 = vcombine.low %v1885, %v1973
      %v2089 = vcombine.high %v1885, %v1973
      %v2091 = vunpack.c.l.s4 1983009808
      %v2092 = vunpack.c.0.s8 %v2091
      %v2093 = vlaneseq
      %v2094 = vshrl.u32 %v2093, 7
      %v2095 = vsub.s32 %v2092, %v2094
      %v2096 = vrot.slane %v2088, %v2095
      %v2098 = vunpack.c.l.s4 1983009808
      %v2099 = vunpack.c.0.s8 %v2098
      %v2100 = vlaneseq
      %v2101 = vshrl.u32 %v2100, 7
      %v2102 = vsub.s32 %v2099, %v2101
      %v2103 = vrot.slane %v2089, %v2102
      %v2104 = vcombine.low %v1929, %v2017
      %v2105 = vcombine.high %v1929, %v2017
      %v2107 = vunpack.c.l.s4 1983009808
      %v2108 = vunpack.c.0.s8 %v2107
      %v2109 = vlaneseq
      %v2110 = vshrl.u32 %v2109, 7
      %v2111 = vsub.s32 %v2108, %v2110
      %v2112 = vrot.slane %v2104, %v2111
      %v2114 = vunpack.c.l.s4 1983009808
      %v2115 = vunpack.c.0.s8 %v2114
      %v2116 = vlaneseq
      %v2117 = vshrl.u32 %v2116, 7
      %v2118 = vsub.s32 %v2115, %v2117
      %v2119 = vrot.slane %v2105, %v2118
      %v2120 = vcombine.low %v2096, %v2112
      %v2121 = vcombine.high %v2096, %v2112
      %v2123 = vunpack.c.l.s4 1934713408
      %v2124 = vunpack.c.0.s8 %v2123
      %v2125 = vlaneseq
      %v2126 = vshrl.u32 %v2125, 7
      %v2127 = vsub.s32 %v2124, %v2126
      %v2128 = vrot.slane %v2120, %v2127
      %v2130 = vunpack.c.l.s4 1934713408
      %v2131 = vunpack.c.0.s8 %v2130
      %v2132 = vlaneseq
      %v2133 = vshrl.u32 %v2132, 7
      %v2134 = vsub.s32 %v2131, %v2133
      %v2135 = vrot.slane %v2121, %v2134
      %v2136 = vcombine.low %v2103, %v2119
      %v2137 = vcombine.high %v2103, %v2119
      %v2139 = vunpack.c.l.s4 1934713408
      %v2140 = vunpack.c.0.s8 %v2139
      %v2141 = vlaneseq
      %v2142 = vshrl.u32 %v2141, 7
      %v2143 = vsub.s32 %v2140, %v2142
      %v2144 = vrot.slane %v2136, %v2143
      %v2146 = vunpack.c.l.s4 1934713408
      %v2147 = vunpack.c.0.s8 %v2146
      %v2148 = vlaneseq
      %v2149 = vshrl.u32 %v2148, 7
      %v2150 = vsub.s32 %v2147, %v2149
      %v2151 = vrot.slane %v2137, %v2150
      %v2152 = vcombine.high %v2128, 0.0
      %v2153 = vcombine.high %v2135, 0.0
      %v2154 = vcombine.high %v2144, 0.0
      %v2155 = vcombine.high %v2151, 0.0
      %v2156 = vcombine.low %v2060, %v2067
      %v2158 = vunpack.c.l.s4 1983009808
      %v2159 = vunpack.c.0.s8 %v2158
      %v2160 = vlaneseq
      %v2161 = vshrl.u32 %v2160, 7
      %v2162 = vsub.s32 %v2159, %v2161
      %v2163 = vrot.slane %v2156, %v2162
      %v2164 = vcombine.low %v2084, %v2085
      %v2166 = vunpack.c.l.s4 1983009808
      %v2167 = vunpack.c.0.s8 %v2166
      %v2168 = vlaneseq
      %v2169 = vshrl.u32 %v2168, 7
      %v2170 = vsub.s32 %v2167, %v2169
      %v2171 = vrot.slane %v2164, %v2170
      %v2172 = vcombine.low %v2076, %v2083
      %v2174 = vunpack.c.l.s4 1983009808
      %v2175 = vunpack.c.0.s8 %v2174
      %v2176 = vlaneseq
      %v2177 = vshrl.u32 %v2176, 7
      %v2178 = vsub.s32 %v2175, %v2177
      %v2179 = vrot.slane %v2172, %v2178
      %v2180 = vcombine.low %v2086, %v2087
      %v2182 = vunpack.c.l.s4 1983009808
      %v2183 = vunpack.c.0.s8 %v2182
      %v2184 = vlaneseq
      %v2185 = vshrl.u32 %v2184, 7
      %v2186 = vsub.s32 %v2183, %v2185
      %v2187 = vrot.slane %v2180, %v2186
      %v2188 = vcombine.low %v2163, %v2171
      %v2189 = vcombine.high %v2163, %v2171
      %v2191 = vunpack.c.l.s4 1934713408
      %v2192 = vunpack.c.0.s8 %v2191
      %v2193 = vlaneseq
      %v2194 = vshrl.u32 %v2193, 7
      %v2195 = vsub.s32 %v2192, %v2194
      %v2196 = vrot.slane %v2188, %v2195
      %v2198 = vunpack.c.l.s4 1934713408
      %v2199 = vunpack.c.0.s8 %v2198
      %v2200 = vlaneseq
      %v2201 = vshrl.u32 %v2200, 7
      %v2202 = vsub.s32 %v2199, %v2201
      %v2203 = vrot.slane %v2189, %v2202
      %v2204 = vcombine.low %v2179, %v2187
      %v2205 = vcombine.high %v2179, %v2187
      %v2207 = vunpack.c.l.s4 1934713408
      %v2208 = vunpack.c.0.s8 %v2207
      %v2209 = vlaneseq
      %v2210 = vshrl.u32 %v2209, 7
      %v2211 = vsub.s32 %v2208, %v2210
      %v2212 = vrot.slane %v2204, %v2211
      %v2214 = vunpack.c.l.s4 1934713408
      %v2215 = vunpack.c.0.s8 %v2214
      %v2216 = vlaneseq
      %v2217 = vshrl.u32 %v2216, 7
      %v2218 = vsub.s32 %v2215, %v2217
      %v2219 = vrot.slane %v2205, %v2218
      %v2220 = vcombine.low %v2196, %v2212
      %v2221 = vcombine.high %v2196, %v2212
      %v2222 = vcombine.low %v2203, %v2219
      %v2223 = vcombine.high %v2203, %v2219
      %v2224 = vcombine.low %v2128, %v2135
      %v2226 = vunpack.c.l.s4 1983009808
      %v2227 = vunpack.c.0.s8 %v2226
      %v2228 = vlaneseq
      %v2229 = vshrl.u32 %v2228, 7
      %v2230 = vsub.s32 %v2227, %v2229
      %v2231 = vrot.slane %v2224, %v2230
      %v2232 = vcombine.low %v2152, %v2153
      %v2234 = vunpack.c.l.s4 1983009808
      %v2235 = vunpack.c.0.s8 %v2234
      %v2236 = vlaneseq
      %v2237 = vshrl.u32 %v2236, 7
      %v2238 = vsub.s32 %v2235, %v2237
      %v2239 = vrot.slane %v2232, %v2238
      %v2240 = vcombine.low %v2144, %v2151
      %v2242 = vunpack.c.l.s4 1983009808
      %v2243 = vunpack.c.0.s8 %v2242
      %v2244 = vlaneseq
      %v2245 = vshrl.u32 %v2244, 7
      %v2246 = vsub.s32 %v2243, %v2245
      %v2247 = vrot.slane %v2240, %v2246
      %v2248 = vcombine.low %v2154, %v2155
      %v2250 = vunpack.c.l.s4 1983009808
      %v2251 = vunpack.c.0.s8 %v2250
      %v2252 = vlaneseq
      %v2253 = vshrl.u32 %v2252, 7
      %v2254 = vsub.s32 %v2251, %v2253
      %v2255 = vrot.slane %v2248, %v2254
      %v2256 = vcombine.low %v2231, %v2239
      %v2257 = vcombine.high %v2231, %v2239
      %v2259 = vunpack.c.l.s4 1934713408
      %v2260 = vunpack.c.0.s8 %v2259
      %v2261 = vlaneseq
      %v2262 = vshrl.u32 %v2261, 7
      %v2263 = vsub.s32 %v2260, %v2262
      %v2264 = vrot.slane %v2256, %v2263
      %v2266 = vunpack.c.l.s4 1934713408
      %v2267 = vunpack.c.0.s8 %v2266
      %v2268 = vlaneseq
      %v2269 = vshrl.u32 %v2268, 7
      %v2270 = vsub.s32 %v2267, %v2269
      %v2271 = vrot.slane %v2257, %v2270
      %v2272 = vcombine.low %v2247, %v2255
      %v2273 = vcombine.high %v2247, %v2255
      %v2275 = vunpack.c.l.s4 1934713408
      %v2276 = vunpack.c.0.s8 %v2275
      %v2277 = vlaneseq
      %v2278 = vshrl.u32 %v2277, 7
      %v2279 = vsub.s32 %v2276, %v2278
      %v2280 = vrot.slane %v2272, %v2279
      %v2282 = vunpack.c.l.s4 1934713408
      %v2283 = vunpack.c.0.s8 %v2282
      %v2284 = vlaneseq
      %v2285 = vshrl.u32 %v2284, 7
      %v2286 = vsub.s32 %v2283, %v2285
      %v2287 = vrot.slane %v2273, %v2286
      %v2288 = vcombine.low %v2264, %v2280
      %v2289 = vcombine.high %v2264, %v2280
      %v2290 = vcombine.low %v2271, %v2287
      %v2291 = vcombine.high %v2271, %v2287
      %2294 = vrot.lane.b32.xlu0 %v2221, 8
      %v2295 = vpop.permute.xlu0 %2294
      %2296 = vrot.lane.b32.xlu0 %v2289, 8
      %v2297 = vpop.permute.xlu0 %2296
      %2302 = vrot.lane.b32.xlu0 %v2222, 16
      %v2303 = vpop.permute.xlu0 %2302
      %2304 = vrot.lane.b32.xlu0 %v2290, 16
      %v2305 = vpop.permute.xlu0 %2304
      %2310 = vrot.lane.b32.xlu0 %v2223, 24
      %v2311 = vpop.permute.xlu0 %2310
      %2312 = vrot.lane.b32.xlu0 %v2291, 24
      %v2313 = vpop.permute.xlu0 %2312
      %v2316 = vsel %vm1562, %v2220, %v2295
      %v2317 = vsel %vm1562, %v2288, %v2297
      %v2318 = vsel %vm1751, %v2316, %v2303
      %v2319 = vsel %vm1751, %v2317, %v2305
      %vm2320 = vcmask 195584
      %v2321 = vsel %vm2320, %v2318, %v2311
      %v2322 = vsel %vm2320, %v2319, %v2313
      %v2323 = vpack.c.bf16 %v2322, %v2321
      %v2324 = vld [vmem:[%s5] sm:$0xf]
      %v2325 = vld [vmem:[%s5 + $0x4] sm:$0xf]
      %v2326 = vld [vmem:[%s5 + $0x8] sm:$0xf]
      %v2327 = vld [vmem:[%s5 + $0xc] sm:$0xf]
      %v2332 = vunpack.c.l.b16 %v2324
      %v2333 = vunpack.c.l.b16 %v2325
      %v2334 = vunpack.c.l.b16 %v2326
      %v2335 = vunpack.c.l.b16 %v2327
      %v2336 = vpack.c.b16 %v2333, %v2332
      %v2337 = vpack.c.b16 %v2335, %v2334
      %v2341 = vsel %vm561, %v2323, 0
      %2343 = vmatprep.subr.bf16.mxu0 0
      %2344 = vmatpush1.bf16.msra.mxu0 0
      %2345 = vmatprep.subr.bf16.mxu0 0
      %2346 = vmatpush1.bf16.msra.mxu0 0
      %2347 = vmatprep.subr.bf16.mxu0 0
      %2348 = vmatpush1.bf16.msra.mxu0 0
      %2349 = vmatprep.subr.bf16.mxu0 0
      %2350 = vmatpush1.bf16.msra.mxu0 0
      %2351 = vmatprep.subr.bf16.mxu0 0
      %2352 = vmatpush1.bf16.msra.mxu0 0
      %2353 = vmatprep.subr.bf16.mxu0 0
      %2354 = vmatpush1.bf16.msra.mxu0 0
      %2355 = vmatprep.subr.bf16.mxu0 0
      %2356 = vmatpush1.bf16.msra.mxu0 %v2337
      %2357 = vmatprep.subr.bf16.mxu0 0
      %2358 = vmatpush1.bf16.msra.mxu0 %v2336
      %2359 = vmatprep.subr.bf16.mxu0 0
      %2360 = vmatpush2.bf16.msra.mxu0 0
      %2361 = vmatprep.subr.bf16.mxu0 0
      %2362 = vmatpush2.bf16.msra.mxu0 0
      %2363 = vmatprep.subr.bf16.mxu0 0
      %2364 = vmatpush2.bf16.msra.mxu0 0
      %2365 = vmatprep.subr.bf16.mxu0 0
      %2366 = vmatpush2.bf16.msra.mxu0 0
      %2367 = vmatprep.subr.bf16.mxu0 0
      %2368 = vmatpush2.bf16.msra.mxu0 0
      %2369 = vmatprep.subr.bf16.mxu0 0
      %2370 = vmatpush2.bf16.msra.mxu0 0
      %2371 = vmatprep.subr.bf16.mxu0 0
      %2372 = vmatpush2.bf16.msra.mxu0 0
      %2373 = vmatprep.subr.bf16.mxu0 0
      %2374 = vmatpush2.bf16.msra.mxu0 0
      %2375 = vmatprep.mubr.bf16.mxu0 0
      %2376 = vmatmul.mubr.bf16.gmra.mxu0 %v2341
      %v2377 = vpop.f32.mrf.mxu0
      %v2378 = vadd.f32 %v541, %v2377
      %v2379 = vpop.f32.mrf.mxu0
      %v2380 = vpop.f32.mrf.mxu0
      %v2381 = vadd.f32 %v542, %v2380
      %v2382 = vpop.f32.mrf.mxu0
      %2383 = vdwg.mxu0
      %v2384 = vsel %vm561, %v2378, 0.0
      %2385 = vadd.xlane.f32.xlu0 %v2384
      %v2386 = vpop.xlane.xlu0 %2385
      %v2387 = vsel %vm561, %v2381, 0.0
      %2388 = vadd.xlane.f32.xlu0 %v2387
      %v2389 = vpop.xlane.xlu0 %2388
      %v2390 = vrcp.pop 32.0
      %v2391 = vmul.f32 %v2386, %v2390
      %v2392 = vmul.f32 %v2389, %v2390
      %v2393 = vsub.f32 %v2378, %v2391
      %v2394 = vsub.f32 %v2381, %v2392
      %v2395 = vmul.f32 %v2393, %v2393
      %v2396 = vmul.f32 %v2394, %v2394
      %v2397 = vsel %vm561, %v2395, 0.0
      %2398 = vadd.xlane.f32.xlu0 %v2397
      %v2399 = vpop.xlane.xlu0 %2398
      %v2400 = vsel %vm561, %v2396, 0.0
      %2401 = vadd.xlane.f32.xlu0 %v2400
      %v2402 = vpop.xlane.xlu0 %2401
      %v2403 = vmul.f32 %v2399, %v2390
      %v2404 = vmul.f32 %v2402, %v2390
      %v2405 = vadd.f32 %v2403, 1e-06
      %v2406 = vadd.f32 %v2404, 1e-06
      %v2407 = vrsqrt.pop %v2405
      %v2408 = vrsqrt.pop %v2406
      %v2409 = vmul.f32 %v2393, %v2407
      %v2410 = vmul.f32 %v2394, %v2408
      %v2411 = vld [vmem:[%s6] sm:$0x1]
      %v2413 = vlaneseq
      %v2414 = vshrl.u32 %v2413, 7
      %v2415 = vsub.s32 0, %v2414
      %v2416 = vrot.slane %v2411, %v2415
      %v2418 = vmul.f32 %v2409, %v2416
      %v2419 = vmul.f32 %v2410, %v2416
      %v2420 = vld [vmem:[%s7] sm:$0x1]
      %v2422 = vlaneseq
      %v2423 = vshrl.u32 %v2422, 7
      %v2424 = vsub.s32 0, %v2423
      %v2425 = vrot.slane %v2420, %v2424
      %v2427 = vadd.f32 %v2418, %v2425
      %v2428 = vadd.f32 %v2419, %v2425
      %v2429 = vld [vmem:[%s8] sm:$0xf]
      %v2430 = vld [vmem:[%s8 + $0x4] sm:$0xf]
      %v2431 = vld [vmem:[%s8 + $0x8] sm:$0xf]
      %v2432 = vld [vmem:[%s8 + $0xc] sm:$0xf]
      %v2437 = vunpack.c.l.b16 %v2429
      %v2438 = vunpack.c.l.b16 %v2430
      %v2439 = vunpack.c.l.b16 %v2431
      %v2440 = vunpack.c.l.b16 %v2432
      %v2441 = vpack.c.b16 %v2438, %v2437
      %v2442 = vpack.c.b16 %v2440, %v2439
      %2445 = vmatprep.subr.bf16.mxu0 0
      %2446 = vmatpush1.bf16.msra.mxu0 0
      %2447 = vmatprep.subr.bf16.mxu0 0
      %2448 = vmatpush1.bf16.msra.mxu0 0
      %2449 = vmatprep.subr.bf16.mxu0 0
      %2450 = vmatpush1.bf16.msra.mxu0 0
      %2451 = vmatprep.subr.bf16.mxu0 0
      %2452 = vmatpush1.bf16.msra.mxu0 0
      %2453 = vmatprep.subr.bf16.mxu0 0
      %2454 = vmatpush1.bf16.msra.mxu0 0
      %2455 = vmatprep.subr.bf16.mxu0 0
      %2456 = vmatpush1.bf16.msra.mxu0 0
      %2457 = vmatprep.subr.bf16.mxu0 0
      %2458 = vmatpush1.bf16.msra.mxu0 %v2442
      %2459 = vmatprep.subr.bf16.mxu0 0
      %2460 = vmatpush1.bf16.msra.mxu0 %v2441
      %2461 = vmatprep.subr.bf16.mxu0 0
      %2462 = vmatpush2.bf16.msra.mxu0 0
      %2463 = vmatprep.subr.bf16.mxu0 0
      %2464 = vmatpush2.bf16.msra.mxu0 0
      %2465 = vmatprep.subr.bf16.mxu0 0
      %2466 = vmatpush2.bf16.msra.mxu0 0
      %2467 = vmatprep.subr.bf16.mxu0 0
      %2468 = vmatpush2.bf16.msra.mxu0 0
      %2469 = vmatprep.subr.bf16.mxu0 0
      %2470 = vmatpush2.bf16.msra.mxu0 0
      %2471 = vmatprep.subr.bf16.mxu0 0
      %2472 = vmatpush2.bf16.msra.mxu0 0
      %2473 = vmatprep.subr.bf16.mxu0 0
      %2474 = vmatpush2.bf16.msra.mxu0 0
      %2475 = vmatprep.subr.bf16.mxu0 0
      %2476 = vmatpush2.bf16.msra.mxu0 0
      %2477 = vmatprep.mubr.bf16.mxu0 0
      %2478 = vmatmul.mubr.bf16.gmra.mxu0 %v563
      %v2479 = vpop.f32.mrf.mxu0
      %v2480 = vadd.f32 0.0, %v2479
      %v2481 = vpop.f32.mrf.mxu0
      %v2482 = vpop.f32.mrf.mxu0
      %v2483 = vadd.f32 0.0, %v2482
      %v2484 = vpop.f32.mrf.mxu0
      %2485 = vdwg.mxu0
      %v2486 = vld [vmem:[%s9] sm:$0xf]
      %v2487 = vld [vmem:[%s9 + $0x4] sm:$0xf]
      %v2488 = vld [vmem:[%s9 + $0x8] sm:$0xf]
      %v2489 = vld [vmem:[%s9 + $0xc] sm:$0xf]
      %v2494 = vunpack.c.l.b16 %v2486
      %v2495 = vunpack.c.l.b16 %v2487
      %v2496 = vunpack.c.l.b16 %v2488
      %v2497 = vunpack.c.l.b16 %v2489
      %v2498 = vpack.c.b16 %v2495, %v2494
      %v2499 = vpack.c.b16 %v2497, %v2496
      %2502 = vmatprep.subr.bf16.mxu0 0
      %2503 = vmatpush1.bf16.msra.mxu0 0
      %2504 = vmatprep.subr.bf16.mxu0 0
      %2505 = vmatpush1.bf16.msra.mxu0 0
      %2506 = vmatprep.subr.bf16.mxu0 0
      %2507 = vmatpush1.bf16.msra.mxu0 0
      %2508 = vmatprep.subr.bf16.mxu0 0
      %2509 = vmatpush1.bf16.msra.mxu0 0
      %2510 = vmatprep.subr.bf16.mxu0 0
      %2511 = vmatpush1.bf16.msra.mxu0 0
      %2512 = vmatprep.subr.bf16.mxu0 0
      %2513 = vmatpush1.bf16.msra.mxu0 0
      %2514 = vmatprep.subr.bf16.mxu0 0
      %2515 = vmatpush1.bf16.msra.mxu0 %v2499
      %2516 = vmatprep.subr.bf16.mxu0 0
      %2517 = vmatpush1.bf16.msra.mxu0 %v2498
      %2518 = vmatprep.subr.bf16.mxu0 0
      %2519 = vmatpush2.bf16.msra.mxu0 0
      %2520 = vmatprep.subr.bf16.mxu0 0
      %2521 = vmatpush2.bf16.msra.mxu0 0
      %2522 = vmatprep.subr.bf16.mxu0 0
      %2523 = vmatpush2.bf16.msra.mxu0 0
      %2524 = vmatprep.subr.bf16.mxu0 0
      %2525 = vmatpush2.bf16.msra.mxu0 0
      %2526 = vmatprep.subr.bf16.mxu0 0
      %2527 = vmatpush2.bf16.msra.mxu0 0
      %2528 = vmatprep.subr.bf16.mxu0 0
      %2529 = vmatpush2.bf16.msra.mxu0 0
      %2530 = vmatprep.subr.bf16.mxu0 0
      %2531 = vmatpush2.bf16.msra.mxu0 0
      %2532 = vmatprep.subr.bf16.mxu0 0
      %2533 = vmatpush2.bf16.msra.mxu0 0
      %2534 = vmatprep.mubr.bf16.mxu0 0
      %2535 = vmatmul.mubr.bf16.gmra.mxu0 %v623
      %v2536 = vpop.f32.mrf.mxu0
      %v2537 = vadd.f32 0.0, %v2536
      %v2538 = vpop.f32.mrf.mxu0
      %v2539 = vpop.f32.mrf.mxu0
      %v2540 = vadd.f32 0.0, %v2539
      %v2541 = vpop.f32.mrf.mxu0
      %2542 = vdwg.mxu0
      %2545 = vrot.lane.b32.xlu0 %v2480, 120
      %v2546 = vpop.permute.xlu0 %2545
      %2547 = vrot.lane.b32.xlu0 %v2483, 120
      %v2548 = vpop.permute.xlu0 %2547
      %2551 = vrot.lane.b32.xlu0 %v2480, 112
      %v2552 = vpop.permute.xlu0 %2551
      %2553 = vrot.lane.b32.xlu0 %v2483, 112
      %v2554 = vpop.permute.xlu0 %2553
      %2557 = vrot.lane.b32.xlu0 %v2480, 104
      %v2558 = vpop.permute.xlu0 %2557
      %2559 = vrot.lane.b32.xlu0 %v2483, 104
      %v2560 = vpop.permute.xlu0 %2559
      %v2563 = vcombine.low %v2480, %v2552
      %v2564 = vcombine.high %v2480, %v2552
      %v2566 = vunpack.c.l.s4 1983009808
      %v2567 = vunpack.c.0.s8 %v2566
      %v2568 = vlaneseq
      %v2569 = vshrl.u32 %v2568, 7
      %v2570 = vsub.s32 %v2567, %v2569
      %v2571 = vrot.slane %v2563, %v2570
      %v2573 = vunpack.c.l.s4 1983009808
      %v2574 = vunpack.c.0.s8 %v2573
      %v2575 = vlaneseq
      %v2576 = vshrl.u32 %v2575, 7
      %v2577 = vsub.s32 %v2574, %v2576
      %v2578 = vrot.slane %v2564, %v2577
      %v2579 = vcombine.low %v2546, %v2558
      %v2580 = vcombine.high %v2546, %v2558
      %v2582 = vunpack.c.l.s4 1983009808
      %v2583 = vunpack.c.0.s8 %v2582
      %v2584 = vlaneseq
      %v2585 = vshrl.u32 %v2584, 7
      %v2586 = vsub.s32 %v2583, %v2585
      %v2587 = vrot.slane %v2579, %v2586
      %v2589 = vunpack.c.l.s4 1983009808
      %v2590 = vunpack.c.0.s8 %v2589
      %v2591 = vlaneseq
      %v2592 = vshrl.u32 %v2591, 7
      %v2593 = vsub.s32 %v2590, %v2592
      %v2594 = vrot.slane %v2580, %v2593
      %v2595 = vcombine.low %v2571, %v2587
      %v2596 = vcombine.high %v2571, %v2587
      %v2598 = vunpack.c.l.s4 1934713408
      %v2599 = vunpack.c.0.s8 %v2598
      %v2600 = vlaneseq
      %v2601 = vshrl.u32 %v2600, 7
      %v2602 = vsub.s32 %v2599, %v2601
      %v2603 = vrot.slane %v2595, %v2602
      %v2605 = vunpack.c.l.s4 1934713408
      %v2606 = vunpack.c.0.s8 %v2605
      %v2607 = vlaneseq
      %v2608 = vshrl.u32 %v2607, 7
      %v2609 = vsub.s32 %v2606, %v2608
      %v2610 = vrot.slane %v2596, %v2609
      %v2611 = vcombine.low %v2578, %v2594
      %v2612 = vcombine.high %v2578, %v2594
      %v2614 = vunpack.c.l.s4 1934713408
      %v2615 = vunpack.c.0.s8 %v2614
      %v2616 = vlaneseq
      %v2617 = vshrl.u32 %v2616, 7
      %v2618 = vsub.s32 %v2615, %v2617
      %v2619 = vrot.slane %v2611, %v2618
      %v2621 = vunpack.c.l.s4 1934713408
      %v2622 = vunpack.c.0.s8 %v2621
      %v2623 = vlaneseq
      %v2624 = vshrl.u32 %v2623, 7
      %v2625 = vsub.s32 %v2622, %v2624
      %v2626 = vrot.slane %v2612, %v2625
      %v2627 = vcombine.high %v2603, 0.0
      %v2628 = vcombine.high %v2610, 0.0
      %v2629 = vcombine.high %v2619, 0.0
      %v2630 = vcombine.high %v2626, 0.0
      %v2631 = vcombine.low %v2483, %v2554
      %v2632 = vcombine.high %v2483, %v2554
      %v2634 = vunpack.c.l.s4 1983009808
      %v2635 = vunpack.c.0.s8 %v2634
      %v2636 = vlaneseq
      %v2637 = vshrl.u32 %v2636, 7
      %v2638 = vsub.s32 %v2635, %v2637
      %v2639 = vrot.slane %v2631, %v2638
      %v2641 = vunpack.c.l.s4 1983009808
      %v2642 = vunpack.c.0.s8 %v2641
      %v2643 = vlaneseq
      %v2644 = vshrl.u32 %v2643, 7
      %v2645 = vsub.s32 %v2642, %v2644
      %v2646 = vrot.slane %v2632, %v2645
      %v2647 = vcombine.low %v2548, %v2560
      %v2648 = vcombine.high %v2548, %v2560
      %v2650 = vunpack.c.l.s4 1983009808
      %v2651 = vunpack.c.0.s8 %v2650
      %v2652 = vlaneseq
      %v2653 = vshrl.u32 %v2652, 7
      %v2654 = vsub.s32 %v2651, %v2653
      %v2655 = vrot.slane %v2647, %v2654
      %v2657 = vunpack.c.l.s4 1983009808
      %v2658 = vunpack.c.0.s8 %v2657
      %v2659 = vlaneseq
      %v2660 = vshrl.u32 %v2659, 7
      %v2661 = vsub.s32 %v2658, %v2660
      %v2662 = vrot.slane %v2648, %v2661
      %v2663 = vcombine.low %v2639, %v2655
      %v2664 = vcombine.high %v2639, %v2655
      %v2666 = vunpack.c.l.s4 1934713408
      %v2667 = vunpack.c.0.s8 %v2666
      %v2668 = vlaneseq
      %v2669 = vshrl.u32 %v2668, 7
      %v2670 = vsub.s32 %v2667, %v2669
      %v2671 = vrot.slane %v2663, %v2670
      %v2673 = vunpack.c.l.s4 1934713408
      %v2674 = vunpack.c.0.s8 %v2673
      %v2675 = vlaneseq
      %v2676 = vshrl.u32 %v2675, 7
      %v2677 = vsub.s32 %v2674, %v2676
      %v2678 = vrot.slane %v2664, %v2677
      %v2679 = vcombine.low %v2646, %v2662
      %v2680 = vcombine.high %v2646, %v2662
      %v2682 = vunpack.c.l.s4 1934713408
      %v2683 = vunpack.c.0.s8 %v2682
      %v2684 = vlaneseq
      %v2685 = vshrl.u32 %v2684, 7
      %v2686 = vsub.s32 %v2683, %v2685
      %v2687 = vrot.slane %v2679, %v2686
      %v2689 = vunpack.c.l.s4 1934713408
      %v2690 = vunpack.c.0.s8 %v2689
      %v2691 = vlaneseq
      %v2692 = vshrl.u32 %v2691, 7
      %v2693 = vsub.s32 %v2690, %v2692
      %v2694 = vrot.slane %v2680, %v2693
      %v2695 = vcombine.high %v2671, 0.0
      %v2696 = vcombine.high %v2678, 0.0
      %v2697 = vcombine.high %v2687, 0.0
      %v2698 = vcombine.high %v2694, 0.0
      %v2699 = vcombine.low %v2603, %v2610
      %v2701 = vunpack.c.l.s4 1983009808
      %v2702 = vunpack.c.0.s8 %v2701
      %v2703 = vlaneseq
      %v2704 = vshrl.u32 %v2703, 7
      %v2705 = vsub.s32 %v2702, %v2704
      %v2706 = vrot.slane %v2699, %v2705
      %v2707 = vcombine.low %v2627, %v2628
      %v2709 = vunpack.c.l.s4 1983009808
      %v2710 = vunpack.c.0.s8 %v2709
      %v2711 = vlaneseq
      %v2712 = vshrl.u32 %v2711, 7
      %v2713 = vsub.s32 %v2710, %v2712
      %v2714 = vrot.slane %v2707, %v2713
      %v2715 = vcombine.low %v2619, %v2626
      %v2717 = vunpack.c.l.s4 1983009808
      %v2718 = vunpack.c.0.s8 %v2717
      %v2719 = vlaneseq
      %v2720 = vshrl.u32 %v2719, 7
      %v2721 = vsub.s32 %v2718, %v2720
      %v2722 = vrot.slane %v2715, %v2721
      %v2723 = vcombine.low %v2629, %v2630
      %v2725 = vunpack.c.l.s4 1983009808
      %v2726 = vunpack.c.0.s8 %v2725
      %v2727 = vlaneseq
      %v2728 = vshrl.u32 %v2727, 7
      %v2729 = vsub.s32 %v2726, %v2728
      %v2730 = vrot.slane %v2723, %v2729
      %v2731 = vcombine.low %v2706, %v2714
      %v2732 = vcombine.high %v2706, %v2714
      %v2734 = vunpack.c.l.s4 1934713408
      %v2735 = vunpack.c.0.s8 %v2734
      %v2736 = vlaneseq
      %v2737 = vshrl.u32 %v2736, 7
      %v2738 = vsub.s32 %v2735, %v2737
      %v2739 = vrot.slane %v2731, %v2738
      %v2741 = vunpack.c.l.s4 1934713408
      %v2742 = vunpack.c.0.s8 %v2741
      %v2743 = vlaneseq
      %v2744 = vshrl.u32 %v2743, 7
      %v2745 = vsub.s32 %v2742, %v2744
      %v2746 = vrot.slane %v2732, %v2745
      %v2747 = vcombine.low %v2722, %v2730
      %v2748 = vcombine.high %v2722, %v2730
      %v2750 = vunpack.c.l.s4 1934713408
      %v2751 = vunpack.c.0.s8 %v2750
      %v2752 = vlaneseq
      %v2753 = vshrl.u32 %v2752, 7
      %v2754 = vsub.s32 %v2751, %v2753
      %v2755 = vrot.slane %v2747, %v2754
      %v2757 = vunpack.c.l.s4 1934713408
      %v2758 = vunpack.c.0.s8 %v2757
      %v2759 = vlaneseq
      %v2760 = vshrl.u32 %v2759, 7
      %v2761 = vsub.s32 %v2758, %v2760
      %v2762 = vrot.slane %v2748, %v2761
      %v2763 = vcombine.low %v2739, %v2755
      %v2764 = vcombine.high %v2739, %v2755
      %v2765 = vcombine.low %v2746, %v2762
      %v2766 = vcombine.high %v2746, %v2762
      %v2767 = vcombine.low %v2671, %v2678
      %v2769 = vunpack.c.l.s4 1983009808
      %v2770 = vunpack.c.0.s8 %v2769
      %v2771 = vlaneseq
      %v2772 = vshrl.u32 %v2771, 7
      %v2773 = vsub.s32 %v2770, %v2772
      %v2774 = vrot.slane %v2767, %v2773
      %v2775 = vcombine.low %v2695, %v2696
      %v2777 = vunpack.c.l.s4 1983009808
      %v2778 = vunpack.c.0.s8 %v2777
      %v2779 = vlaneseq
      %v2780 = vshrl.u32 %v2779, 7
      %v2781 = vsub.s32 %v2778, %v2780
      %v2782 = vrot.slane %v2775, %v2781
      %v2783 = vcombine.low %v2687, %v2694
      %v2785 = vunpack.c.l.s4 1983009808
      %v2786 = vunpack.c.0.s8 %v2785
      %v2787 = vlaneseq
      %v2788 = vshrl.u32 %v2787, 7
      %v2789 = vsub.s32 %v2786, %v2788
      %v2790 = vrot.slane %v2783, %v2789
      %v2791 = vcombine.low %v2697, %v2698
      %v2793 = vunpack.c.l.s4 1983009808
      %v2794 = vunpack.c.0.s8 %v2793
      %v2795 = vlaneseq
      %v2796 = vshrl.u32 %v2795, 7
      %v2797 = vsub.s32 %v2794, %v2796
      %v2798 = vrot.slane %v2791, %v2797
      %v2799 = vcombine.low %v2774, %v2782
      %v2800 = vcombine.high %v2774, %v2782
      %v2802 = vunpack.c.l.s4 1934713408
      %v2803 = vunpack.c.0.s8 %v2802
      %v2804 = vlaneseq
      %v2805 = vshrl.u32 %v2804, 7
      %v2806 = vsub.s32 %v2803, %v2805
      %v2807 = vrot.slane %v2799, %v2806
      %v2809 = vunpack.c.l.s4 1934713408
      %v2810 = vunpack.c.0.s8 %v2809
      %v2811 = vlaneseq
      %v2812 = vshrl.u32 %v2811, 7
      %v2813 = vsub.s32 %v2810, %v2812
      %v2814 = vrot.slane %v2800, %v2813
      %v2815 = vcombine.low %v2790, %v2798
      %v2816 = vcombine.high %v2790, %v2798
      %v2818 = vunpack.c.l.s4 1934713408
      %v2819 = vunpack.c.0.s8 %v2818
      %v2820 = vlaneseq
      %v2821 = vshrl.u32 %v2820, 7
      %v2822 = vsub.s32 %v2819, %v2821
      %v2823 = vrot.slane %v2815, %v2822
      %v2825 = vunpack.c.l.s4 1934713408
      %v2826 = vunpack.c.0.s8 %v2825
      %v2827 = vlaneseq
      %v2828 = vshrl.u32 %v2827, 7
      %v2829 = vsub.s32 %v2826, %v2828
      %v2830 = vrot.slane %v2816, %v2829
      %v2831 = vcombine.low %v2807, %v2823
      %v2832 = vcombine.high %v2807, %v2823
      %v2833 = vcombine.low %v2814, %v2830
      %v2834 = vcombine.high %v2814, %v2830
      %v2835 = vpack.c.bf16 %v2831, %v2763
      %v2836 = vpack.c.bf16 %v2832, %v2764
      %v2837 = vpack.c.bf16 %v2833, %v2765
      %v2838 = vpack.c.bf16 %v2834, %v2766
      %2841 = vrot.lane.b32.xlu0 %v2537, 120
      %v2842 = vpop.permute.xlu0 %2841
      %2843 = vrot.lane.b32.xlu0 %v2540, 120
      %v2844 = vpop.permute.xlu0 %2843
      %2847 = vrot.lane.b32.xlu0 %v2537, 112
      %v2848 = vpop.permute.xlu0 %2847
      %2849 = vrot.lane.b32.xlu0 %v2540, 112
      %v2850 = vpop.permute.xlu0 %2849
      %2853 = vrot.lane.b32.xlu0 %v2537, 104
      %v2854 = vpop.permute.xlu0 %2853
      %2855 = vrot.lane.b32.xlu0 %v2540, 104
      %v2856 = vpop.permute.xlu0 %2855
      %v2859 = vcombine.low %v2537, %v2848
      %v2860 = vcombine.high %v2537, %v2848
      %v2862 = vunpack.c.l.s4 1983009808
      %v2863 = vunpack.c.0.s8 %v2862
      %v2864 = vlaneseq
      %v2865 = vshrl.u32 %v2864, 7
      %v2866 = vsub.s32 %v2863, %v2865
      %v2867 = vrot.slane %v2859, %v2866
      %v2869 = vunpack.c.l.s4 1983009808
      %v2870 = vunpack.c.0.s8 %v2869
      %v2871 = vlaneseq
      %v2872 = vshrl.u32 %v2871, 7
      %v2873 = vsub.s32 %v2870, %v2872
      %v2874 = vrot.slane %v2860, %v2873
      %v2875 = vcombine.low %v2842, %v2854
      %v2876 = vcombine.high %v2842, %v2854
      %v2878 = vunpack.c.l.s4 1983009808
      %v2879 = vunpack.c.0.s8 %v2878
      %v2880 = vlaneseq
      %v2881 = vshrl.u32 %v2880, 7
      %v2882 = vsub.s32 %v2879, %v2881
      %v2883 = vrot.slane %v2875, %v2882
      %v2885 = vunpack.c.l.s4 1983009808
      %v2886 = vunpack.c.0.s8 %v2885
      %v2887 = vlaneseq
      %v2888 = vshrl.u32 %v2887, 7
      %v2889 = vsub.s32 %v2886, %v2888
      %v2890 = vrot.slane %v2876, %v2889
      %v2891 = vcombine.low %v2867, %v2883
      %v2892 = vcombine.high %v2867, %v2883
      %v2894 = vunpack.c.l.s4 1934713408
      %v2895 = vunpack.c.0.s8 %v2894
      %v2896 = vlaneseq
      %v2897 = vshrl.u32 %v2896, 7
      %v2898 = vsub.s32 %v2895, %v2897
      %v2899 = vrot.slane %v2891, %v2898
      %v2901 = vunpack.c.l.s4 1934713408
      %v2902 = vunpack.c.0.s8 %v2901
      %v2903 = vlaneseq
      %v2904 = vshrl.u32 %v2903, 7
      %v2905 = vsub.s32 %v2902, %v2904
      %v2906 = vrot.slane %v2892, %v2905
      %v2907 = vcombine.low %v2874, %v2890
      %v2908 = vcombine.high %v2874, %v2890
      %v2910 = vunpack.c.l.s4 1934713408
      %v2911 = vunpack.c.0.s8 %v2910
      %v2912 = vlaneseq
      %v2913 = vshrl.u32 %v2912, 7
      %v2914 = vsub.s32 %v2911, %v2913
      %v2915 = vrot.slane %v2907, %v2914
      %v2917 = vunpack.c.l.s4 1934713408
      %v2918 = vunpack.c.0.s8 %v2917
      %v2919 = vlaneseq
      %v2920 = vshrl.u32 %v2919, 7
      %v2921 = vsub.s32 %v2918, %v2920
      %v2922 = vrot.slane %v2908, %v2921
      %v2923 = vcombine.high %v2899, 0.0
      %v2924 = vcombine.high %v2906, 0.0
      %v2925 = vcombine.high %v2915, 0.0
      %v2926 = vcombine.high %v2922, 0.0
      %v2927 = vcombine.low %v2540, %v2850
      %v2928 = vcombine.high %v2540, %v2850
      %v2930 = vunpack.c.l.s4 1983009808
      %v2931 = vunpack.c.0.s8 %v2930
      %v2932 = vlaneseq
      %v2933 = vshrl.u32 %v2932, 7
      %v2934 = vsub.s32 %v2931, %v2933
      %v2935 = vrot.slane %v2927, %v2934
      %v2937 = vunpack.c.l.s4 1983009808
      %v2938 = vunpack.c.0.s8 %v2937
      %v2939 = vlaneseq
      %v2940 = vshrl.u32 %v2939, 7
      %v2941 = vsub.s32 %v2938, %v2940
      %v2942 = vrot.slane %v2928, %v2941
      %v2943 = vcombine.low %v2844, %v2856
      %v2944 = vcombine.high %v2844, %v2856
      %v2946 = vunpack.c.l.s4 1983009808
      %v2947 = vunpack.c.0.s8 %v2946
      %v2948 = vlaneseq
      %v2949 = vshrl.u32 %v2948, 7
      %v2950 = vsub.s32 %v2947, %v2949
      %v2951 = vrot.slane %v2943, %v2950
      %v2953 = vunpack.c.l.s4 1983009808
      %v2954 = vunpack.c.0.s8 %v2953
      %v2955 = vlaneseq
      %v2956 = vshrl.u32 %v2955, 7
      %v2957 = vsub.s32 %v2954, %v2956
      %v2958 = vrot.slane %v2944, %v2957
      %v2959 = vcombine.low %v2935, %v2951
      %v2960 = vcombine.high %v2935, %v2951
      %v2962 = vunpack.c.l.s4 1934713408
      %v2963 = vunpack.c.0.s8 %v2962
      %v2964 = vlaneseq
      %v2965 = vshrl.u32 %v2964, 7
      %v2966 = vsub.s32 %v2963, %v2965
      %v2967 = vrot.slane %v2959, %v2966
      %v2969 = vunpack.c.l.s4 1934713408
      %v2970 = vunpack.c.0.s8 %v2969
      %v2971 = vlaneseq
      %v2972 = vshrl.u32 %v2971, 7
      %v2973 = vsub.s32 %v2970, %v2972
      %v2974 = vrot.slane %v2960, %v2973
      %v2975 = vcombine.low %v2942, %v2958
      %v2976 = vcombine.high %v2942, %v2958
      %v2978 = vunpack.c.l.s4 1934713408
      %v2979 = vunpack.c.0.s8 %v2978
      %v2980 = vlaneseq
      %v2981 = vshrl.u32 %v2980, 7
      %v2982 = vsub.s32 %v2979, %v2981
      %v2983 = vrot.slane %v2975, %v2982
      %v2985 = vunpack.c.l.s4 1934713408
      %v2986 = vunpack.c.0.s8 %v2985
      %v2987 = vlaneseq
      %v2988 = vshrl.u32 %v2987, 7
      %v2989 = vsub.s32 %v2986, %v2988
      %v2990 = vrot.slane %v2976, %v2989
      %v2991 = vcombine.high %v2967, 0.0
      %v2992 = vcombine.high %v2974, 0.0
      %v2993 = vcombine.high %v2983, 0.0
      %v2994 = vcombine.high %v2990, 0.0
      %v2995 = vcombine.low %v2899, %v2906
      %v2997 = vunpack.c.l.s4 1983009808
      %v2998 = vunpack.c.0.s8 %v2997
      %v2999 = vlaneseq
      %v3000 = vshrl.u32 %v2999, 7
      %v3001 = vsub.s32 %v2998, %v3000
      %v3002 = vrot.slane %v2995, %v3001
      %v3003 = vcombine.low %v2923, %v2924
      %v3005 = vunpack.c.l.s4 1983009808
      %v3006 = vunpack.c.0.s8 %v3005
      %v3007 = vlaneseq
      %v3008 = vshrl.u32 %v3007, 7
      %v3009 = vsub.s32 %v3006, %v3008
      %v3010 = vrot.slane %v3003, %v3009
      %v3011 = vcombine.low %v2915, %v2922
      %v3013 = vunpack.c.l.s4 1983009808
      %v3014 = vunpack.c.0.s8 %v3013
      %v3015 = vlaneseq
      %v3016 = vshrl.u32 %v3015, 7
      %v3017 = vsub.s32 %v3014, %v3016
      %v3018 = vrot.slane %v3011, %v3017
      %v3019 = vcombine.low %v2925, %v2926
      %v3021 = vunpack.c.l.s4 1983009808
      %v3022 = vunpack.c.0.s8 %v3021
      %v3023 = vlaneseq
      %v3024 = vshrl.u32 %v3023, 7
      %v3025 = vsub.s32 %v3022, %v3024
      %v3026 = vrot.slane %v3019, %v3025
      %v3027 = vcombine.low %v3002, %v3010
      %v3028 = vcombine.high %v3002, %v3010
      %v3030 = vunpack.c.l.s4 1934713408
      %v3031 = vunpack.c.0.s8 %v3030
      %v3032 = vlaneseq
      %v3033 = vshrl.u32 %v3032, 7
      %v3034 = vsub.s32 %v3031, %v3033
      %v3035 = vrot.slane %v3027, %v3034
      %v3037 = vunpack.c.l.s4 1934713408
      %v3038 = vunpack.c.0.s8 %v3037
      %v3039 = vlaneseq
      %v3040 = vshrl.u32 %v3039, 7
      %v3041 = vsub.s32 %v3038, %v3040
      %v3042 = vrot.slane %v3028, %v3041
      %v3043 = vcombine.low %v3018, %v3026
      %v3044 = vcombine.high %v3018, %v3026
      %v3046 = vunpack.c.l.s4 1934713408
      %v3047 = vunpack.c.0.s8 %v3046
      %v3048 = vlaneseq
      %v3049 = vshrl.u32 %v3048, 7
      %v3050 = vsub.s32 %v3047, %v3049
      %v3051 = vrot.slane %v3043, %v3050
      %v3053 = vunpack.c.l.s4 1934713408
      %v3054 = vunpack.c.0.s8 %v3053
      %v3055 = vlaneseq
      %v3056 = vshrl.u32 %v3055, 7
      %v3057 = vsub.s32 %v3054, %v3056
      %v3058 = vrot.slane %v3044, %v3057
      %v3059 = vcombine.low %v3035, %v3051
      %v3060 = vcombine.high %v3035, %v3051
      %v3061 = vcombine.low %v3042, %v3058
      %v3062 = vcombine.high %v3042, %v3058
      %v3063 = vcombine.low %v2967, %v2974
      %v3065 = vunpack.c.l.s4 1983009808
      %v3066 = vunpack.c.0.s8 %v3065
      %v3067 = vlaneseq
      %v3068 = vshrl.u32 %v3067, 7
      %v3069 = vsub.s32 %v3066, %v3068
      %v3070 = vrot.slane %v3063, %v3069
      %v3071 = vcombine.low %v2991, %v2992
      %v3073 = vunpack.c.l.s4 1983009808
      %v3074 = vunpack.c.0.s8 %v3073
      %v3075 = vlaneseq
      %v3076 = vshrl.u32 %v3075, 7
      %v3077 = vsub.s32 %v3074, %v3076
      %v3078 = vrot.slane %v3071, %v3077
      %v3079 = vcombine.low %v2983, %v2990
      %v3081 = vunpack.c.l.s4 1983009808
      %v3082 = vunpack.c.0.s8 %v3081
      %v3083 = vlaneseq
      %v3084 = vshrl.u32 %v3083, 7
      %v3085 = vsub.s32 %v3082, %v3084
      %v3086 = vrot.slane %v3079, %v3085
      %v3087 = vcombine.low %v2993, %v2994
      %v3089 = vunpack.c.l.s4 1983009808
      %v3090 = vunpack.c.0.s8 %v3089
      %v3091 = vlaneseq
      %v3092 = vshrl.u32 %v3091, 7
      %v3093 = vsub.s32 %v3090, %v3092
      %v3094 = vrot.slane %v3087, %v3093
      %v3095 = vcombine.low %v3070, %v3078
      %v3096 = vcombine.high %v3070, %v3078
      %v3098 = vunpack.c.l.s4 1934713408
      %v3099 = vunpack.c.0.s8 %v3098
      %v3100 = vlaneseq
      %v3101 = vshrl.u32 %v3100, 7
      %v3102 = vsub.s32 %v3099, %v3101
      %v3103 = vrot.slane %v3095, %v3102
      %v3105 = vunpack.c.l.s4 1934713408
      %v3106 = vunpack.c.0.s8 %v3105
      %v3107 = vlaneseq
      %v3108 = vshrl.u32 %v3107, 7
      %v3109 = vsub.s32 %v3106, %v3108
      %v3110 = vrot.slane %v3096, %v3109
      %v3111 = vcombine.low %v3086, %v3094
      %v3112 = vcombine.high %v3086, %v3094
      %v3114 = vunpack.c.l.s4 1934713408
      %v3115 = vunpack.c.0.s8 %v3114
      %v3116 = vlaneseq
      %v3117 = vshrl.u32 %v3116, 7
      %v3118 = vsub.s32 %v3115, %v3117
      %v3119 = vrot.slane %v3111, %v3118
      %v3121 = vunpack.c.l.s4 1934713408
      %v3122 = vunpack.c.0.s8 %v3121
      %v3123 = vlaneseq
      %v3124 = vshrl.u32 %v3123, 7
      %v3125 = vsub.s32 %v3122, %v3124
      %v3126 = vrot.slane %v3112, %v3125
      %v3127 = vcombine.low %v3103, %v3119
      %v3128 = vcombine.high %v3103, %v3119
      %v3129 = vcombine.low %v3110, %v3126
      %v3130 = vcombine.high %v3110, %v3126
      %v3131 = vpack.c.bf16 %v3127, %v3059
      %v3132 = vpack.c.bf16 %v3128, %v3060
      %v3133 = vpack.c.bf16 %v3129, %v3061
      %v3134 = vpack.c.bf16 %v3130, %v3062
      %3135 = vrot.lane.b32.xlu0 %v2537, 96
      %v3136 = vpop.permute.xlu0 %3135
      %3137 = vrot.lane.b32.xlu0 %v2540, 96
      %v3138 = vpop.permute.xlu0 %3137
      %3139 = vrot.lane.b32.xlu0 %v2842, 96
      %v3140 = vpop.permute.xlu0 %3139
      %3141 = vrot.lane.b32.xlu0 %v2844, 96
      %v3142 = vpop.permute.xlu0 %3141
      %3143 = vrot.lane.b32.xlu0 %v2848, 96
      %v3144 = vpop.permute.xlu0 %3143
      %3145 = vrot.lane.b32.xlu0 %v2850, 96
      %v3146 = vpop.permute.xlu0 %3145
      %3147 = vrot.lane.b32.xlu0 %v2854, 96
      %v3148 = vpop.permute.xlu0 %3147
      %3149 = vrot.lane.b32.xlu0 %v2856, 96
      %v3150 = vpop.permute.xlu0 %3149
      %v3159 = vcombine.low %v3136, %v3144
      %v3160 = vcombine.high %v3136, %v3144
      %v3162 = vunpack.c.l.s4 1983009808
      %v3163 = vunpack.c.0.s8 %v3162
      %v3164 = vlaneseq
      %v3165 = vshrl.u32 %v3164, 7
      %v3166 = vsub.s32 %v3163, %v3165
      %v3167 = vrot.slane %v3159, %v3166
      %v3169 = vunpack.c.l.s4 1983009808
      %v3170 = vunpack.c.0.s8 %v3169
      %v3171 = vlaneseq
      %v3172 = vshrl.u32 %v3171, 7
      %v3173 = vsub.s32 %v3170, %v3172
      %v3174 = vrot.slane %v3160, %v3173
      %v3175 = vcombine.low %v3140, %v3148
      %v3176 = vcombine.high %v3140, %v3148
      %v3178 = vunpack.c.l.s4 1983009808
      %v3179 = vunpack.c.0.s8 %v3178
      %v3180 = vlaneseq
      %v3181 = vshrl.u32 %v3180, 7
      %v3182 = vsub.s32 %v3179, %v3181
      %v3183 = vrot.slane %v3175, %v3182
      %v3185 = vunpack.c.l.s4 1983009808
      %v3186 = vunpack.c.0.s8 %v3185
      %v3187 = vlaneseq
      %v3188 = vshrl.u32 %v3187, 7
      %v3189 = vsub.s32 %v3186, %v3188
      %v3190 = vrot.slane %v3176, %v3189
      %v3191 = vcombine.low %v3167, %v3183
      %v3192 = vcombine.high %v3167, %v3183
      %v3194 = vunpack.c.l.s4 1934713408
      %v3195 = vunpack.c.0.s8 %v3194
      %v3196 = vlaneseq
      %v3197 = vshrl.u32 %v3196, 7
      %v3198 = vsub.s32 %v3195, %v3197
      %v3199 = vrot.slane %v3191, %v3198
      %v3201 = vunpack.c.l.s4 1934713408
      %v3202 = vunpack.c.0.s8 %v3201
      %v3203 = vlaneseq
      %v3204 = vshrl.u32 %v3203, 7
      %v3205 = vsub.s32 %v3202, %v3204
      %v3206 = vrot.slane %v3192, %v3205
      %v3207 = vcombine.low %v3174, %v3190
      %v3208 = vcombine.high %v3174, %v3190
      %v3210 = vunpack.c.l.s4 1934713408
      %v3211 = vunpack.c.0.s8 %v3210
      %v3212 = vlaneseq
      %v3213 = vshrl.u32 %v3212, 7
      %v3214 = vsub.s32 %v3211, %v3213
      %v3215 = vrot.slane %v3207, %v3214
      %v3217 = vunpack.c.l.s4 1934713408
      %v3218 = vunpack.c.0.s8 %v3217
      %v3219 = vlaneseq
      %v3220 = vshrl.u32 %v3219, 7
      %v3221 = vsub.s32 %v3218, %v3220
      %v3222 = vrot.slane %v3208, %v3221
      %v3223 = vcombine.high %v3199, 0.0
      %v3224 = vcombine.high %v3206, 0.0
      %v3225 = vcombine.high %v3215, 0.0
      %v3226 = vcombine.high %v3222, 0.0
      %v3227 = vcombine.low %v3138, %v3146
      %v3228 = vcombine.high %v3138, %v3146
      %v3230 = vunpack.c.l.s4 1983009808
      %v3231 = vunpack.c.0.s8 %v3230
      %v3232 = vlaneseq
      %v3233 = vshrl.u32 %v3232, 7
      %v3234 = vsub.s32 %v3231, %v3233
      %v3235 = vrot.slane %v3227, %v3234
      %v3237 = vunpack.c.l.s4 1983009808
      %v3238 = vunpack.c.0.s8 %v3237
      %v3239 = vlaneseq
      %v3240 = vshrl.u32 %v3239, 7
      %v3241 = vsub.s32 %v3238, %v3240
      %v3242 = vrot.slane %v3228, %v3241
      %v3243 = vcombine.low %v3142, %v3150
      %v3244 = vcombine.high %v3142, %v3150
      %v3246 = vunpack.c.l.s4 1983009808
      %v3247 = vunpack.c.0.s8 %v3246
      %v3248 = vlaneseq
      %v3249 = vshrl.u32 %v3248, 7
      %v3250 = vsub.s32 %v3247, %v3249
      %v3251 = vrot.slane %v3243, %v3250
      %v3253 = vunpack.c.l.s4 1983009808
      %v3254 = vunpack.c.0.s8 %v3253
      %v3255 = vlaneseq
      %v3256 = vshrl.u32 %v3255, 7
      %v3257 = vsub.s32 %v3254, %v3256
      %v3258 = vrot.slane %v3244, %v3257
      %v3259 = vcombine.low %v3235, %v3251
      %v3260 = vcombine.high %v3235, %v3251
      %v3262 = vunpack.c.l.s4 1934713408
      %v3263 = vunpack.c.0.s8 %v3262
      %v3264 = vlaneseq
      %v3265 = vshrl.u32 %v3264, 7
      %v3266 = vsub.s32 %v3263, %v3265
      %v3267 = vrot.slane %v3259, %v3266
      %v3269 = vunpack.c.l.s4 1934713408
      %v3270 = vunpack.c.0.s8 %v3269
      %v3271 = vlaneseq
      %v3272 = vshrl.u32 %v3271, 7
      %v3273 = vsub.s32 %v3270, %v3272
      %v3274 = vrot.slane %v3260, %v3273
      %v3275 = vcombine.low %v3242, %v3258
      %v3276 = vcombine.high %v3242, %v3258
      %v3278 = vunpack.c.l.s4 1934713408
      %v3279 = vunpack.c.0.s8 %v3278
      %v3280 = vlaneseq
      %v3281 = vshrl.u32 %v3280, 7
      %v3282 = vsub.s32 %v3279, %v3281
      %v3283 = vrot.slane %v3275, %v3282
      %v3285 = vunpack.c.l.s4 1934713408
      %v3286 = vunpack.c.0.s8 %v3285
      %v3287 = vlaneseq
      %v3288 = vshrl.u32 %v3287, 7
      %v3289 = vsub.s32 %v3286, %v3288
      %v3290 = vrot.slane %v3276, %v3289
      %v3291 = vcombine.high %v3267, 0.0
      %v3292 = vcombine.high %v3274, 0.0
      %v3293 = vcombine.high %v3283, 0.0
      %v3294 = vcombine.high %v3290, 0.0
      %v3295 = vcombine.low %v3199, %v3206
      %v3297 = vunpack.c.l.s4 1983009808
      %v3298 = vunpack.c.0.s8 %v3297
      %v3299 = vlaneseq
      %v3300 = vshrl.u32 %v3299, 7
      %v3301 = vsub.s32 %v3298, %v3300
      %v3302 = vrot.slane %v3295, %v3301
      %v3303 = vcombine.low %v3223, %v3224
      %v3305 = vunpack.c.l.s4 1983009808
      %v3306 = vunpack.c.0.s8 %v3305
      %v3307 = vlaneseq
      %v3308 = vshrl.u32 %v3307, 7
      %v3309 = vsub.s32 %v3306, %v3308
      %v3310 = vrot.slane %v3303, %v3309
      %v3311 = vcombine.low %v3215, %v3222
      %v3313 = vunpack.c.l.s4 1983009808
      %v3314 = vunpack.c.0.s8 %v3313
      %v3315 = vlaneseq
      %v3316 = vshrl.u32 %v3315, 7
      %v3317 = vsub.s32 %v3314, %v3316
      %v3318 = vrot.slane %v3311, %v3317
      %v3319 = vcombine.low %v3225, %v3226
      %v3321 = vunpack.c.l.s4 1983009808
      %v3322 = vunpack.c.0.s8 %v3321
      %v3323 = vlaneseq
      %v3324 = vshrl.u32 %v3323, 7
      %v3325 = vsub.s32 %v3322, %v3324
      %v3326 = vrot.slane %v3319, %v3325
      %v3327 = vcombine.low %v3302, %v3310
      %v3328 = vcombine.high %v3302, %v3310
      %v3330 = vunpack.c.l.s4 1934713408
      %v3331 = vunpack.c.0.s8 %v3330
      %v3332 = vlaneseq
      %v3333 = vshrl.u32 %v3332, 7
      %v3334 = vsub.s32 %v3331, %v3333
      %v3335 = vrot.slane %v3327, %v3334
      %v3337 = vunpack.c.l.s4 1934713408
      %v3338 = vunpack.c.0.s8 %v3337
      %v3339 = vlaneseq
      %v3340 = vshrl.u32 %v3339, 7
      %v3341 = vsub.s32 %v3338, %v3340
      %v3342 = vrot.slane %v3328, %v3341
      %v3343 = vcombine.low %v3318, %v3326
      %v3344 = vcombine.high %v3318, %v3326
      %v3346 = vunpack.c.l.s4 1934713408
      %v3347 = vunpack.c.0.s8 %v3346
      %v3348 = vlaneseq
      %v3349 = vshrl.u32 %v3348, 7
      %v3350 = vsub.s32 %v3347, %v3349
      %v3351 = vrot.slane %v3343, %v3350
      %v3353 = vunpack.c.l.s4 1934713408
      %v3354 = vunpack.c.0.s8 %v3353
      %v3355 = vlaneseq
      %v3356 = vshrl.u32 %v3355, 7
      %v3357 = vsub.s32 %v3354, %v3356
      %v3358 = vrot.slane %v3344, %v3357
      %v3359 = vcombine.low %v3335, %v3351
      %v3360 = vcombine.high %v3335, %v3351
      %v3361 = vcombine.low %v3342, %v3358
      %v3362 = vcombine.high %v3342, %v3358
      %v3363 = vcombine.low %v3267, %v3274
      %v3365 = vunpack.c.l.s4 1983009808
      %v3366 = vunpack.c.0.s8 %v3365
      %v3367 = vlaneseq
      %v3368 = vshrl.u32 %v3367, 7
      %v3369 = vsub.s32 %v3366, %v3368
      %v3370 = vrot.slane %v3363, %v3369
      %v3371 = vcombine.low %v3291, %v3292
      %v3373 = vunpack.c.l.s4 1983009808
      %v3374 = vunpack.c.0.s8 %v3373
      %v3375 = vlaneseq
      %v3376 = vshrl.u32 %v3375, 7
      %v3377 = vsub.s32 %v3374, %v3376
      %v3378 = vrot.slane %v3371, %v3377
      %v3379 = vcombine.low %v3283, %v3290
      %v3381 = vunpack.c.l.s4 1983009808
      %v3382 = vunpack.c.0.s8 %v3381
      %v3383 = vlaneseq
      %v3384 = vshrl.u32 %v3383, 7
      %v3385 = vsub.s32 %v3382, %v3384
      %v3386 = vrot.slane %v3379, %v3385
      %v3387 = vcombine.low %v3293, %v3294
      %v3389 = vunpack.c.l.s4 1983009808
      %v3390 = vunpack.c.0.s8 %v3389
      %v3391 = vlaneseq
      %v3392 = vshrl.u32 %v3391, 7
      %v3393 = vsub.s32 %v3390, %v3392
      %v3394 = vrot.slane %v3387, %v3393
      %v3395 = vcombine.low %v3370, %v3378
      %v3396 = vcombine.high %v3370, %v3378
      %v3398 = vunpack.c.l.s4 1934713408
      %v3399 = vunpack.c.0.s8 %v3398
      %v3400 = vlaneseq
      %v3401 = vshrl.u32 %v3400, 7
      %v3402 = vsub.s32 %v3399, %v3401
      %v3403 = vrot.slane %v3395, %v3402
      %v3405 = vunpack.c.l.s4 1934713408
      %v3406 = vunpack.c.0.s8 %v3405
      %v3407 = vlaneseq
      %v3408 = vshrl.u32 %v3407, 7
      %v3409 = vsub.s32 %v3406, %v3408
      %v3410 = vrot.slane %v3396, %v3409
      %v3411 = vcombine.low %v3386, %v3394
      %v3412 = vcombine.high %v3386, %v3394
      %v3414 = vunpack.c.l.s4 1934713408
      %v3415 = vunpack.c.0.s8 %v3414
      %v3416 = vlaneseq
      %v3417 = vshrl.u32 %v3416, 7
      %v3418 = vsub.s32 %v3415, %v3417
      %v3419 = vrot.slane %v3411, %v3418
      %v3421 = vunpack.c.l.s4 1934713408
      %v3422 = vunpack.c.0.s8 %v3421
      %v3423 = vlaneseq
      %v3424 = vshrl.u32 %v3423, 7
      %v3425 = vsub.s32 %v3422, %v3424
      %v3426 = vrot.slane %v3412, %v3425
      %v3427 = vcombine.low %v3403, %v3419
      %v3428 = vcombine.high %v3403, %v3419
      %v3429 = vcombine.low %v3410, %v3426
      %v3430 = vcombine.high %v3410, %v3426
      %v3431 = vpack.c.bf16 %v3427, %v3359
      %v3432 = vpack.c.bf16 %v3428, %v3360
      %v3433 = vpack.c.bf16 %v3429, %v3361
      %v3434 = vpack.c.bf16 %v3430, %v3362
      %v3435 = vld [vmem:[%s524] sm:$0xf]
      %v3436 = vld [vmem:[%s524 + $0x4] sm:$0xf]
      %v3437 = vunpack.c.l.bf16 %v3435
      %v3438 = vunpack.c.l.bf16 %v3436
      %v3440 = vsel %vm1562, %v2835, 0
      %v3443 = vsel %vm1562, %v3131, 0
      %3445 = vmatprep.subr.bf16.mxu0 0
      %3446 = vmatpush1.bf16.xpose.msra.mxu0 0
      %3447 = vmatprep.subr.bf16.mxu0 0
      %3448 = vmatpush1.bf16.xpose.msra.mxu0 0
      %3449 = vmatprep.subr.bf16.mxu0 0
      %3450 = vmatpush1.bf16.xpose.msra.mxu0 0
      %3451 = vmatprep.subr.bf16.mxu0 0
      %3452 = vmatpush1.bf16.xpose.msra.mxu0 0
      %3453 = vmatprep.subr.bf16.mxu0 0
      %3454 = vmatpush1.bf16.xpose.msra.mxu0 0
      %3455 = vmatprep.subr.bf16.mxu0 0
      %3456 = vmatpush1.bf16.xpose.msra.mxu0 0
      %3457 = vmatprep.subr.bf16.mxu0 0
      %3458 = vmatpush1.bf16.xpose.msra.mxu0 0
      %3459 = vmatprep.subr.bf16.mxu0 0
      %3460 = vmatpush1.bf16.xpose.msra.mxu0 %v3443
      %3461 = vmatprep.subr.bf16.mxu0 0
      %3462 = vmatpush2.bf16.xpose.msra.mxu0 0
      %3463 = vmatprep.subr.bf16.mxu0 0
      %3464 = vmatpush2.bf16.xpose.msra.mxu0 0
      %3465 = vmatprep.subr.bf16.mxu0 0
      %3466 = vmatpush2.bf16.xpose.msra.mxu0 0
      %3467 = vmatprep.subr.bf16.mxu0 0
      %3468 = vmatpush2.bf16.xpose.msra.mxu0 0
      %3469 = vmatprep.subr.bf16.mxu0 0
      %3470 = vmatpush2.bf16.xpose.msra.mxu0 0
      %3471 = vmatprep.subr.bf16.mxu0 0
      %3472 = vmatpush2.bf16.xpose.msra.mxu0 0
      %3473 = vmatprep.subr.bf16.mxu0 0
      %3474 = vmatpush2.bf16.xpose.msra.mxu0 0
      %3475 = vmatprep.subr.bf16.mxu0 0
      %3476 = vmatpush2.bf16.xpose.msra.mxu0 0
      %3477 = vmatprep.mubr.bf16.mxu0 0
      %3478 = vmatmul.mubr.bf16.gmra.mxu0 %v3440
      %v3479 = vpop.f32.mrf.mxu0
      %v3480 = vadd.f32 %v3437, %v3479
      %v3481 = vpop.f32.mrf.mxu0
      %v3482 = vpop.f32.mrf.mxu0
      %v3483 = vadd.f32 %v3438, %v3482
      %v3484 = vpop.f32.mrf.mxu0
      %3485 = vdwg.mxu0
      %v3487 = vsel %vm1562, %v2836, 0
      %v3490 = vsel %vm1562, %v3132, 0
      %3492 = vmatprep.subr.bf16.mxu0 0
      %3493 = vmatpush1.bf16.xpose.msra.mxu0 0
      %3494 = vmatprep.subr.bf16.mxu0 0
      %3495 = vmatpush1.bf16.xpose.msra.mxu0 0
      %3496 = vmatprep.subr.bf16.mxu0 0
      %3497 = vmatpush1.bf16.xpose.msra.mxu0 0
      %3498 = vmatprep.subr.bf16.mxu0 0
      %3499 = vmatpush1.bf16.xpose.msra.mxu0 0
      %3500 = vmatprep.subr.bf16.mxu0 0
      %3501 = vmatpush1.bf16.xpose.msra.mxu0 0
      %3502 = vmatprep.subr.bf16.mxu0 0
      %3503 = vmatpush1.bf16.xpose.msra.mxu0 0
      %3504 = vmatprep.subr.bf16.mxu0 0
      %3505 = vmatpush1.bf16.xpose.msra.mxu0 0
      %3506 = vmatprep.subr.bf16.mxu0 0
      %3507 = vmatpush1.bf16.xpose.msra.mxu0 %v3490
      %3508 = vmatprep.subr.bf16.mxu0 0
      %3509 = vmatpush2.bf16.xpose.msra.mxu0 0
      %3510 = vmatprep.subr.bf16.mxu0 0
      %3511 = vmatpush2.bf16.xpose.msra.mxu0 0
      %3512 = vmatprep.subr.bf16.mxu0 0
      %3513 = vmatpush2.bf16.xpose.msra.mxu0 0
      %3514 = vmatprep.subr.bf16.mxu0 0
      %3515 = vmatpush2.bf16.xpose.msra.mxu0 0
      %3516 = vmatprep.subr.bf16.mxu0 0
      %3517 = vmatpush2.bf16.xpose.msra.mxu0 0
      %3518 = vmatprep.subr.bf16.mxu0 0
      %3519 = vmatpush2.bf16.xpose.msra.mxu0 0
      %3520 = vmatprep.subr.bf16.mxu0 0
      %3521 = vmatpush2.bf16.xpose.msra.mxu0 0
      %3522 = vmatprep.subr.bf16.mxu0 0
      %3523 = vmatpush2.bf16.xpose.msra.mxu0 0
      %3524 = vmatprep.mubr.bf16.mxu0 0
      %3525 = vmatmul.mubr.bf16.gmra.mxu0 %v3487
      %v3526 = vpop.f32.mrf.mxu0
      %v3527 = vadd.f32 %v3437, %v3526
      %v3528 = vpop.f32.mrf.mxu0
      %v3529 = vpop.f32.mrf.mxu0
      %v3530 = vadd.f32 %v3438, %v3529
      %v3531 = vpop.f32.mrf.mxu0
      %3532 = vdwg.mxu0
      %v3534 = vsel %vm1562, %v2837, 0
      %v3537 = vsel %vm1562, %v3133, 0
      %3539 = vmatprep.subr.bf16.mxu0 0
      %3540 = vmatpush1.bf16.xpose.msra.mxu0 0
      %3541 = vmatprep.subr.bf16.mxu0 0
      %3542 = vmatpush1.bf16.xpose.msra.mxu0 0
      %3543 = vmatprep.subr.bf16.mxu0 0
      %3544 = vmatpush1.bf16.xpose.msra.mxu0 0
      %3545 = vmatprep.subr.bf16.mxu0 0
      %3546 = vmatpush1.bf16.xpose.msra.mxu0 0
      %3547 = vmatprep.subr.bf16.mxu0 0
      %3548 = vmatpush1.bf16.xpose.msra.mxu0 0
      %3549 = vmatprep.subr.bf16.mxu0 0
      %3550 = vmatpush1.bf16.xpose.msra.mxu0 0
      %3551 = vmatprep.subr.bf16.mxu0 0
      %3552 = vmatpush1.bf16.xpose.msra.mxu0 0
      %3553 = vmatprep.subr.bf16.mxu0 0
      %3554 = vmatpush1.bf16.xpose.msra.mxu0 %v3537
      %3555 = vmatprep.subr.bf16.mxu0 0
      %3556 = vmatpush2.bf16.xpose.msra.mxu0 0
      %3557 = vmatprep.subr.bf16.mxu0 0
      %3558 = vmatpush2.bf16.xpose.msra.mxu0 0
      %3559 = vmatprep.subr.bf16.mxu0 0
      %3560 = vmatpush2.bf16.xpose.msra.mxu0 0
      %3561 = vmatprep.subr.bf16.mxu0 0
      %3562 = vmatpush2.bf16.xpose.msra.mxu0 0
      %3563 = vmatprep.subr.bf16.mxu0 0
      %3564 = vmatpush2.bf16.xpose.msra.mxu0 0
      %3565 = vmatprep.subr.bf16.mxu0 0
      %3566 = vmatpush2.bf16.xpose.msra.mxu0 0
      %3567 = vmatprep.subr.bf16.mxu0 0
      %3568 = vmatpush2.bf16.xpose.msra.mxu0 0
      %3569 = vmatprep.subr.bf16.mxu0 0
      %3570 = vmatpush2.bf16.xpose.msra.mxu0 0
      %3571 = vmatprep.mubr.bf16.mxu0 0
      %3572 = vmatmul.mubr.bf16.gmra.mxu0 %v3534
      %v3573 = vpop.f32.mrf.mxu0
      %v3574 = vadd.f32 %v3437, %v3573
      %v3575 = vpop.f32.mrf.mxu0
      %v3576 = vpop.f32.mrf.mxu0
      %v3577 = vadd.f32 %v3438, %v3576
      %v3578 = vpop.f32.mrf.mxu0
      %3579 = vdwg.mxu0
      %v3581 = vsel %vm1562, %v2838, 0
      %v3584 = vsel %vm1562, %v3134, 0
      %3586 = vmatprep.subr.bf16.mxu0 0
      %3587 = vmatpush1.bf16.xpose.msra.mxu0 0
      %3588 = vmatprep.subr.bf16.mxu0 0
      %3589 = vmatpush1.bf16.xpose.msra.mxu0 0
      %3590 = vmatprep.subr.bf16.mxu0 0
      %3591 = vmatpush1.bf16.xpose.msra.mxu0 0
      %3592 = vmatprep.subr.bf16.mxu0 0
      %3593 = vmatpush1.bf16.xpose.msra.mxu0 0
      %3594 = vmatprep.subr.bf16.mxu0 0
      %3595 = vmatpush1.bf16.xpose.msra.mxu0 0
      %3596 = vmatprep.subr.bf16.mxu0 0
      %3597 = vmatpush1.bf16.xpose.msra.mxu0 0
      %3598 = vmatprep.subr.bf16.mxu0 0
      %3599 = vmatpush1.bf16.xpose.msra.mxu0 0
      %3600 = vmatprep.subr.bf16.mxu0 0
      %3601 = vmatpush1.bf16.xpose.msra.mxu0 %v3584
      %3602 = vmatprep.subr.bf16.mxu0 0
      %3603 = vmatpush2.bf16.xpose.msra.mxu0 0
      %3604 = vmatprep.subr.bf16.mxu0 0
      %3605 = vmatpush2.bf16.xpose.msra.mxu0 0
      %3606 = vmatprep.subr.bf16.mxu0 0
      %3607 = vmatpush2.bf16.xpose.msra.mxu0 0
      %3608 = vmatprep.subr.bf16.mxu0 0
      %3609 = vmatpush2.bf16.xpose.msra.mxu0 0
      %3610 = vmatprep.subr.bf16.mxu0 0
      %3611 = vmatpush2.bf16.xpose.msra.mxu0 0
      %3612 = vmatprep.subr.bf16.mxu0 0
      %3613 = vmatpush2.bf16.xpose.msra.mxu0 0
      %3614 = vmatprep.subr.bf16.mxu0 0
      %3615 = vmatpush2.bf16.xpose.msra.mxu0 0
      %3616 = vmatprep.subr.bf16.mxu0 0
      %3617 = vmatpush2.bf16.xpose.msra.mxu0 0
      %3618 = vmatprep.mubr.bf16.mxu0 0
      %3619 = vmatmul.mubr.bf16.gmra.mxu0 %v3581
      %v3620 = vpop.f32.mrf.mxu0
      %v3621 = vadd.f32 %v3437, %v3620
      %v3622 = vpop.f32.mrf.mxu0
      %v3623 = vpop.f32.mrf.mxu0
      %v3624 = vadd.f32 %v3438, %v3623
      %v3625 = vpop.f32.mrf.mxu0
      %3626 = vdwg.mxu0
      %v3627 = vsel %vm1751, %v3480, -inf
      %3628 = vmax.xlane.f32.xlu0 %v3627
      %v3629 = vpop.xlane.xlu0 %3628
      %v3630 = vsel %vm1751, %v3483, -inf
      %3631 = vmax.xlane.f32.xlu0 %v3630
      %v3632 = vpop.xlane.xlu0 %3631
      %v3633 = vsel %vm1751, %v3527, -inf
      %3634 = vmax.xlane.f32.xlu0 %v3633
      %v3635 = vpop.xlane.xlu0 %3634
      %v3636 = vsel %vm1751, %v3530, -inf
      %3637 = vmax.xlane.f32.xlu0 %v3636
      %v3638 = vpop.xlane.xlu0 %3637
      %v3639 = vsel %vm1751, %v3574, -inf
      %3640 = vmax.xlane.f32.xlu0 %v3639
      %v3641 = vpop.xlane.xlu0 %3640
      %v3642 = vsel %vm1751, %v3577, -inf
      %3643 = vmax.xlane.f32.xlu0 %v3642
      %v3644 = vpop.xlane.xlu0 %3643
      %v3645 = vsel %vm1751, %v3621, -inf
      %3646 = vmax.xlane.f32.xlu0 %v3645
      %v3647 = vpop.xlane.xlu0 %3646
      %v3648 = vsel %vm1751, %v3624, -inf
      %3649 = vmax.xlane.f32.xlu0 %v3648
      %v3650 = vpop.xlane.xlu0 %3649
      %v3651 = vsub.f32 %v3480, %v3629
      %v3652 = vsub.f32 %v3483, %v3632
      %v3653 = vsub.f32 %v3527, %v3635
      %v3654 = vsub.f32 %v3530, %v3638
      %v3655 = vsub.f32 %v3574, %v3641
      %v3656 = vsub.f32 %v3577, %v3644
      %v3657 = vsub.f32 %v3621, %v3647
      %v3658 = vsub.f32 %v3624, %v3650
      %v3659 = vmul.f32 %v3651, 1.442695
      %v3660 = vpow.pop %v3659
      %v3661 = vmul.f32 %v3652, 1.442695
      %v3662 = vpow.pop %v3661
      %v3663 = vmul.f32 %v3653, 1.442695
      %v3664 = vpow.pop %v3663
      %v3665 = vmul.f32 %v3654, 1.442695
      %v3666 = vpow.pop %v3665
      %v3667 = vmul.f32 %v3655, 1.442695
      %v3668 = vpow.pop %v3667
      %v3669 = vmul.f32 %v3656, 1.442695
      %v3670 = vpow.pop %v3669
      %v3671 = vmul.f32 %v3657, 1.442695
      %v3672 = vpow.pop %v3671
      %v3673 = vmul.f32 %v3658, 1.442695
      %v3674 = vpow.pop %v3673
      %v3675 = vsel %vm1751, %v3660, 0.0
      %3676 = vadd.xlane.f32.xlu0 %v3675
      %v3677 = vpop.xlane.xlu0 %3676
      %v3678 = vsel %vm1751, %v3662, 0.0
      %3679 = vadd.xlane.f32.xlu0 %v3678
      %v3680 = vpop.xlane.xlu0 %3679
      %v3681 = vsel %vm1751, %v3664, 0.0
      %3682 = vadd.xlane.f32.xlu0 %v3681
      %v3683 = vpop.xlane.xlu0 %3682
      %v3684 = vsel %vm1751, %v3666, 0.0
      %3685 = vadd.xlane.f32.xlu0 %v3684
      %v3686 = vpop.xlane.xlu0 %3685
      %v3687 = vsel %vm1751, %v3668, 0.0
      %3688 = vadd.xlane.f32.xlu0 %v3687
      %v3689 = vpop.xlane.xlu0 %3688
      %v3690 = vsel %vm1751, %v3670, 0.0
      %3691 = vadd.xlane.f32.xlu0 %v3690
      %v3692 = vpop.xlane.xlu0 %3691
      %v3693 = vsel %vm1751, %v3672, 0.0
      %3694 = vadd.xlane.f32.xlu0 %v3693
      %v3695 = vpop.xlane.xlu0 %3694
      %v3696 = vsel %vm1751, %v3674, 0.0
      %3697 = vadd.xlane.f32.xlu0 %v3696
      %v3698 = vpop.xlane.xlu0 %3697
      %v3699 = vrcp.pop %v3677
      %v3700 = vrcp.pop %v3680
      %v3701 = vrcp.pop %v3683
      %v3702 = vrcp.pop %v3686
      %v3703 = vrcp.pop %v3689
      %v3704 = vrcp.pop %v3692
      %v3705 = vrcp.pop %v3695
      %v3706 = vrcp.pop %v3698
      %v3707 = vmul.f32 %v3660, %v3699
      %v3708 = vmul.f32 %v3662, %v3700
      %v3709 = vmul.f32 %v3664, %v3701
      %v3710 = vmul.f32 %v3666, %v3702
      %v3711 = vmul.f32 %v3668, %v3703
      %v3712 = vmul.f32 %v3670, %v3704
      %v3713 = vmul.f32 %v3672, %v3705
      %v3714 = vmul.f32 %v3674, %v3706
      %v3715 = vpack.c.bf16 %v3708, %v3707
      %v3716 = vpack.c.bf16 %v3710, %v3709
      %v3717 = vpack.c.bf16 %v3712, %v3711
      %v3718 = vpack.c.bf16 %v3714, %v3713
      %v3720 = vsel %vm1751, %v3715, 0
      %3722 = vmatprep.subr.bf16.mxu0 0
      %3723 = vmatpush1.bf16.msra.mxu0 0
      %3724 = vmatprep.subr.bf16.mxu0 0
      %3725 = vmatpush1.bf16.msra.mxu0 0
      %3726 = vmatprep.subr.bf16.mxu0 0
      %3727 = vmatpush1.bf16.msra.mxu0 0
      %3728 = vmatprep.subr.bf16.mxu0 0
      %3729 = vmatpush1.bf16.msra.mxu0 0
      %3730 = vmatprep.subr.bf16.mxu0 0
      %3731 = vmatpush1.bf16.msra.mxu0 0
      %3732 = vmatprep.subr.bf16.mxu0 0
      %3733 = vmatpush1.bf16.msra.mxu0 0
      %3734 = vmatprep.subr.bf16.mxu0 0
      %3735 = vmatpush1.bf16.msra.mxu0 0
      %3736 = vmatprep.subr.bf16.mxu0 0
      %3737 = vmatpush1.bf16.msra.mxu0 %v3431
      %3738 = vmatprep.subr.bf16.mxu0 0
      %3739 = vmatpush2.bf16.msra.mxu0 0
      %3740 = vmatprep.subr.bf16.mxu0 0
      %3741 = vmatpush2.bf16.msra.mxu0 0
      %3742 = vmatprep.subr.bf16.mxu0 0
      %3743 = vmatpush2.bf16.msra.mxu0 0
      %3744 = vmatprep.subr.bf16.mxu0 0
      %3745 = vmatpush2.bf16.msra.mxu0 0
      %3746 = vmatprep.subr.bf16.mxu0 0
      %3747 = vmatpush2.bf16.msra.mxu0 0
      %3748 = vmatprep.subr.bf16.mxu0 0
      %3749 = vmatpush2.bf16.msra.mxu0 0
      %3750 = vmatprep.subr.bf16.mxu0 0
      %3751 = vmatpush2.bf16.msra.mxu0 0
      %3752 = vmatprep.subr.bf16.mxu0 0
      %3753 = vmatpush2.bf16.msra.mxu0 0
      %3754 = vmatprep.mubr.bf16.mxu0 0
      %3755 = vmatmul.mubr.bf16.gmra.mxu0 %v3720
      %v3756 = vpop.f32.mrf.mxu0
      %v3757 = vadd.f32 0.0, %v3756
      %v3758 = vpop.f32.mrf.mxu0
      %v3759 = vpop.f32.mrf.mxu0
      %v3760 = vadd.f32 0.0, %v3759
      %v3761 = vpop.f32.mrf.mxu0
      %3762 = vdwg.mxu0
      %v3764 = vsel %vm1751, %v3716, 0
      %3766 = vmatprep.subr.bf16.mxu0 0
      %3767 = vmatpush1.bf16.msra.mxu0 0
      %3768 = vmatprep.subr.bf16.mxu0 0
      %3769 = vmatpush1.bf16.msra.mxu0 0
      %3770 = vmatprep.subr.bf16.mxu0 0
      %3771 = vmatpush1.bf16.msra.mxu0 0
      %3772 = vmatprep.subr.bf16.mxu0 0
      %3773 = vmatpush1.bf16.msra.mxu0 0
      %3774 = vmatprep.subr.bf16.mxu0 0
      %3775 = vmatpush1.bf16.msra.mxu0 0
      %3776 = vmatprep.subr.bf16.mxu0 0
      %3777 = vmatpush1.bf16.msra.mxu0 0
      %3778 = vmatprep.subr.bf16.mxu0 0
      %3779 = vmatpush1.bf16.msra.mxu0 0
      %3780 = vmatprep.subr.bf16.mxu0 0
      %3781 = vmatpush1.bf16.msra.mxu0 %v3432
      %3782 = vmatprep.subr.bf16.mxu0 0
      %3783 = vmatpush2.bf16.msra.mxu0 0
      %3784 = vmatprep.subr.bf16.mxu0 0
      %3785 = vmatpush2.bf16.msra.mxu0 0
      %3786 = vmatprep.subr.bf16.mxu0 0
      %3787 = vmatpush2.bf16.msra.mxu0 0
      %3788 = vmatprep.subr.bf16.mxu0 0
      %3789 = vmatpush2.bf16.msra.mxu0 0
      %3790 = vmatprep.subr.bf16.mxu0 0
      %3791 = vmatpush2.bf16.msra.mxu0 0
      %3792 = vmatprep.subr.bf16.mxu0 0
      %3793 = vmatpush2.bf16.msra.mxu0 0
      %3794 = vmatprep.subr.bf16.mxu0 0
      %3795 = vmatpush2.bf16.msra.mxu0 0
      %3796 = vmatprep.subr.bf16.mxu0 0
      %3797 = vmatpush2.bf16.msra.mxu0 0
      %3798 = vmatprep.mubr.bf16.mxu0 0
      %3799 = vmatmul.mubr.bf16.gmra.mxu0 %v3764
      %v3800 = vpop.f32.mrf.mxu0
      %v3801 = vadd.f32 0.0, %v3800
      %v3802 = vpop.f32.mrf.mxu0
      %v3803 = vpop.f32.mrf.mxu0
      %v3804 = vadd.f32 0.0, %v3803
      %v3805 = vpop.f32.mrf.mxu0
      %3806 = vdwg.mxu0
      %v3808 = vsel %vm1751, %v3717, 0
      %3810 = vmatprep.subr.bf16.mxu0 0
      %3811 = vmatpush1.bf16.msra.mxu0 0
      %3812 = vmatprep.subr.bf16.mxu0 0
      %3813 = vmatpush1.bf16.msra.mxu0 0
      %3814 = vmatprep.subr.bf16.mxu0 0
      %3815 = vmatpush1.bf16.msra.mxu0 0
      %3816 = vmatprep.subr.bf16.mxu0 0
      %3817 = vmatpush1.bf16.msra.mxu0 0
      %3818 = vmatprep.subr.bf16.mxu0 0
      %3819 = vmatpush1.bf16.msra.mxu0 0
      %3820 = vmatprep.subr.bf16.mxu0 0
      %3821 = vmatpush1.bf16.msra.mxu0 0
      %3822 = vmatprep.subr.bf16.mxu0 0
      %3823 = vmatpush1.bf16.msra.mxu0 0
      %3824 = vmatprep.subr.bf16.mxu0 0
      %3825 = vmatpush1.bf16.msra.mxu0 %v3433
      %3826 = vmatprep.subr.bf16.mxu0 0
      %3827 = vmatpush2.bf16.msra.mxu0 0
      %3828 = vmatprep.subr.bf16.mxu0 0
      %3829 = vmatpush2.bf16.msra.mxu0 0
      %3830 = vmatprep.subr.bf16.mxu0 0
      %3831 = vmatpush2.bf16.msra.mxu0 0
      %3832 = vmatprep.subr.bf16.mxu0 0
      %3833 = vmatpush2.bf16.msra.mxu0 0
      %3834 = vmatprep.subr.bf16.mxu0 0
      %3835 = vmatpush2.bf16.msra.mxu0 0
      %3836 = vmatprep.subr.bf16.mxu0 0
      %3837 = vmatpush2.bf16.msra.mxu0 0
      %3838 = vmatprep.subr.bf16.mxu0 0
      %3839 = vmatpush2.bf16.msra.mxu0 0
      %3840 = vmatprep.subr.bf16.mxu0 0
      %3841 = vmatpush2.bf16.msra.mxu0 0
      %3842 = vmatprep.mubr.bf16.mxu0 0
      %3843 = vmatmul.mubr.bf16.gmra.mxu0 %v3808
      %v3844 = vpop.f32.mrf.mxu0
      %v3845 = vadd.f32 0.0, %v3844
      %v3846 = vpop.f32.mrf.mxu0
      %v3847 = vpop.f32.mrf.mxu0
      %v3848 = vadd.f32 0.0, %v3847
      %v3849 = vpop.f32.mrf.mxu0
      %3850 = vdwg.mxu0
      %v3852 = vsel %vm1751, %v3718, 0
      %3854 = vmatprep.subr.bf16.mxu0 0
      %3855 = vmatpush1.bf16.msra.mxu0 0
      %3856 = vmatprep.subr.bf16.mxu0 0
      %3857 = vmatpush1.bf16.msra.mxu0 0
      %3858 = vmatprep.subr.bf16.mxu0 0
      %3859 = vmatpush1.bf16.msra.mxu0 0
      %3860 = vmatprep.subr.bf16.mxu0 0
      %3861 = vmatpush1.bf16.msra.mxu0 0
      %3862 = vmatprep.subr.bf16.mxu0 0
      %3863 = vmatpush1.bf16.msra.mxu0 0
      %3864 = vmatprep.subr.bf16.mxu0 0
      %3865 = vmatpush1.bf16.msra.mxu0 0
      %3866 = vmatprep.subr.bf16.mxu0 0
      %3867 = vmatpush1.bf16.msra.mxu0 0
      %3868 = vmatprep.subr.bf16.mxu0 0
      %3869 = vmatpush1.bf16.msra.mxu0 %v3434
      %3870 = vmatprep.subr.bf16.mxu0 0
      %3871 = vmatpush2.bf16.msra.mxu0 0
      %3872 = vmatprep.subr.bf16.mxu0 0
      %3873 = vmatpush2.bf16.msra.mxu0 0
      %3874 = vmatprep.subr.bf16.mxu0 0
      %3875 = vmatpush2.bf16.msra.mxu0 0
      %3876 = vmatprep.subr.bf16.mxu0 0
      %3877 = vmatpush2.bf16.msra.mxu0 0
      %3878 = vmatprep.subr.bf16.mxu0 0
      %3879 = vmatpush2.bf16.msra.mxu0 0
      %3880 = vmatprep.subr.bf16.mxu0 0
      %3881 = vmatpush2.bf16.msra.mxu0 0
      %3882 = vmatprep.subr.bf16.mxu0 0
      %3883 = vmatpush2.bf16.msra.mxu0 0
      %3884 = vmatprep.subr.bf16.mxu0 0
      %3885 = vmatpush2.bf16.msra.mxu0 0
      %3886 = vmatprep.mubr.bf16.mxu0 0
      %3887 = vmatmul.mubr.bf16.gmra.mxu0 %v3852
      %v3888 = vpop.f32.mrf.mxu0
      %v3889 = vadd.f32 0.0, %v3888
      %v3890 = vpop.f32.mrf.mxu0
      %v3891 = vpop.f32.mrf.mxu0
      %v3892 = vadd.f32 0.0, %v3891
      %v3893 = vpop.f32.mrf.mxu0
      %3894 = vdwg.mxu0
      %v3895 = vcombine.low %v3757, %v3845
      %v3896 = vcombine.high %v3757, %v3845
      %v3898 = vunpack.c.l.s4 1983009808
      %v3899 = vunpack.c.0.s8 %v3898
      %v3900 = vlaneseq
      %v3901 = vshrl.u32 %v3900, 7
      %v3902 = vsub.s32 %v3899, %v3901
      %v3903 = vrot.slane %v3895, %v3902
      %v3905 = vunpack.c.l.s4 1983009808
      %v3906 = vunpack.c.0.s8 %v3905
      %v3907 = vlaneseq
      %v3908 = vshrl.u32 %v3907, 7
      %v3909 = vsub.s32 %v3906, %v3908
      %v3910 = vrot.slane %v3896, %v3909
      %v3911 = vcombine.low %v3801, %v3889
      %v3912 = vcombine.high %v3801, %v3889
      %v3914 = vunpack.c.l.s4 1983009808
      %v3915 = vunpack.c.0.s8 %v3914
      %v3916 = vlaneseq
      %v3917 = vshrl.u32 %v3916, 7
      %v3918 = vsub.s32 %v3915, %v3917
      %v3919 = vrot.slane %v3911, %v3918
      %v3921 = vunpack.c.l.s4 1983009808
      %v3922 = vunpack.c.0.s8 %v3921
      %v3923 = vlaneseq
      %v3924 = vshrl.u32 %v3923, 7
      %v3925 = vsub.s32 %v3922, %v3924
      %v3926 = vrot.slane %v3912, %v3925
      %v3927 = vcombine.low %v3903, %v3919
      %v3928 = vcombine.high %v3903, %v3919
      %v3930 = vunpack.c.l.s4 1934713408
      %v3931 = vunpack.c.0.s8 %v3930
      %v3932 = vlaneseq
      %v3933 = vshrl.u32 %v3932, 7
      %v3934 = vsub.s32 %v3931, %v3933
      %v3935 = vrot.slane %v3927, %v3934
      %v3937 = vunpack.c.l.s4 1934713408
      %v3938 = vunpack.c.0.s8 %v3937
      %v3939 = vlaneseq
      %v3940 = vshrl.u32 %v3939, 7
      %v3941 = vsub.s32 %v3938, %v3940
      %v3942 = vrot.slane %v3928, %v3941
      %v3943 = vcombine.low %v3910, %v3926
      %v3944 = vcombine.high %v3910, %v3926
      %v3946 = vunpack.c.l.s4 1934713408
      %v3947 = vunpack.c.0.s8 %v3946
      %v3948 = vlaneseq
      %v3949 = vshrl.u32 %v3948, 7
      %v3950 = vsub.s32 %v3947, %v3949
      %v3951 = vrot.slane %v3943, %v3950
      %v3953 = vunpack.c.l.s4 1934713408
      %v3954 = vunpack.c.0.s8 %v3953
      %v3955 = vlaneseq
      %v3956 = vshrl.u32 %v3955, 7
      %v3957 = vsub.s32 %v3954, %v3956
      %v3958 = vrot.slane %v3944, %v3957
      %v3959 = vcombine.high %v3935, 0.0
      %v3960 = vcombine.high %v3942, 0.0
      %v3961 = vcombine.high %v3951, 0.0
      %v3962 = vcombine.high %v3958, 0.0
      %v3963 = vcombine.low %v3760, %v3848
      %v3964 = vcombine.high %v3760, %v3848
      %v3966 = vunpack.c.l.s4 1983009808
      %v3967 = vunpack.c.0.s8 %v3966
      %v3968 = vlaneseq
      %v3969 = vshrl.u32 %v3968, 7
      %v3970 = vsub.s32 %v3967, %v3969
      %v3971 = vrot.slane %v3963, %v3970
      %v3973 = vunpack.c.l.s4 1983009808
      %v3974 = vunpack.c.0.s8 %v3973
      %v3975 = vlaneseq
      %v3976 = vshrl.u32 %v3975, 7
      %v3977 = vsub.s32 %v3974, %v3976
      %v3978 = vrot.slane %v3964, %v3977
      %v3979 = vcombine.low %v3804, %v3892
      %v3980 = vcombine.high %v3804, %v3892
      %v3982 = vunpack.c.l.s4 1983009808
      %v3983 = vunpack.c.0.s8 %v3982
      %v3984 = vlaneseq
      %v3985 = vshrl.u32 %v3984, 7
      %v3986 = vsub.s32 %v3983, %v3985
      %v3987 = vrot.slane %v3979, %v3986
      %v3989 = vunpack.c.l.s4 1983009808
      %v3990 = vunpack.c.0.s8 %v3989
      %v3991 = vlaneseq
      %v3992 = vshrl.u32 %v3991, 7
      %v3993 = vsub.s32 %v3990, %v3992
      %v3994 = vrot.slane %v3980, %v3993
      %v3995 = vcombine.low %v3971, %v3987
      %v3996 = vcombine.high %v3971, %v3987
      %v3998 = vunpack.c.l.s4 1934713408
      %v3999 = vunpack.c.0.s8 %v3998
      %v4000 = vlaneseq
      %v4001 = vshrl.u32 %v4000, 7
      %v4002 = vsub.s32 %v3999, %v4001
      %v4003 = vrot.slane %v3995, %v4002
      %v4005 = vunpack.c.l.s4 1934713408
      %v4006 = vunpack.c.0.s8 %v4005
      %v4007 = vlaneseq
      %v4008 = vshrl.u32 %v4007, 7
      %v4009 = vsub.s32 %v4006, %v4008
      %v4010 = vrot.slane %v3996, %v4009
      %v4011 = vcombine.low %v3978, %v3994
      %v4012 = vcombine.high %v3978, %v3994
      %v4014 = vunpack.c.l.s4 1934713408
      %v4015 = vunpack.c.0.s8 %v4014
      %v4016 = vlaneseq
      %v4017 = vshrl.u32 %v4016, 7
      %v4018 = vsub.s32 %v4015, %v4017
      %v4019 = vrot.slane %v4011, %v4018
      %v4021 = vunpack.c.l.s4 1934713408
      %v4022 = vunpack.c.0.s8 %v4021
      %v4023 = vlaneseq
      %v4024 = vshrl.u32 %v4023, 7
      %v4025 = vsub.s32 %v4022, %v4024
      %v4026 = vrot.slane %v4012, %v4025
      %v4027 = vcombine.high %v4003, 0.0
      %v4028 = vcombine.high %v4010, 0.0
      %v4029 = vcombine.high %v4019, 0.0
      %v4030 = vcombine.high %v4026, 0.0
      %v4031 = vcombine.low %v3935, %v3942
      %v4033 = vunpack.c.l.s4 1983009808
      %v4034 = vunpack.c.0.s8 %v4033
      %v4035 = vlaneseq
      %v4036 = vshrl.u32 %v4035, 7
      %v4037 = vsub.s32 %v4034, %v4036
      %v4038 = vrot.slane %v4031, %v4037
      %v4039 = vcombine.low %v3959, %v3960
      %v4041 = vunpack.c.l.s4 1983009808
      %v4042 = vunpack.c.0.s8 %v4041
      %v4043 = vlaneseq
      %v4044 = vshrl.u32 %v4043, 7
      %v4045 = vsub.s32 %v4042, %v4044
      %v4046 = vrot.slane %v4039, %v4045
      %v4047 = vcombine.low %v3951, %v3958
      %v4049 = vunpack.c.l.s4 1983009808
      %v4050 = vunpack.c.0.s8 %v4049
      %v4051 = vlaneseq
      %v4052 = vshrl.u32 %v4051, 7
      %v4053 = vsub.s32 %v4050, %v4052
      %v4054 = vrot.slane %v4047, %v4053
      %v4055 = vcombine.low %v3961, %v3962
      %v4057 = vunpack.c.l.s4 1983009808
      %v4058 = vunpack.c.0.s8 %v4057
      %v4059 = vlaneseq
      %v4060 = vshrl.u32 %v4059, 7
      %v4061 = vsub.s32 %v4058, %v4060
      %v4062 = vrot.slane %v4055, %v4061
      %v4063 = vcombine.low %v4038, %v4046
      %v4064 = vcombine.high %v4038, %v4046
      %v4066 = vunpack.c.l.s4 1934713408
      %v4067 = vunpack.c.0.s8 %v4066
      %v4068 = vlaneseq
      %v4069 = vshrl.u32 %v4068, 7
      %v4070 = vsub.s32 %v4067, %v4069
      %v4071 = vrot.slane %v4063, %v4070
      %v4073 = vunpack.c.l.s4 1934713408
      %v4074 = vunpack.c.0.s8 %v4073
      %v4075 = vlaneseq
      %v4076 = vshrl.u32 %v4075, 7
      %v4077 = vsub.s32 %v4074, %v4076
      %v4078 = vrot.slane %v4064, %v4077
      %v4079 = vcombine.low %v4054, %v4062
      %v4080 = vcombine.high %v4054, %v4062
      %v4082 = vunpack.c.l.s4 1934713408
      %v4083 = vunpack.c.0.s8 %v4082
      %v4084 = vlaneseq
      %v4085 = vshrl.u32 %v4084, 7
      %v4086 = vsub.s32 %v4083, %v4085
      %v4087 = vrot.slane %v4079, %v4086
      %v4089 = vunpack.c.l.s4 1934713408
      %v4090 = vunpack.c.0.s8 %v4089
      %v4091 = vlaneseq
      %v4092 = vshrl.u32 %v4091, 7
      %v4093 = vsub.s32 %v4090, %v4092
      %v4094 = vrot.slane %v4080, %v4093
      %v4095 = vcombine.low %v4071, %v4087
      %v4096 = vcombine.high %v4071, %v4087
      %v4097 = vcombine.low %v4078, %v4094
      %v4098 = vcombine.high %v4078, %v4094
      %v4099 = vcombine.low %v4003, %v4010
      %v4101 = vunpack.c.l.s4 1983009808
      %v4102 = vunpack.c.0.s8 %v4101
      %v4103 = vlaneseq
      %v4104 = vshrl.u32 %v4103, 7
      %v4105 = vsub.s32 %v4102, %v4104
      %v4106 = vrot.slane %v4099, %v4105
      %v4107 = vcombine.low %v4027, %v4028
      %v4109 = vunpack.c.l.s4 1983009808
      %v4110 = vunpack.c.0.s8 %v4109
      %v4111 = vlaneseq
      %v4112 = vshrl.u32 %v4111, 7
      %v4113 = vsub.s32 %v4110, %v4112
      %v4114 = vrot.slane %v4107, %v4113
      %v4115 = vcombine.low %v4019, %v4026
      %v4117 = vunpack.c.l.s4 1983009808
      %v4118 = vunpack.c.0.s8 %v4117
      %v4119 = vlaneseq
      %v4120 = vshrl.u32 %v4119, 7
      %v4121 = vsub.s32 %v4118, %v4120
      %v4122 = vrot.slane %v4115, %v4121
      %v4123 = vcombine.low %v4029, %v4030
      %v4125 = vunpack.c.l.s4 1983009808
      %v4126 = vunpack.c.0.s8 %v4125
      %v4127 = vlaneseq
      %v4128 = vshrl.u32 %v4127, 7
      %v4129 = vsub.s32 %v4126, %v4128
      %v4130 = vrot.slane %v4123, %v4129
      %v4131 = vcombine.low %v4106, %v4114
      %v4132 = vcombine.high %v4106, %v4114
      %v4134 = vunpack.c.l.s4 1934713408
      %v4135 = vunpack.c.0.s8 %v4134
      %v4136 = vlaneseq
      %v4137 = vshrl.u32 %v4136, 7
      %v4138 = vsub.s32 %v4135, %v4137
      %v4139 = vrot.slane %v4131, %v4138
      %v4141 = vunpack.c.l.s4 1934713408
      %v4142 = vunpack.c.0.s8 %v4141
      %v4143 = vlaneseq
      %v4144 = vshrl.u32 %v4143, 7
      %v4145 = vsub.s32 %v4142, %v4144
      %v4146 = vrot.slane %v4132, %v4145
      %v4147 = vcombine.low %v4122, %v4130
      %v4148 = vcombine.high %v4122, %v4130
      %v4150 = vunpack.c.l.s4 1934713408
      %v4151 = vunpack.c.0.s8 %v4150
      %v4152 = vlaneseq
      %v4153 = vshrl.u32 %v4152, 7
      %v4154 = vsub.s32 %v4151, %v4153
      %v4155 = vrot.slane %v4147, %v4154
      %v4157 = vunpack.c.l.s4 1934713408
      %v4158 = vunpack.c.0.s8 %v4157
      %v4159 = vlaneseq
      %v4160 = vshrl.u32 %v4159, 7
      %v4161 = vsub.s32 %v4158, %v4160
      %v4162 = vrot.slane %v4148, %v4161
      %v4163 = vcombine.low %v4139, %v4155
      %v4164 = vcombine.high %v4139, %v4155
      %v4165 = vcombine.low %v4146, %v4162
      %v4166 = vcombine.high %v4146, %v4162
      %4169 = vrot.lane.b32.xlu0 %v4096, 8
      %v4170 = vpop.permute.xlu0 %4169
      %4171 = vrot.lane.b32.xlu0 %v4164, 8
      %v4172 = vpop.permute.xlu0 %4171
      %4177 = vrot.lane.b32.xlu0 %v4097, 16
      %v4178 = vpop.permute.xlu0 %4177
      %4179 = vrot.lane.b32.xlu0 %v4165, 16
      %v4180 = vpop.permute.xlu0 %4179
      %4185 = vrot.lane.b32.xlu0 %v4098, 24
      %v4186 = vpop.permute.xlu0 %4185
      %4187 = vrot.lane.b32.xlu0 %v4166, 24
      %v4188 = vpop.permute.xlu0 %4187
      %v4191 = vsel %vm1562, %v4095, %v4170
      %v4192 = vsel %vm1562, %v4163, %v4172
      %v4193 = vsel %vm1751, %v4191, %v4178
      %v4194 = vsel %vm1751, %v4192, %v4180
      %v4195 = vsel %vm2320, %v4193, %v4186
      %v4196 = vsel %vm2320, %v4194, %v4188
      %v4197 = vpack.c.bf16 %v4196, %v4195
      %v4198 = vld [vmem:[%s10] sm:$0xf]
      %v4199 = vld [vmem:[%s10 + $0x4] sm:$0xf]
      %v4200 = vld [vmem:[%s10 + $0x8] sm:$0xf]
      %v4201 = vld [vmem:[%s10 + $0xc] sm:$0xf]
      %v4206 = vunpack.c.l.b16 %v4198
      %v4207 = vunpack.c.l.b16 %v4199
      %v4208 = vunpack.c.l.b16 %v4200
      %v4209 = vunpack.c.l.b16 %v4201
      %v4210 = vpack.c.b16 %v4207, %v4206
      %v4211 = vpack.c.b16 %v4209, %v4208
      %v4215 = vsel %vm561, %v4197, 0
      %4217 = vmatprep.subr.bf16.mxu0 0
      %4218 = vmatpush1.bf16.msra.mxu0 0
      %4219 = vmatprep.subr.bf16.mxu0 0
      %4220 = vmatpush1.bf16.msra.mxu0 0
      %4221 = vmatprep.subr.bf16.mxu0 0
      %4222 = vmatpush1.bf16.msra.mxu0 0
      %4223 = vmatprep.subr.bf16.mxu0 0
      %4224 = vmatpush1.bf16.msra.mxu0 0
      %4225 = vmatprep.subr.bf16.mxu0 0
      %4226 = vmatpush1.bf16.msra.mxu0 0
      %4227 = vmatprep.subr.bf16.mxu0 0
      %4228 = vmatpush1.bf16.msra.mxu0 0
      %4229 = vmatprep.subr.bf16.mxu0 0
      %4230 = vmatpush1.bf16.msra.mxu0 %v4211
      %4231 = vmatprep.subr.bf16.mxu0 0
      %4232 = vmatpush1.bf16.msra.mxu0 %v4210
      %4233 = vmatprep.subr.bf16.mxu0 0
      %4234 = vmatpush2.bf16.msra.mxu0 0
      %4235 = vmatprep.subr.bf16.mxu0 0
      %4236 = vmatpush2.bf16.msra.mxu0 0
      %4237 = vmatprep.subr.bf16.mxu0 0
      %4238 = vmatpush2.bf16.msra.mxu0 0
      %4239 = vmatprep.subr.bf16.mxu0 0
      %4240 = vmatpush2.bf16.msra.mxu0 0
      %4241 = vmatprep.subr.bf16.mxu0 0
      %4242 = vmatpush2.bf16.msra.mxu0 0
      %4243 = vmatprep.subr.bf16.mxu0 0
      %4244 = vmatpush2.bf16.msra.mxu0 0
      %4245 = vmatprep.subr.bf16.mxu0 0
      %4246 = vmatpush2.bf16.msra.mxu0 0
      %4247 = vmatprep.subr.bf16.mxu0 0
      %4248 = vmatpush2.bf16.msra.mxu0 0
      %4249 = vmatprep.mubr.bf16.mxu0 0
      %4250 = vmatmul.mubr.bf16.gmra.mxu0 %v4215
      %v4251 = vpop.f32.mrf.mxu0
      %v4252 = vadd.f32 %v541, %v4251
      %v4253 = vpop.f32.mrf.mxu0
      %v4254 = vpop.f32.mrf.mxu0
      %v4255 = vadd.f32 %v542, %v4254
      %v4256 = vpop.f32.mrf.mxu0
      %4257 = vdwg.mxu0
      %v4258 = vsel %vm561, %v4252, 0.0
      %4259 = vadd.xlane.f32.xlu0 %v4258
      %v4260 = vpop.xlane.xlu0 %4259
      %v4261 = vsel %vm561, %v4255, 0.0
      %4262 = vadd.xlane.f32.xlu0 %v4261
      %v4263 = vpop.xlane.xlu0 %4262
      %v4264 = vmul.f32 %v4260, %v2390
      %v4265 = vmul.f32 %v4263, %v2390
      %v4266 = vsub.f32 %v4252, %v4264
      %v4267 = vsub.f32 %v4255, %v4265
      %v4268 = vmul.f32 %v4266, %v4266
      %v4269 = vmul.f32 %v4267, %v4267
      %v4270 = vsel %vm561, %v4268, 0.0
      %4271 = vadd.xlane.f32.xlu0 %v4270
      %v4272 = vpop.xlane.xlu0 %4271
      %v4273 = vsel %vm561, %v4269, 0.0
      %4274 = vadd.xlane.f32.xlu0 %v4273
      %v4275 = vpop.xlane.xlu0 %4274
      %v4276 = vmul.f32 %v4272, %v2390
      %v4277 = vmul.f32 %v4275, %v2390
      %v4278 = vadd.f32 %v4276, 1e-06
      %v4279 = vadd.f32 %v4277, 1e-06
      %v4280 = vrsqrt.pop %v4278
      %v4281 = vrsqrt.pop %v4279
      %v4282 = vmul.f32 %v4266, %v4280
      %v4283 = vmul.f32 %v4267, %v4281
      %v4284 = vld [vmem:[%s11] sm:$0x1]
      %v4286 = vlaneseq
      %v4287 = vshrl.u32 %v4286, 7
      %v4288 = vsub.s32 0, %v4287
      %v4289 = vrot.slane %v4284, %v4288
      %v4291 = vmul.f32 %v4282, %v4289
      %v4292 = vmul.f32 %v4283, %v4289
      %v4293 = vld [vmem:[%s12] sm:$0x1]
      %v4295 = vlaneseq
      %v4296 = vshrl.u32 %v4295, 7
      %v4297 = vsub.s32 0, %v4296
      %v4298 = vrot.slane %v4293, %v4297
      %v4300 = vadd.f32 %v4291, %v4298
      %v4301 = vadd.f32 %v4292, %v4298
      %v4302 = vmax.f32 %v2427, %v4300
      %v4303 = vmax.f32 %v2428, %v4301
      %4304 = vst.msk [vmem:[%s534] sm:$0xff] %vm561, %v4302
      %4305 = vst.msk [vmem:[%s534 + $0x8] sm:$0xff] %vm561, %v4303
      %s4306 = smul.u32 2, %s29
      %p4307 = scmp.lt.s32.totalorder %s28, 1
      %s4308 = scalar_select %p4307, %s28, 1
      %p4309 = scmp.lt.s32.totalorder %s4306, 1
      %s4310 = scalar_select %p4309, %s4306, 1
      %s4311 = smul.addr %s4308, 2
      %s4312 = sadd.s32 %s4310, %s4311
      %s4313 = smul.addr %s4312, 8
      %s4314 = scalar_lea.vmem %s13, %s4313
      // Predicated region
      $region73: #{model_forward.3} parent=71 // pred_check
        %p4315 = pneg %p348
      $region74: #{model_forward.3} parent=71 // pred_check_branch
        %4317 = sbr.rel (%p4315) target = $region76
      $region75: #{model_forward.3} parent=71 // pred_region
        %s4318 = smul.u32 2, %s29
      $region76: #{model_forward.3} parent=71 // pred_fallthru
        _
    $region72: #{model_forward.3} parent=5 // pred_fallthru
      _
    %p4319 = scmp.le.s32.totalorder 2, %s19
    // Predicated region
    $region77: #{model_forward.3} parent=5 // pred_check
      %p4320 = pneg %p4319
    $region78: #{model_forward.3} parent=5 // pred_check_branch
      %4322 = sbr.rel (%p4320) target = $region80
    $region79: #{model_forward.3} parent=5 // pred_region
      %s4323 = ssub.s32 %s19, 2
      // Predicated region
      $region81: #{model_forward.3} parent=79 // pred_check
        %p4324 = pneg %p354
      $region82: #{model_forward.3} parent=79 // pred_check_branch
        %4326 = sbr.rel (%p4324) target = $region84
      $region83: #{model_forward.3} parent=79 // pred_region
        %s4327 = smul.u32 2, %s31
        %p4328 = scmp.lt.s32.totalorder %s30, 1
        %s4329 = scalar_select %p4328, %s30, 1
        %p4330 = scmp.lt.s32.totalorder %s4327, 1
        %s4331 = scalar_select %p4330, %s4327, 1
        %s4332 = smul.addr %s4329, 2
        %s4333 = sadd.s32 %s4331, %s4332
        %s4334 = smul.addr %s4333, 8
        %s4335 = scalar_lea.vmem %s13, %s4334
      $region84: #{model_forward.3} parent=79 // pred_fallthru
        _
    $region80: #{model_forward.3} parent=5 // pred_fallthru
      _
  $region6: #{model_forward.3} parent=0 // loop_footer
    %s23 = sadd.s32 1, %s19
  $region7: #{model_forward.3} parent=0 // loop_footer_branch
    %18 = sbr.rel target = $region3
  $region8: #{model_forward.3} parent=0 // loop_exit
    _

</llo_original>
